<compile_context>
chip_gen: v7x
topology: tpu7x:2x2x1
jax: 0.10.0
libtpu: 0.0.40
codegen_flags: <defaults>
</compile_context>

<pallas_src>
import functools

import jax
import jax.numpy as jnp
from jax.experimental import pallas as pl
from jax.experimental.pallas import tpu as pltpu

LANE = 128
SUBLANE = 8

# Set to jnp.bfloat16 on v6e / v7x for MXU throughput (accumulation and all
# gate / carry math stay float32 either way).  float32 = exact PyTorch numerics.
COMPUTE_DTYPE = jnp.float32

_VMEM = pl.BlockSpec(memory_space=pltpu.MemorySpace.VMEM)


def _round_up(x, m):
    return (x + m - 1) // m * m


# ----------------------------------------------------------------------------
# Fused Pallas kernel: all LSTM layers + MLP head in one call.
# ----------------------------------------------------------------------------
def fused_lstm_kernel(num_layers, seq_len, batch_pad, hidden_pad, compute_dtype,
                      x_ref, *refs):
    """Entire forward pass.

    x_ref:      (T*Bp, Dp)   time-major, batch/feature padded input
    per layer:  wih (Dinp, 4Hp), whh (Hp, 4Hp), b (1, 4Hp)   [gate order i,f,g,o;
                each gate occupies a 128-aligned column block]
    head:       w1 (Hp, Fp), b1 (1, Fp), w2 (Fp, Cp), b2 (1, Cp)
    outputs:    hn (L*Bp, Hp), logits (L*Bp, Cp)
    scratch:    gx (T*Bp, 4Hp), hseq (T*Bp, Hp)   -- both VMEM
    """
    n_lstm = 3 * num_layers
    lstm_refs = refs[:n_lstm]
    w1_ref, b1_ref, w2_ref, b2_ref = refs[n_lstm:n_lstm + 4]
    hn_ref, out_ref = refs[n_lstm + 4:n_lstm + 6]
    gx_ref, hseq_ref = refs[n_lstm + 6:n_lstm + 8]

    T, B, H = seq_len, batch_pad, hidden_pad

    for layer in range(num_layers):
        wih = lstm_refs[3 * layer][...].astype(compute_dtype)
        whh = lstm_refs[3 * layer + 1][...].astype(compute_dtype)
        b = lstm_refs[3 * layer + 2][...]                         # (1, 4H) f32

        # ---- Hoisted input projection: one big MXU matmul over all timesteps,
        #      bias added once (off the serial h-dependency chain).
        inp = x_ref[...] if layer == 0 else hseq_ref[...]         # (T*B, Din)
        gx_ref[...] = (jnp.dot(inp.astype(compute_dtype), wih,
                               preferred_element_type=jnp.float32) + b)

        # ---- Recurrence: only h @ W_hh remains on the serial critical path.
        #      Fully unrolled (small static T) for cross-step LLO scheduling.
        # TODO(synk): for long sequences, switch to lax.fori_loop(..., unroll=k)
        #             with dynamic gx_ref / hseq_ref indexing via pl.ds.
        h = jnp.zeros((B, H), jnp.float32)
        c = jnp.zeros((B, H), jnp.float32)
        for t in range(T):
            g = gx_ref[t * B:(t + 1) * B, :] + jnp.dot(
                h.astype(compute_dtype), whh,
                preferred_element_type=jnp.float32)               # (B, 4H) f32
            # Lane-aligned gate views (H is a multiple of 128).
            i_g = jax.nn.sigmoid(g[:, 0 * H:1 * H])
            f_g = jax.nn.sigmoid(g[:, 1 * H:2 * H])
            g_g = jnp.tanh(g[:, 2 * H:3 * H])
            o_g = jax.nn.sigmoid(g[:, 3 * H:4 * H])
            c = f_g * c + i_g * g_g
            h = o_g * jnp.tanh(c)
            hseq_ref[t * B:(t + 1) * B, :] = h                    # dense (B,H) store
        hn_ref[layer * B:(layer + 1) * B, :] = h

    # ---- MLP head fused into the same kernel: relu(hn) -> fc1 -> relu -> fc2.
    # TODO(synk): head is the canonical completion of the truncated forward().
    z = jnp.maximum(hn_ref[...], 0.0).astype(compute_dtype)
    h1 = jnp.dot(z, w1_ref[...].astype(compute_dtype),
                 preferred_element_type=jnp.float32) + b1_ref[...]
    h1 = jnp.maximum(h1, 0.0).astype(compute_dtype)
    out_ref[...] = jnp.dot(h1, w2_ref[...].astype(compute_dtype),
                           preferred_element_type=jnp.float32) + b2_ref[...]


# ----------------------------------------------------------------------------
# Wrapper: padding / layout plumbing in plain JAX, hot path in the kernel.
# ----------------------------------------------------------------------------
def make_forward(input_size, hidden_size, num_layers, num_classes,
                 compute_dtype=jnp.float32):
    Hp = _round_up(hidden_size, LANE)
    Cp = _round_up(num_classes, LANE)
    Dp = _round_up(input_size, LANE)

    @jax.jit
    def forward(x_in, padded_params):
        B, T, _D = x_in.shape
        Bp = _round_up(B, SUBLANE)
        Np = num_layers * Bp

        # batch_first -> time-major, pad batch/features, flatten to (T*Bp, Dp).
        # All of this fuses into the single copy XLA needs for padding anyway.
        x = jnp.transpose(x_in.astype(jnp.float32), (1, 0, 2))     # (T, B, D)
        x = jnp.pad(x, ((0, 0), (0, Bp - B), (0, Dp - x.shape[-1])))
        x = x.reshape(T * Bp, Dp)

        flat_w = [w for lw in padded_params["lstm"] for w in lw]
        flat_w += list(padded_params["head"])

        kernel = functools.partial(fused_lstm_kernel, num_layers, T, Bp, Hp,
                                   compute_dtype)
        hn_pad, out_pad = pl.pallas_call(
            kernel,
            out_shape=(jax.ShapeDtypeStruct((Np, Hp), jnp.float32),
                       jax.ShapeDtypeStruct((Np, Cp), jnp.float32)),
            in_specs=[_VMEM] * (1 + len(flat_w)),
            out_specs=(_VMEM, _VMEM),
            scratch_shapes=[pltpu.VMEM((T * Bp, 4 * Hp), jnp.float32),   # gates_x
                            pltpu.VMEM((T * Bp, Hp), jnp.float32)],      # h_seq
        )(x, *flat_w)

        # Strip padding; PyTorch hn.view(-1, hidden) is layer-major then batch.
        hn = hn_pad.reshape(num_layers, Bp, Hp)[:, :B, :hidden_size]
        hn = hn.reshape(num_layers * B, hidden_size)
        logits = out_pad.reshape(num_layers, Bp, Cp)[:, :B, :num_classes]
        logits = logits.reshape(num_layers * B, num_classes)
        return hn, logits

    return forward


# ----------------------------------------------------------------------------
# Parameters: PyTorch-style init, then pad into the lane-aligned kernel layout.
# ----------------------------------------------------------------------------
def init_params(key, input_size, hidden_size, num_layers, num_classes):
    params = {"lstm": [], "head": None}
    k_l = hidden_size ** -0.5
    for layer in range(num_layers):
        d_in = input_size if layer == 0 else hidden_size
        key, k1, k2, k3, k4 = jax.random.split(key, 5)
        w_ih = jax.random.uniform(k1, (4 * hidden_size, d_in), jnp.float32, -k_l, k_l)
        w_hh = jax.random.uniform(k2, (4 * hidden_size, hidden_size), jnp.float32,
                                  -k_l, k_l)
        b_ih = jax.random.uniform(k3, (4 * hidden_size,), jnp.float32, -k_l, k_l)
        b_hh = jax.random.uniform(k4, (4 * hidden_size,), jnp.float32, -k_l, k_l)
        params["lstm"].append((w_ih, w_hh, b_ih, b_hh))

    key, k1, k2, k3, k4 = jax.random.split(key, 5)
    k_fc1 = hidden_size ** -0.5
    w1 = jax.random.uniform(k1, (128, hidden_size), jnp.float32, -k_fc1, k_fc1)
    b1 = jax.random.uniform(k2, (128,), jnp.float32, -k_fc1, k_fc1)
    k_fc2 = 128.0 ** -0.5
    w2 = jax.random.uniform(k3, (num_classes, 128), jnp.float32, -k_fc2, k_fc2)
    b2 = jax.random.uniform(k4, (num_classes,), jnp.float32, -k_fc2, k_fc2)
    params["head"] = (w1, b1, w2, b2)
    return params


def _pad_gate_cols(w, H, Hp):
    """(D, 4H) -> (D, 4Hp): gate g placed at columns [g*Hp, g*Hp+H), rest zero."""
    if H == Hp:
        return w
    parts = [jnp.pad(w[:, g * H:(g + 1) * H], ((0, 0), (0, Hp - H)))
             for g in range(4)]
    return jnp.concatenate(parts, axis=1)


def _pad_axis(a, axis, new_size):
    pad = [(0, 0)] * a.ndim
    pad[axis] = (0, new_size - a.shape[axis])
    return jnp.pad(a, pad)


def prepare_params(raw, input_size, hidden_size, num_layers, num_classes):
    """Transpose + pad raw PyTorch-layout weights into the kernel layout.

    Zero padding is numerically exact: padded gate columns give i=f=o=0.5, g=0,
    so padded hidden/cell lanes stay identically zero and never contaminate the
    real lanes; padded weight rows are zero so padded input lanes contribute 0.
    """
    H, Hp = hidden_size, _round_up(hidden_size, LANE)
    Cp = _round_up(num_classes, LANE)
    Dp = _round_up(input_size, LANE)

    lstm = []
    for layer, (w_ih, w_hh, b_ih, b_hh) in enumerate(raw["lstm"]):
        d_in_p = Dp if layer == 0 else Hp
        wih_t = _pad_axis(_pad_gate_cols(w_ih.T, H, Hp), 0, d_in_p)   # (Dinp, 4Hp)
        whh_t = _pad_axis(_pad_gate_cols(w_hh.T, H, Hp), 0, Hp)       # (Hp,  4Hp)
        b = _pad_gate_cols((b_ih + b_hh).reshape(1, 4 * H), H, Hp)    # (1,   4Hp)
        lstm.append((wih_t, whh_t, b))

    w1, b1, w2, b2 = raw["head"]
    F = w1.shape[0]                      # fc1 width (128)
    Fp = _round_up(F, LANE)
    w1_t = _pad_axis(_pad_axis(w1.T, 0, Hp), 1, Fp)                   # (Hp, Fp)
    b1_p = _pad_axis(b1.reshape(1, F), 1, Fp)                         # (1,  Fp)
    w2_t = _pad_axis(_pad_axis(w2.T, 0, Fp), 1, Cp)                   # (Fp, Cp)
    b2_p = _pad_axis(b2.reshape(1, num_classes), 1, Cp)               # (1,  Cp)
    return {"lstm": lstm, "head": (w1_t, b1_p, w2_t, b2_p)}


# ----------------------------------------------------------------------------
if __name__ == "__main__":
    batch, seq = 2, 8
    input_size, hidden_size, num_layers, num_classes = 16, 32, 2, 10

    key = jax.random.PRNGKey(0)
    key, k_x = jax.random.split(key)
    x_in = jax.random.normal(k_x, (batch, seq, input_size), jnp.float32)

    raw_params = init_params(key, input_size, hidden_size, num_layers, num_classes)
    padded_params = prepare_params(raw_params, input_size, hidden_size,
                                   num_layers, num_classes)

    forward = make_forward(input_size, hidden_size, num_layers, num_classes,
                           compute_dtype=COMPUTE_DTYPE)
    hn_flat, logits = forward(x_in, padded_params)
    jax.block_until_ready(hn_flat)
    jax.block_until_ready(logits)

    assert hn_flat.shape == (num_layers * batch, hidden_size)
    assert logits.shape == (num_layers * batch, num_classes)
    assert bool(jnp.all(jnp.isfinite(hn_flat)))
    assert bool(jnp.all(jnp.isfinite(logits)))
    print("KERNEL_OK")
</pallas_src>

<mosaic_0001>
module attributes {stable_mosaic.version = 11 : i64} {
  func.func @fused_lstm_kernel(%arg0: memref<64x128xf32, #tpu.memory_space<vmem>>, %arg1: memref<128x512xf32, #tpu.memory_space<vmem>>, %arg2: memref<128x512xf32, #tpu.memory_space<vmem>>, %arg3: memref<1x512xf32, #tpu.memory_space<vmem>>, %arg4: memref<128x512xf32, #tpu.memory_space<vmem>>, %arg5: memref<128x512xf32, #tpu.memory_space<vmem>>, %arg6: memref<1x512xf32, #tpu.memory_space<vmem>>, %arg7: memref<128x128xf32, #tpu.memory_space<vmem>>, %arg8: memref<1x128xf32, #tpu.memory_space<vmem>>, %arg9: memref<128x128xf32, #tpu.memory_space<vmem>>, %arg10: memref<1x128xf32, #tpu.memory_space<vmem>>, %arg11: memref<16x128xf32, #tpu.memory_space<vmem>>, %arg12: memref<16x128xf32, #tpu.memory_space<vmem>>, %arg13: memref<64x512xf32, #tpu.memory_space<vmem>>, %arg14: memref<64x128xf32, #tpu.memory_space<vmem>>) attributes {dimension_semantics = [], scalar_prefetch = 0 : i64, scratch_operands = 2 : i64, tpu.core_type = #tpu.core_type<tc>} {
    %c0 = arith.constant 0 : index
    %c0_0 = arith.constant 0 : index
    %0 = vector.load %arg1[%c0, %c0_0] : memref<128x512xf32, #tpu.memory_space<vmem>>, vector<128x512xf32>
    %c0_1 = arith.constant 0 : index
    %c0_2 = arith.constant 0 : index
    %1 = vector.load %arg2[%c0_1, %c0_2] : memref<128x512xf32, #tpu.memory_space<vmem>>, vector<128x512xf32>
    %c0_3 = arith.constant 0 : index
    %c0_4 = arith.constant 0 : index
    %2 = vector.load %arg3[%c0_3, %c0_4] : memref<1x512xf32, #tpu.memory_space<vmem>>, vector<1x512xf32>
    %c0_5 = arith.constant 0 : index
    %c0_6 = arith.constant 0 : index
    %3 = vector.load %arg0[%c0_5, %c0_6] : memref<64x128xf32, #tpu.memory_space<vmem>>, vector<64x128xf32>
    %cst = arith.constant dense<0.000000e+00> : vector<64x512xf32>
    %4 = tpu.matmul %3, %0, %cst {dimension_numbers = #tpu.dot_dimension_numbers<[1], [0], [0], [1], [0, 0, 1, 1], [], []>} : vector<64x128xf32>, vector<128x512xf32>, vector<64x512xf32> -> vector<64x512xf32>
    %5 = vector.broadcast %2 : vector<1x512xf32> to vector<64x512xf32>
    %6 = arith.addf %4, %5 : vector<64x512xf32>
    %c0_7 = arith.constant 0 : index
    %c0_8 = arith.constant 0 : index
    %7 = vector.load %arg13[%c0_7, %c0_8] : memref<64x512xf32, #tpu.memory_space<vmem>>, vector<64x512xf32>
    tpu.vector_store %arg13[%c0_7, %c0_8], %6 {strides = array<i32>} : memref<64x512xf32, #tpu.memory_space<vmem>>, vector<64x512xf32>,
    %cst_9 = arith.constant 0.000000e+00 : f32
    %8 = vector.broadcast %cst_9 : f32 to vector<8x128xf32>
    %cst_10 = arith.constant 0.000000e+00 : f32
    %9 = vector.broadcast %cst_10 : f32 to vector<8x128xf32>
    %c0_11 = arith.constant 0 : index
    %c0_12 = arith.constant 0 : index
    %10 = vector.load %arg13[%c0_11, %c0_12] : memref<64x512xf32, #tpu.memory_space<vmem>>, vector<8x512xf32>
    %cst_13 = arith.constant dense<0.000000e+00> : vector<8x512xf32>
    %11 = tpu.matmul %8, %1, %cst_13 {dimension_numbers = #tpu.dot_dimension_numbers<[1], [0], [0], [1], [0, 0, 1, 1], [], []>} : vector<8x128xf32>, vector<128x512xf32>, vector<8x512xf32> -> vector<8x512xf32>
    %12 = arith.addf %10, %11 : vector<8x512xf32>
    %13 = vector.extract_strided_slice %12 {offsets = [0, 0], sizes = [8, 128], strides = [1, 1]} : vector<8x512xf32> to vector<8x128xf32>
    %14 = arith.negf %13 : vector<8x128xf32>
    %15 = math.exp %14 : vector<8x128xf32>
    %cst_14 = arith.constant 1.000000e+00 : f32
    %16 = vector.broadcast %cst_14 : f32 to vector<8x128xf32>
    %17 = arith.addf %16, %15 : vector<8x128xf32>
    %18 = arith.divf %16, %17 : vector<8x128xf32>
    %19 = vector.extract_strided_slice %12 {offsets = [0, 128], sizes = [8, 128], strides = [1, 1]} : vector<8x512xf32> to vector<8x128xf32>
    %20 = arith.negf %19 : vector<8x128xf32>
    %21 = math.exp %20 : vector<8x128xf32>
    %cst_15 = arith.constant 1.000000e+00 : f32
    %22 = vector.broadcast %cst_15 : f32 to vector<8x128xf32>
    %23 = arith.addf %22, %21 : vector<8x128xf32>
    %24 = arith.divf %22, %23 : vector<8x128xf32>
    %25 = vector.extract_strided_slice %12 {offsets = [0, 256], sizes = [8, 128], strides = [1, 1]} : vector<8x512xf32> to vector<8x128xf32>
    %26 = math.tanh %25 : vector<8x128xf32>
    %27 = vector.extract_strided_slice %12 {offsets = [0, 384], sizes = [8, 128], strides = [1, 1]} : vector<8x512xf32> to vector<8x128xf32>
    %28 = arith.negf %27 : vector<8x128xf32>
    %29 = math.exp %28 : vector<8x128xf32>
    %cst_16 = arith.constant 1.000000e+00 : f32
    %30 = vector.broadcast %cst_16 : f32 to vector<8x128xf32>
    %31 = arith.addf %30, %29 : vector<8x128xf32>
    %32 = arith.divf %30, %31 : vector<8x128xf32>
    %33 = arith.mulf %24, %9 : vector<8x128xf32>
    %34 = arith.mulf %18, %26 : vector<8x128xf32>
    %35 = arith.addf %33, %34 : vector<8x128xf32>
    %36 = math.tanh %35 : vector<8x128xf32>
    %37 = arith.mulf %32, %36 : vector<8x128xf32>
    %c0_17 = arith.constant 0 : index
    %c0_18 = arith.constant 0 : index
    %38 = vector.load %arg14[%c0_17, %c0_18] : memref<64x128xf32, #tpu.memory_space<vmem>>, vector<8x128xf32>
    tpu.vector_store %arg14[%c0_17, %c0_18], %37 {strides = array<i32>} : memref<64x128xf32, #tpu.memory_space<vmem>>, vector<8x128xf32>,
    %c8 = arith.constant 8 : index
    %c0_19 = arith.constant 0 : index
    %39 = vector.load %arg13[%c8, %c0_19] : memref<64x512xf32, #tpu.memory_space<vmem>>, vector<8x512xf32>
    %cst_20 = arith.constant dense<0.000000e+00> : vector<8x512xf32>
    %40 = tpu.matmul %37, %1, %cst_20 {dimension_numbers = #tpu.dot_dimension_numbers<[1], [0], [0], [1], [0, 0, 1, 1], [], []>} : vector<8x128xf32>, vector<128x512xf32>, vector<8x512xf32> -> vector<8x512xf32>
    %41 = arith.addf %39, %40 : vector<8x512xf32>
    %42 = vector.extract_strided_slice %41 {offsets = [0, 0], sizes = [8, 128], strides = [1, 1]} : vector<8x512xf32> to vector<8x128xf32>
    %43 = arith.negf %42 : vector<8x128xf32>
    %44 = math.exp %43 : vector<8x128xf32>
    %cst_21 = arith.constant 1.000000e+00 : f32
    %45 = vector.broadcast %cst_21 : f32 to vector<8x128xf32>
    %46 = arith.addf %45, %44 : vector<8x128xf32>
    %47 = arith.divf %45, %46 : vector<8x128xf32>
    %48 = vector.extract_strided_slice %41 {offsets = [0, 128], sizes = [8, 128], strides = [1, 1]} : vector<8x512xf32> to vector<8x128xf32>
    %49 = arith.negf %48 : vector<8x128xf32>
    %50 = math.exp %49 : vector<8x128xf32>
    %cst_22 = arith.constant 1.000000e+00 : f32
    %51 = vector.broadcast %cst_22 : f32 to vector<8x128xf32>
    %52 = arith.addf %51, %50 : vector<8x128xf32>
    %53 = arith.divf %51, %52 : vector<8x128xf32>
    %54 = vector.extract_strided_slice %41 {offsets = [0, 256], sizes = [8, 128], strides = [1, 1]} : vector<8x512xf32> to vector<8x128xf32>
    %55 = math.tanh %54 : vector<8x128xf32>
    %56 = vector.extract_strided_slice %41 {offsets = [0, 384], sizes = [8, 128], strides = [1, 1]} : vector<8x512xf32> to vector<8x128xf32>
    %57 = arith.negf %56 : vector<8x128xf32>
    %58 = math.exp %57 : vector<8x128xf32>
    %cst_23 = arith.constant 1.000000e+00 : f32
    %59 = vector.broadcast %cst_23 : f32 to vector<8x128xf32>
    %60 = arith.addf %59, %58 : vector<8x128xf32>
    %61 = arith.divf %59, %60 : vector<8x128xf32>
    %62 = arith.mulf %53, %35 : vector<8x128xf32>
    %63 = arith.mulf %47, %55 : vector<8x128xf32>
    %64 = arith.addf %62, %63 : vector<8x128xf32>
    %65 = math.tanh %64 : vector<8x128xf32>
    %66 = arith.mulf %61, %65 : vector<8x128xf32>
    %c8_24 = arith.constant 8 : index
    %c0_25 = arith.constant 0 : index
    %67 = vector.load %arg14[%c8_24, %c0_25] : memref<64x128xf32, #tpu.memory_space<vmem>>, vector<8x128xf32>
    tpu.vector_store %arg14[%c8_24, %c0_25], %66 {strides = array<i32>} : memref<64x128xf32, #tpu.memory_space<vmem>>, vector<8x128xf32>,
    %c16 = arith.constant 16 : index
    %c0_26 = arith.constant 0 : index
    %68 = vector.load %arg13[%c16, %c0_26] : memref<64x512xf32, #tpu.memory_space<vmem>>, vector<8x512xf32>
    %cst_27 = arith.constant dense<0.000000e+00> : vector<8x512xf32>
    %69 = tpu.matmul %66, %1, %cst_27 {dimension_numbers = #tpu.dot_dimension_numbers<[1], [0], [0], [1], [0, 0, 1, 1], [], []>} : vector<8x128xf32>, vector<128x512xf32>, vector<8x512xf32> -> vector<8x512xf32>
    %70 = arith.addf %68, %69 : vector<8x512xf32>
    %71 = vector.extract_strided_slice %70 {offsets = [0, 0], sizes = [8, 128], strides = [1, 1]} : vector<8x512xf32> to vector<8x128xf32>
    %72 = arith.negf %71 : vector<8x128xf32>
    %73 = math.exp %72 : vector<8x128xf32>
    %cst_28 = arith.constant 1.000000e+00 : f32
    %74 = vector.broadcast %cst_28 : f32 to vector<8x128xf32>
    %75 = arith.addf %74, %73 : vector<8x128xf32>
    %76 = arith.divf %74, %75 : vector<8x128xf32>
    %77 = vector.extract_strided_slice %70 {offsets = [0, 128], sizes = [8, 128], strides = [1, 1]} : vector<8x512xf32> to vector<8x128xf32>
    %78 = arith.negf %77 : vector<8x128xf32>
    %79 = math.exp %78 : vector<8x128xf32>
    %cst_29 = arith.constant 1.000000e+00 : f32
    %80 = vector.broadcast %cst_29 : f32 to vector<8x128xf32>
    %81 = arith.addf %80, %79 : vector<8x128xf32>
    %82 = arith.divf %80, %81 : vector<8x128xf32>
    %83 = vector.extract_strided_slice %70 {offsets = [0, 256], sizes = [8, 128], strides = [1, 1]} : vector<8x512xf32> to vector<8x128xf32>
    %84 = math.tanh %83 : vector<8x128xf32>
    %85 = vector.extract_strided_slice %70 {offsets = [0, 384], sizes = [8, 128], strides = [1, 1]} : vector<8x512xf32> to vector<8x128xf32>
    %86 = arith.negf %85 : vector<8x128xf32>
    %87 = math.exp %86 : vector<8x128xf32>
    %cst_30 = arith.constant 1.000000e+00 : f32
    %88 = vector.broadcast %cst_30 : f32 to vector<8x128xf32>
    %89 = arith.addf %88, %87 : vector<8x128xf32>
    %90 = arith.divf %88, %89 : vector<8x128xf32>
    %91 = arith.mulf %82, %64 : vector<8x128xf32>
    %92 = arith.mulf %76, %84 : vector<8x128xf32>
    %93 = arith.addf %91, %92 : vector<8x128xf32>
    %94 = math.tanh %93 : vector<8x128xf32>
    %95 = arith.mulf %90, %94 : vector<8x128xf32>
    %c16_31 = arith.constant 16 : index
    %c0_32 = arith.constant 0 : index
    %96 = vector.load %arg14[%c16_31, %c0_32] : memref<64x128xf32, #tpu.memory_space<vmem>>, vector<8x128xf32>
    tpu.vector_store %arg14[%c16_31, %c0_32], %95 {strides = array<i32>} : memref<64x128xf32, #tpu.memory_space<vmem>>, vector<8x128xf32>,
    %c24 = arith.constant 24 : index
    %c0_33 = arith.constant 0 : index
    %97 = vector.load %arg13[%c24, %c0_33] : memref<64x512xf32, #tpu.memory_space<vmem>>, vector<8x512xf32>
    %cst_34 = arith.constant dense<0.000000e+00> : vector<8x512xf32>
    %98 = tpu.matmul %95, %1, %cst_34 {dimension_numbers = #tpu.dot_dimension_numbers<[1], [0], [0], [1], [0, 0, 1, 1], [], []>} : vector<8x128xf32>, vector<128x512xf32>, vector<8x512xf32> -> vector<8x512xf32>
    %99 = arith.addf %97, %98 : vector<8x512xf32>
    %100 = vector.extract_strided_slice %99 {offsets = [0, 0], sizes = [8, 128], strides = [1, 1]} : vector<8x512xf32> to vector<8x128xf32>
    %101 = arith.negf %100 : vector<8x128xf32>
    %102 = math.exp %101 : vector<8x128xf32>
    %cst_35 = arith.constant 1.000000e+00 : f32
    %103 = vector.broadcast %cst_35 : f32 to vector<8x128xf32>
    %104 = arith.addf %103, %102 : vector<8x128xf32>
    %105 = arith.divf %103, %104 : vector<8x128xf32>
    %106 = vector.extract_strided_slice %99 {offsets = [0, 128], sizes = [8, 128], strides = [1, 1]} : vector<8x512xf32> to vector<8x128xf32>
    %107 = arith.negf %106 : vector<8x128xf32>
    %108 = math.exp %107 : vector<8x128xf32>
    %cst_36 = arith.constant 1.000000e+00 : f32
    %109 = vector.broadcast %cst_36 : f32 to vector<8x128xf32>
    %110 = arith.addf %109, %108 : vector<8x128xf32>
    %111 = arith.divf %109, %110 : vector<8x128xf32>
    %112 = vector.extract_strided_slice %99 {offsets = [0, 256], sizes = [8, 128], strides = [1, 1]} : vector<8x512xf32> to vector<8x128xf32>
    %113 = math.tanh %112 : vector<8x128xf32>
    %114 = vector.extract_strided_slice %99 {offsets = [0, 384], sizes = [8, 128], strides = [1, 1]} : vector<8x512xf32> to vector<8x128xf32>
    %115 = arith.negf %114 : vector<8x128xf32>
    %116 = math.exp %115 : vector<8x128xf32>
    %cst_37 = arith.constant 1.000000e+00 : f32
    %117 = vector.broadcast %cst_37 : f32 to vector<8x128xf32>
    %118 = arith.addf %117, %116 : vector<8x128xf32>
    %119 = arith.divf %117, %118 : vector<8x128xf32>
    %120 = arith.mulf %111, %93 : vector<8x128xf32>
    %121 = arith.mulf %105, %113 : vector<8x128xf32>
    %122 = arith.addf %120, %121 : vector<8x128xf32>
    %123 = math.tanh %122 : vector<8x128xf32>
    %124 = arith.mulf %119, %123 : vector<8x128xf32>
    %c24_38 = arith.constant 24 : index
    %c0_39 = arith.constant 0 : index
    %125 = vector.load %arg14[%c24_38, %c0_39] : memref<64x128xf32, #tpu.memory_space<vmem>>, vector<8x128xf32>
    tpu.vector_store %arg14[%c24_38, %c0_39], %124 {strides = array<i32>} : memref<64x128xf32, #tpu.memory_space<vmem>>, vector<8x128xf32>,
    %c32 = arith.constant 32 : index
    %c0_40 = arith.constant 0 : index
    %126 = vector.load %arg13[%c32, %c0_40] : memref<64x512xf32, #tpu.memory_space<vmem>>, vector<8x512xf32>
    %cst_41 = arith.constant dense<0.000000e+00> : vector<8x512xf32>
    %127 = tpu.matmul %124, %1, %cst_41 {dimension_numbers = #tpu.dot_dimension_numbers<[1], [0], [0], [1], [0, 0, 1, 1], [], []>} : vector<8x128xf32>, vector<128x512xf32>, vector<8x512xf32> -> vector<8x512xf32>
    %128 = arith.addf %126, %127 : vector<8x512xf32>
    %129 = vector.extract_strided_slice %128 {offsets = [0, 0], sizes = [8, 128], strides = [1, 1]} : vector<8x512xf32> to vector<8x128xf32>
    %130 = arith.negf %129 : vector<8x128xf32>
    %131 = math.exp %130 : vector<8x128xf32>
    %cst_42 = arith.constant 1.000000e+00 : f32
    %132 = vector.broadcast %cst_42 : f32 to vector<8x128xf32>
    %133 = arith.addf %132, %131 : vector<8x128xf32>
    %134 = arith.divf %132, %133 : vector<8x128xf32>
    %135 = vector.extract_strided_slice %128 {offsets = [0, 128], sizes = [8, 128], strides = [1, 1]} : vector<8x512xf32> to vector<8x128xf32>
    %136 = arith.negf %135 : vector<8x128xf32>
    %137 = math.exp %136 : vector<8x128xf32>
    %cst_43 = arith.constant 1.000000e+00 : f32
    %138 = vector.broadcast %cst_43 : f32 to vector<8x128xf32>
    %139 = arith.addf %138, %137 : vector<8x128xf32>
    %140 = arith.divf %138, %139 : vector<8x128xf32>
    %141 = vector.extract_strided_slice %128 {offsets = [0, 256], sizes = [8, 128], strides = [1, 1]} : vector<8x512xf32> to vector<8x128xf32>
    %142 = math.tanh %141 : vector<8x128xf32>
    %143 = vector.extract_strided_slice %128 {offsets = [0, 384], sizes = [8, 128], strides = [1, 1]} : vector<8x512xf32> to vector<8x128xf32>
    %144 = arith.negf %143 : vector<8x128xf32>
    %145 = math.exp %144 : vector<8x128xf32>
    %cst_44 = arith.constant 1.000000e+00 : f32
    %146 = vector.broadcast %cst_44 : f32 to vector<8x128xf32>
    %147 = arith.addf %146, %145 : vector<8x128xf32>
    %148 = arith.divf %146, %147 : vector<8x128xf32>
    %149 = arith.mulf %140, %122 : vector<8x128xf32>
    %150 = arith.mulf %134, %142 : vector<8x128xf32>
    %151 = arith.addf %149, %150 : vector<8x128xf32>
    %152 = math.tanh %151 : vector<8x128xf32>
    %153 = arith.mulf %148, %152 : vector<8x128xf32>
    %c32_45 = arith.constant 32 : index
    %c0_46 = arith.constant 0 : index
    %154 = vector.load %arg14[%c32_45, %c0_46] : memref<64x128xf32, #tpu.memory_space<vmem>>, vector<8x128xf32>
    tpu.vector_store %arg14[%c32_45, %c0_46], %153 {strides = array<i32>} : memref<64x128xf32, #tpu.memory_space<vmem>>, vector<8x128xf32>,
    %c40 = arith.constant 40 : index
    %c0_47 = arith.constant 0 : index
    %155 = vector.load %arg13[%c40, %c0_47] : memref<64x512xf32, #tpu.memory_space<vmem>>, vector<8x512xf32>
    %cst_48 = arith.constant dense<0.000000e+00> : vector<8x512xf32>
    %156 = tpu.matmul %153, %1, %cst_48 {dimension_numbers = #tpu.dot_dimension_numbers<[1], [0], [0], [1], [0, 0, 1, 1], [], []>} : vector<8x128xf32>, vector<128x512xf32>, vector<8x512xf32> -> vector<8x512xf32>
    %157 = arith.addf %155, %156 : vector<8x512xf32>
    %158 = vector.extract_strided_slice %157 {offsets = [0, 0], sizes = [8, 128], strides = [1, 1]} : vector<8x512xf32> to vector<8x128xf32>
    %159 = arith.negf %158 : vector<8x128xf32>
    %160 = math.exp %159 : vector<8x128xf32>
    %cst_49 = arith.constant 1.000000e+00 : f32
    %161 = vector.broadcast %cst_49 : f32 to vector<8x128xf32>
    %162 = arith.addf %161, %160 : vector<8x128xf32>
    %163 = arith.divf %161, %162 : vector<8x128xf32>
    %164 = vector.extract_strided_slice %157 {offsets = [0, 128], sizes = [8, 128], strides = [1, 1]} : vector<8x512xf32> to vector<8x128xf32>
    %165 = arith.negf %164 : vector<8x128xf32>
    %166 = math.exp %165 : vector<8x128xf32>
    %cst_50 = arith.constant 1.000000e+00 : f32
    %167 = vector.broadcast %cst_50 : f32 to vector<8x128xf32>
    %168 = arith.addf %167, %166 : vector<8x128xf32>
    %169 = arith.divf %167, %168 : vector<8x128xf32>
    %170 = vector.extract_strided_slice %157 {offsets = [0, 256], sizes = [8, 128], strides = [1, 1]} : vector<8x512xf32> to vector<8x128xf32>
    %171 = math.tanh %170 : vector<8x128xf32>
    %172 = vector.extract_strided_slice %157 {offsets = [0, 384], sizes = [8, 128], strides = [1, 1]} : vector<8x512xf32> to vector<8x128xf32>
    %173 = arith.negf %172 : vector<8x128xf32>
    %174 = math.exp %173 : vector<8x128xf32>
    %cst_51 = arith.constant 1.000000e+00 : f32
    %175 = vector.broadcast %cst_51 : f32 to vector<8x128xf32>
    %176 = arith.addf %175, %174 : vector<8x128xf32>
    %177 = arith.divf %175, %176 : vector<8x128xf32>
    %178 = arith.mulf %169, %151 : vector<8x128xf32>
    %179 = arith.mulf %163, %171 : vector<8x128xf32>
    %180 = arith.addf %178, %179 : vector<8x128xf32>
    %181 = math.tanh %180 : vector<8x128xf32>
    %182 = arith.mulf %177, %181 : vector<8x128xf32>
    %c40_52 = arith.constant 40 : index
    %c0_53 = arith.constant 0 : index
    %183 = vector.load %arg14[%c40_52, %c0_53] : memref<64x128xf32, #tpu.memory_space<vmem>>, vector<8x128xf32>
    tpu.vector_store %arg14[%c40_52, %c0_53], %182 {strides = array<i32>} : memref<64x128xf32, #tpu.memory_space<vmem>>, vector<8x128xf32>,
    %c48 = arith.constant 48 : index
    %c0_54 = arith.constant 0 : index
    %184 = vector.load %arg13[%c48, %c0_54] : memref<64x512xf32, #tpu.memory_space<vmem>>, vector<8x512xf32>
    %cst_55 = arith.constant dense<0.000000e+00> : vector<8x512xf32>
    %185 = tpu.matmul %182, %1, %cst_55 {dimension_numbers = #tpu.dot_dimension_numbers<[1], [0], [0], [1], [0, 0, 1, 1], [], []>} : vector<8x128xf32>, vector<128x512xf32>, vector<8x512xf32> -> vector<8x512xf32>
    %186 = arith.addf %184, %185 : vector<8x512xf32>
    %187 = vector.extract_strided_slice %186 {offsets = [0, 0], sizes = [8, 128], strides = [1, 1]} : vector<8x512xf32> to vector<8x128xf32>
    %188 = arith.negf %187 : vector<8x128xf32>
    %189 = math.exp %188 : vector<8x128xf32>
    %cst_56 = arith.constant 1.000000e+00 : f32
    %190 = vector.broadcast %cst_56 : f32 to vector<8x128xf32>
    %191 = arith.addf %190, %189 : vector<8x128xf32>
    %192 = arith.divf %190, %191 : vector<8x128xf32>
    %193 = vector.extract_strided_slice %186 {offsets = [0, 128], sizes = [8, 128], strides = [1, 1]} : vector<8x512xf32> to vector<8x128xf32>
    %194 = arith.negf %193 : vector<8x128xf32>
    %195 = math.exp %194 : vector<8x128xf32>
    %cst_57 = arith.constant 1.000000e+00 : f32
    %196 = vector.broadcast %cst_57 : f32 to vector<8x128xf32>
    %197 = arith.addf %196, %195 : vector<8x128xf32>
    %198 = arith.divf %196, %197 : vector<8x128xf32>
    %199 = vector.extract_strided_slice %186 {offsets = [0, 256], sizes = [8, 128], strides = [1, 1]} : vector<8x512xf32> to vector<8x128xf32>
    %200 = math.tanh %199 : vector<8x128xf32>
    %201 = vector.extract_strided_slice %186 {offsets = [0, 384], sizes = [8, 128], strides = [1, 1]} : vector<8x512xf32> to vector<8x128xf32>
    %202 = arith.negf %201 : vector<8x128xf32>
    %203 = math.exp %202 : vector<8x128xf32>
    %cst_58 = arith.constant 1.000000e+00 : f32
    %204 = vector.broadcast %cst_58 : f32 to vector<8x128xf32>
    %205 = arith.addf %204, %203 : vector<8x128xf32>
    %206 = arith.divf %204, %205 : vector<8x128xf32>
    %207 = arith.mulf %198, %180 : vector<8x128xf32>
    %208 = arith.mulf %192, %200 : vector<8x128xf32>
    %209 = arith.addf %207, %208 : vector<8x128xf32>
    %210 = math.tanh %209 : vector<8x128xf32>
    %211 = arith.mulf %206, %210 : vector<8x128xf32>
    %c48_59 = arith.constant 48 : index
    %c0_60 = arith.constant 0 : index
    %212 = vector.load %arg14[%c48_59, %c0_60] : memref<64x128xf32, #tpu.memory_space<vmem>>, vector<8x128xf32>
    tpu.vector_store %arg14[%c48_59, %c0_60], %211 {strides = array<i32>} : memref<64x128xf32, #tpu.memory_space<vmem>>, vector<8x128xf32>,
    %c56 = arith.constant 56 : index
    %c0_61 = arith.constant 0 : index
    %213 = vector.load %arg13[%c56, %c0_61] : memref<64x512xf32, #tpu.memory_space<vmem>>, vector<8x512xf32>
    %cst_62 = arith.constant dense<0.000000e+00> : vector<8x512xf32>
    %214 = tpu.matmul %211, %1, %cst_62 {dimension_numbers = #tpu.dot_dimension_numbers<[1], [0], [0], [1], [0, 0, 1, 1], [], []>} : vector<8x128xf32>, vector<128x512xf32>, vector<8x512xf32> -> vector<8x512xf32>
    %215 = arith.addf %213, %214 : vector<8x512xf32>
    %216 = vector.extract_strided_slice %215 {offsets = [0, 0], sizes = [8, 128], strides = [1, 1]} : vector<8x512xf32> to vector<8x128xf32>
    %217 = arith.negf %216 : vector<8x128xf32>
    %218 = math.exp %217 : vector<8x128xf32>
    %cst_63 = arith.constant 1.000000e+00 : f32
    %219 = vector.broadcast %cst_63 : f32 to vector<8x128xf32>
    %220 = arith.addf %219, %218 : vector<8x128xf32>
    %221 = arith.divf %219, %220 : vector<8x128xf32>
    %222 = vector.extract_strided_slice %215 {offsets = [0, 128], sizes = [8, 128], strides = [1, 1]} : vector<8x512xf32> to vector<8x128xf32>
    %223 = arith.negf %222 : vector<8x128xf32>
    %224 = math.exp %223 : vector<8x128xf32>
    %cst_64 = arith.constant 1.000000e+00 : f32
    %225 = vector.broadcast %cst_64 : f32 to vector<8x128xf32>
    %226 = arith.addf %225, %224 : vector<8x128xf32>
    %227 = arith.divf %225, %226 : vector<8x128xf32>
    %228 = vector.extract_strided_slice %215 {offsets = [0, 256], sizes = [8, 128], strides = [1, 1]} : vector<8x512xf32> to vector<8x128xf32>
    %229 = math.tanh %228 : vector<8x128xf32>
    %230 = vector.extract_strided_slice %215 {offsets = [0, 384], sizes = [8, 128], strides = [1, 1]} : vector<8x512xf32> to vector<8x128xf32>
    %231 = arith.negf %230 : vector<8x128xf32>
    %232 = math.exp %231 : vector<8x128xf32>
    %cst_65 = arith.constant 1.000000e+00 : f32
    %233 = vector.broadcast %cst_65 : f32 to vector<8x128xf32>
    %234 = arith.addf %233, %232 : vector<8x128xf32>
    %235 = arith.divf %233, %234 : vector<8x128xf32>
    %236 = arith.mulf %227, %209 : vector<8x128xf32>
    %237 = arith.mulf %221, %229 : vector<8x128xf32>
    %238 = arith.addf %236, %237 : vector<8x128xf32>
    %239 = math.tanh %238 : vector<8x128xf32>
    %240 = arith.mulf %235, %239 : vector<8x128xf32>
    %c56_66 = arith.constant 56 : index
    %c0_67 = arith.constant 0 : index
    %241 = vector.load %arg14[%c56_66, %c0_67] : memref<64x128xf32, #tpu.memory_space<vmem>>, vector<8x128xf32>
    tpu.vector_store %arg14[%c56_66, %c0_67], %240 {strides = array<i32>} : memref<64x128xf32, #tpu.memory_space<vmem>>, vector<8x128xf32>,
    %c0_68 = arith.constant 0 : index
    %c0_69 = arith.constant 0 : index
    %242 = vector.load %arg11[%c0_68, %c0_69] : memref<16x128xf32, #tpu.memory_space<vmem>>, vector<8x128xf32>
    tpu.vector_store %arg11[%c0_68, %c0_69], %240 {strides = array<i32>} : memref<16x128xf32, #tpu.memory_space<vmem>>, vector<8x128xf32>,
    %c0_70 = arith.constant 0 : index
    %c0_71 = arith.constant 0 : index
    %243 = vector.load %arg4[%c0_70, %c0_71] : memref<128x512xf32, #tpu.memory_space<vmem>>, vector<128x512xf32>
    %c0_72 = arith.constant 0 : index
    %c0_73 = arith.constant 0 : index
    %244 = vector.load %arg5[%c0_72, %c0_73] : memref<128x512xf32, #tpu.memory_space<vmem>>, vector<128x512xf32>
    %c0_74 = arith.constant 0 : index
    %c0_75 = arith.constant 0 : index
    %245 = vector.load %arg6[%c0_74, %c0_75] : memref<1x512xf32, #tpu.memory_space<vmem>>, vector<1x512xf32>
    %c0_76 = arith.constant 0 : index
    %c0_77 = arith.constant 0 : index
    %246 = vector.load %arg14[%c0_76, %c0_77] : memref<64x128xf32, #tpu.memory_space<vmem>>, vector<64x128xf32>
    %cst_78 = arith.constant dense<0.000000e+00> : vector<64x512xf32>
    %247 = tpu.matmul %246, %243, %cst_78 {dimension_numbers = #tpu.dot_dimension_numbers<[1], [0], [0], [1], [0, 0, 1, 1], [], []>} : vector<64x128xf32>, vector<128x512xf32>, vector<64x512xf32> -> vector<64x512xf32>
    %248 = vector.broadcast %245 : vector<1x512xf32> to vector<64x512xf32>
    %249 = arith.addf %247, %248 : vector<64x512xf32>
    %c0_79 = arith.constant 0 : index
    %c0_80 = arith.constant 0 : index
    %250 = vector.load %arg13[%c0_79, %c0_80] : memref<64x512xf32, #tpu.memory_space<vmem>>, vector<64x512xf32>
    tpu.vector_store %arg13[%c0_79, %c0_80], %249 {strides = array<i32>} : memref<64x512xf32, #tpu.memory_space<vmem>>, vector<64x512xf32>,
    %cst_81 = arith.constant 0.000000e+00 : f32
    %251 = vector.broadcast %cst_81 : f32 to vector<8x128xf32>
    %cst_82 = arith.constant 0.000000e+00 : f32
    %252 = vector.broadcast %cst_82 : f32 to vector<8x128xf32>
    %c0_83 = arith.constant 0 : index
    %c0_84 = arith.constant 0 : index
    %253 = vector.load %arg13[%c0_83, %c0_84] : memref<64x512xf32, #tpu.memory_space<vmem>>, vector<8x512xf32>
    %cst_85 = arith.constant dense<0.000000e+00> : vector<8x512xf32>
    %254 = tpu.matmul %251, %244, %cst_85 {dimension_numbers = #tpu.dot_dimension_numbers<[1], [0], [0], [1], [0, 0, 1, 1], [], []>} : vector<8x128xf32>, vector<128x512xf32>, vector<8x512xf32> -> vector<8x512xf32>
    %255 = arith.addf %253, %254 : vector<8x512xf32>
    %256 = vector.extract_strided_slice %255 {offsets = [0, 0], sizes = [8, 128], strides = [1, 1]} : vector<8x512xf32> to vector<8x128xf32>
    %257 = arith.negf %256 : vector<8x128xf32>
    %258 = math.exp %257 : vector<8x128xf32>
    %cst_86 = arith.constant 1.000000e+00 : f32
    %259 = vector.broadcast %cst_86 : f32 to vector<8x128xf32>
    %260 = arith.addf %259, %258 : vector<8x128xf32>
    %261 = arith.divf %259, %260 : vector<8x128xf32>
    %262 = vector.extract_strided_slice %255 {offsets = [0, 128], sizes = [8, 128], strides = [1, 1]} : vector<8x512xf32> to vector<8x128xf32>
    %263 = arith.negf %262 : vector<8x128xf32>
    %264 = math.exp %263 : vector<8x128xf32>
    %cst_87 = arith.constant 1.000000e+00 : f32
    %265 = vector.broadcast %cst_87 : f32 to vector<8x128xf32>
    %266 = arith.addf %265, %264 : vector<8x128xf32>
    %267 = arith.divf %265, %266 : vector<8x128xf32>
    %268 = vector.extract_strided_slice %255 {offsets = [0, 256], sizes = [8, 128], strides = [1, 1]} : vector<8x512xf32> to vector<8x128xf32>
    %269 = math.tanh %268 : vector<8x128xf32>
    %270 = vector.extract_strided_slice %255 {offsets = [0, 384], sizes = [8, 128], strides = [1, 1]} : vector<8x512xf32> to vector<8x128xf32>
    %271 = arith.negf %270 : vector<8x128xf32>
    %272 = math.exp %271 : vector<8x128xf32>
    %cst_88 = arith.constant 1.000000e+00 : f32
    %273 = vector.broadcast %cst_88 : f32 to vector<8x128xf32>
    %274 = arith.addf %273, %272 : vector<8x128xf32>
    %275 = arith.divf %273, %274 : vector<8x128xf32>
    %276 = arith.mulf %267, %252 : vector<8x128xf32>
    %277 = arith.mulf %261, %269 : vector<8x128xf32>
    %278 = arith.addf %276, %277 : vector<8x128xf32>
    %279 = math.tanh %278 : vector<8x128xf32>
    %280 = arith.mulf %275, %279 : vector<8x128xf32>
    %c0_89 = arith.constant 0 : index
    %c0_90 = arith.constant 0 : index
    %281 = vector.load %arg14[%c0_89, %c0_90] : memref<64x128xf32, #tpu.memory_space<vmem>>, vector<8x128xf32>
    tpu.vector_store %arg14[%c0_89, %c0_90], %280 {strides = array<i32>} : memref<64x128xf32, #tpu.memory_space<vmem>>, vector<8x128xf32>,
    %c8_91 = arith.constant 8 : index
    %c0_92 = arith.constant 0 : index
    %282 = vector.load %arg13[%c8_91, %c0_92] : memref<64x512xf32, #tpu.memory_space<vmem>>, vector<8x512xf32>
    %cst_93 = arith.constant dense<0.000000e+00> : vector<8x512xf32>
    %283 = tpu.matmul %280, %244, %cst_93 {dimension_numbers = #tpu.dot_dimension_numbers<[1], [0], [0], [1], [0, 0, 1, 1], [], []>} : vector<8x128xf32>, vector<128x512xf32>, vector<8x512xf32> -> vector<8x512xf32>
    %284 = arith.addf %282, %283 : vector<8x512xf32>
    %285 = vector.extract_strided_slice %284 {offsets = [0, 0], sizes = [8, 128], strides = [1, 1]} : vector<8x512xf32> to vector<8x128xf32>
    %286 = arith.negf %285 : vector<8x128xf32>
    %287 = math.exp %286 : vector<8x128xf32>
    %cst_94 = arith.constant 1.000000e+00 : f32
    %288 = vector.broadcast %cst_94 : f32 to vector<8x128xf32>
    %289 = arith.addf %288, %287 : vector<8x128xf32>
    %290 = arith.divf %288, %289 : vector<8x128xf32>
    %291 = vector.extract_strided_slice %284 {offsets = [0, 128], sizes = [8, 128], strides = [1, 1]} : vector<8x512xf32> to vector<8x128xf32>
    %292 = arith.negf %291 : vector<8x128xf32>
    %293 = math.exp %292 : vector<8x128xf32>
    %cst_95 = arith.constant 1.000000e+00 : f32
    %294 = vector.broadcast %cst_95 : f32 to vector<8x128xf32>
    %295 = arith.addf %294, %293 : vector<8x128xf32>
    %296 = arith.divf %294, %295 : vector<8x128xf32>
    %297 = vector.extract_strided_slice %284 {offsets = [0, 256], sizes = [8, 128], strides = [1, 1]} : vector<8x512xf32> to vector<8x128xf32>
    %298 = math.tanh %297 : vector<8x128xf32>
    %299 = vector.extract_strided_slice %284 {offsets = [0, 384], sizes = [8, 128], strides = [1, 1]} : vector<8x512xf32> to vector<8x128xf32>
    %300 = arith.negf %299 : vector<8x128xf32>
    %301 = math.exp %300 : vector<8x128xf32>
    %cst_96 = arith.constant 1.000000e+00 : f32
    %302 = vector.broadcast %cst_96 : f32 to vector<8x128xf32>
    %303 = arith.addf %302, %301 : vector<8x128xf32>
    %304 = arith.divf %302, %303 : vector<8x128xf32>
    %305 = arith.mulf %296, %278 : vector<8x128xf32>
    %306 = arith.mulf %290, %298 : vector<8x128xf32>
    %307 = arith.addf %305, %306 : vector<8x128xf32>
    %308 = math.tanh %307 : vector<8x128xf32>
    %309 = arith.mulf %304, %308 : vector<8x128xf32>
    %c8_97 = arith.constant 8 : index
    %c0_98 = arith.constant 0 : index
    %310 = vector.load %arg14[%c8_97, %c0_98] : memref<64x128xf32, #tpu.memory_space<vmem>>, vector<8x128xf32>
    tpu.vector_store %arg14[%c8_97, %c0_98], %309 {strides = array<i32>} : memref<64x128xf32, #tpu.memory_space<vmem>>, vector<8x128xf32>,
    %c16_99 = arith.constant 16 : index
    %c0_100 = arith.constant 0 : index
    %311 = vector.load %arg13[%c16_99, %c0_100] : memref<64x512xf32, #tpu.memory_space<vmem>>, vector<8x512xf32>
    %cst_101 = arith.constant dense<0.000000e+00> : vector<8x512xf32>
    %312 = tpu.matmul %309, %244, %cst_101 {dimension_numbers = #tpu.dot_dimension_numbers<[1], [0], [0], [1], [0, 0, 1, 1], [], []>} : vector<8x128xf32>, vector<128x512xf32>, vector<8x512xf32> -> vector<8x512xf32>
    %313 = arith.addf %311, %312 : vector<8x512xf32>
    %314 = vector.extract_strided_slice %313 {offsets = [0, 0], sizes = [8, 128], strides = [1, 1]} : vector<8x512xf32> to vector<8x128xf32>
    %315 = arith.negf %314 : vector<8x128xf32>
    %316 = math.exp %315 : vector<8x128xf32>
    %cst_102 = arith.constant 1.000000e+00 : f32
    %317 = vector.broadcast %cst_102 : f32 to vector<8x128xf32>
    %318 = arith.addf %317, %316 : vector<8x128xf32>
    %319 = arith.divf %317, %318 : vector<8x128xf32>
    %320 = vector.extract_strided_slice %313 {offsets = [0, 128], sizes = [8, 128], strides = [1, 1]} : vector<8x512xf32> to vector<8x128xf32>
    %321 = arith.negf %320 : vector<8x128xf32>
    %322 = math.exp %321 : vector<8x128xf32>
    %cst_103 = arith.constant 1.000000e+00 : f32
    %323 = vector.broadcast %cst_103 : f32 to vector<8x128xf32>
    %324 = arith.addf %323, %322 : vector<8x128xf32>
    %325 = arith.divf %323, %324 : vector<8x128xf32>
    %326 = vector.extract_strided_slice %313 {offsets = [0, 256], sizes = [8, 128], strides = [1, 1]} : vector<8x512xf32> to vector<8x128xf32>
    %327 = math.tanh %326 : vector<8x128xf32>
    %328 = vector.extract_strided_slice %313 {offsets = [0, 384], sizes = [8, 128], strides = [1, 1]} : vector<8x512xf32> to vector<8x128xf32>
    %329 = arith.negf %328 : vector<8x128xf32>
    %330 = math.exp %329 : vector<8x128xf32>
    %cst_104 = arith.constant 1.000000e+00 : f32
    %331 = vector.broadcast %cst_104 : f32 to vector<8x128xf32>
    %332 = arith.addf %331, %330 : vector<8x128xf32>
    %333 = arith.divf %331, %332 : vector<8x128xf32>
    %334 = arith.mulf %325, %307 : vector<8x128xf32>
    %335 = arith.mulf %319, %327 : vector<8x128xf32>
    %336 = arith.addf %334, %335 : vector<8x128xf32>
    %337 = math.tanh %336 : vector<8x128xf32>
    %338 = arith.mulf %333, %337 : vector<8x128xf32>
    %c16_105 = arith.constant 16 : index
    %c0_106 = arith.constant 0 : index
    %339 = vector.load %arg14[%c16_105, %c0_106] : memref<64x128xf32, #tpu.memory_space<vmem>>, vector<8x128xf32>
    tpu.vector_store %arg14[%c16_105, %c0_106], %338 {strides = array<i32>} : memref<64x128xf32, #tpu.memory_space<vmem>>, vector<8x128xf32>,
    %c24_107 = arith.constant 24 : index
    %c0_108 = arith.constant 0 : index
    %340 = vector.load %arg13[%c24_107, %c0_108] : memref<64x512xf32, #tpu.memory_space<vmem>>, vector<8x512xf32>
    %cst_109 = arith.constant dense<0.000000e+00> : vector<8x512xf32>
    %341 = tpu.matmul %338, %244, %cst_109 {dimension_numbers = #tpu.dot_dimension_numbers<[1], [0], [0], [1], [0, 0, 1, 1], [], []>} : vector<8x128xf32>, vector<128x512xf32>, vector<8x512xf32> -> vector<8x512xf32>
    %342 = arith.addf %340, %341 : vector<8x512xf32>
    %343 = vector.extract_strided_slice %342 {offsets = [0, 0], sizes = [8, 128], strides = [1, 1]} : vector<8x512xf32> to vector<8x128xf32>
    %344 = arith.negf %343 : vector<8x128xf32>
    %345 = math.exp %344 : vector<8x128xf32>
    %cst_110 = arith.constant 1.000000e+00 : f32
    %346 = vector.broadcast %cst_110 : f32 to vector<8x128xf32>
    %347 = arith.addf %346, %345 : vector<8x128xf32>
    %348 = arith.divf %346, %347 : vector<8x128xf32>
    %349 = vector.extract_strided_slice %342 {offsets = [0, 128], sizes = [8, 128], strides = [1, 1]} : vector<8x512xf32> to vector<8x128xf32>
    %350 = arith.negf %349 : vector<8x128xf32>
    %351 = math.exp %350 : vector<8x128xf32>
    %cst_111 = arith.constant 1.000000e+00 : f32
    %352 = vector.broadcast %cst_111 : f32 to vector<8x128xf32>
    %353 = arith.addf %352, %351 : vector<8x128xf32>
    %354 = arith.divf %352, %353 : vector<8x128xf32>
    %355 = vector.extract_strided_slice %342 {offsets = [0, 256], sizes = [8, 128], strides = [1, 1]} : vector<8x512xf32> to vector<8x128xf32>
    %356 = math.tanh %355 : vector<8x128xf32>
    %357 = vector.extract_strided_slice %342 {offsets = [0, 384], sizes = [8, 128], strides = [1, 1]} : vector<8x512xf32> to vector<8x128xf32>
    %358 = arith.negf %357 : vector<8x128xf32>
    %359 = math.exp %358 : vector<8x128xf32>
    %cst_112 = arith.constant 1.000000e+00 : f32
    %360 = vector.broadcast %cst_112 : f32 to vector<8x128xf32>
    %361 = arith.addf %360, %359 : vector<8x128xf32>
    %362 = arith.divf %360, %361 : vector<8x128xf32>
    %363 = arith.mulf %354, %336 : vector<8x128xf32>
    %364 = arith.mulf %348, %356 : vector<8x128xf32>
    %365 = arith.addf %363, %364 : vector<8x128xf32>
    %366 = math.tanh %365 : vector<8x128xf32>
    %367 = arith.mulf %362, %366 : vector<8x128xf32>
    %c24_113 = arith.constant 24 : index
    %c0_114 = arith.constant 0 : index
    %368 = vector.load %arg14[%c24_113, %c0_114] : memref<64x128xf32, #tpu.memory_space<vmem>>, vector<8x128xf32>
    tpu.vector_store %arg14[%c24_113, %c0_114], %367 {strides = array<i32>} : memref<64x128xf32, #tpu.memory_space<vmem>>, vector<8x128xf32>,
    %c32_115 = arith.constant 32 : index
    %c0_116 = arith.constant 0 : index
    %369 = vector.load %arg13[%c32_115, %c0_116] : memref<64x512xf32, #tpu.memory_space<vmem>>, vector<8x512xf32>
    %cst_117 = arith.constant dense<0.000000e+00> : vector<8x512xf32>
    %370 = tpu.matmul %367, %244, %cst_117 {dimension_numbers = #tpu.dot_dimension_numbers<[1], [0], [0], [1], [0, 0, 1, 1], [], []>} : vector<8x128xf32>, vector<128x512xf32>, vector<8x512xf32> -> vector<8x512xf32>
    %371 = arith.addf %369, %370 : vector<8x512xf32>
    %372 = vector.extract_strided_slice %371 {offsets = [0, 0], sizes = [8, 128], strides = [1, 1]} : vector<8x512xf32> to vector<8x128xf32>
    %373 = arith.negf %372 : vector<8x128xf32>
    %374 = math.exp %373 : vector<8x128xf32>
    %cst_118 = arith.constant 1.000000e+00 : f32
    %375 = vector.broadcast %cst_118 : f32 to vector<8x128xf32>
    %376 = arith.addf %375, %374 : vector<8x128xf32>
    %377 = arith.divf %375, %376 : vector<8x128xf32>
    %378 = vector.extract_strided_slice %371 {offsets = [0, 128], sizes = [8, 128], strides = [1, 1]} : vector<8x512xf32> to vector<8x128xf32>
    %379 = arith.negf %378 : vector<8x128xf32>
    %380 = math.exp %379 : vector<8x128xf32>
    %cst_119 = arith.constant 1.000000e+00 : f32
    %381 = vector.broadcast %cst_119 : f32 to vector<8x128xf32>
    %382 = arith.addf %381, %380 : vector<8x128xf32>
    %383 = arith.divf %381, %382 : vector<8x128xf32>
    %384 = vector.extract_strided_slice %371 {offsets = [0, 256], sizes = [8, 128], strides = [1, 1]} : vector<8x512xf32> to vector<8x128xf32>
    %385 = math.tanh %384 : vector<8x128xf32>
    %386 = vector.extract_strided_slice %371 {offsets = [0, 384], sizes = [8, 128], strides = [1, 1]} : vector<8x512xf32> to vector<8x128xf32>
    %387 = arith.negf %386 : vector<8x128xf32>
    %388 = math.exp %387 : vector<8x128xf32>
    %cst_120 = arith.constant 1.000000e+00 : f32
    %389 = vector.broadcast %cst_120 : f32 to vector<8x128xf32>
    %390 = arith.addf %389, %388 : vector<8x128xf32>
    %391 = arith.divf %389, %390 : vector<8x128xf32>
    %392 = arith.mulf %383, %365 : vector<8x128xf32>
    %393 = arith.mulf %377, %385 : vector<8x128xf32>
    %394 = arith.addf %392, %393 : vector<8x128xf32>
    %395 = math.tanh %394 : vector<8x128xf32>
    %396 = arith.mulf %391, %395 : vector<8x128xf32>
    %c32_121 = arith.constant 32 : index
    %c0_122 = arith.constant 0 : index
    %397 = vector.load %arg14[%c32_121, %c0_122] : memref<64x128xf32, #tpu.memory_space<vmem>>, vector<8x128xf32>
    tpu.vector_store %arg14[%c32_121, %c0_122], %396 {strides = array<i32>} : memref<64x128xf32, #tpu.memory_space<vmem>>, vector<8x128xf32>,
    %c40_123 = arith.constant 40 : index
    %c0_124 = arith.constant 0 : index
    %398 = vector.load %arg13[%c40_123, %c0_124] : memref<64x512xf32, #tpu.memory_space<vmem>>, vector<8x512xf32>
    %cst_125 = arith.constant dense<0.000000e+00> : vector<8x512xf32>
    %399 = tpu.matmul %396, %244, %cst_125 {dimension_numbers = #tpu.dot_dimension_numbers<[1], [0], [0], [1], [0, 0, 1, 1], [], []>} : vector<8x128xf32>, vector<128x512xf32>, vector<8x512xf32> -> vector<8x512xf32>
    %400 = arith.addf %398, %399 : vector<8x512xf32>
    %401 = vector.extract_strided_slice %400 {offsets = [0, 0], sizes = [8, 128], strides = [1, 1]} : vector<8x512xf32> to vector<8x128xf32>
    %402 = arith.negf %401 : vector<8x128xf32>
    %403 = math.exp %402 : vector<8x128xf32>
    %cst_126 = arith.constant 1.000000e+00 : f32
    %404 = vector.broadcast %cst_126 : f32 to vector<8x128xf32>
    %405 = arith.addf %404, %403 : vector<8x128xf32>
    %406 = arith.divf %404, %405 : vector<8x128xf32>
    %407 = vector.extract_strided_slice %400 {offsets = [0, 128], sizes = [8, 128], strides = [1, 1]} : vector<8x512xf32> to vector<8x128xf32>
    %408 = arith.negf %407 : vector<8x128xf32>
    %409 = math.exp %408 : vector<8x128xf32>
    %cst_127 = arith.constant 1.000000e+00 : f32
    %410 = vector.broadcast %cst_127 : f32 to vector<8x128xf32>
    %411 = arith.addf %410, %409 : vector<8x128xf32>
    %412 = arith.divf %410, %411 : vector<8x128xf32>
    %413 = vector.extract_strided_slice %400 {offsets = [0, 256], sizes = [8, 128], strides = [1, 1]} : vector<8x512xf32> to vector<8x128xf32>
    %414 = math.tanh %413 : vector<8x128xf32>
    %415 = vector.extract_strided_slice %400 {offsets = [0, 384], sizes = [8, 128], strides = [1, 1]} : vector<8x512xf32> to vector<8x128xf32>
    %416 = arith.negf %415 : vector<8x128xf32>
    %417 = math.exp %416 : vector<8x128xf32>
    %cst_128 = arith.constant 1.000000e+00 : f32
    %418 = vector.broadcast %cst_128 : f32 to vector<8x128xf32>
    %419 = arith.addf %418, %417 : vector<8x128xf32>
    %420 = arith.divf %418, %419 : vector<8x128xf32>
    %421 = arith.mulf %412, %394 : vector<8x128xf32>
    %422 = arith.mulf %406, %414 : vector<8x128xf32>
    %423 = arith.addf %421, %422 : vector<8x128xf32>
    %424 = math.tanh %423 : vector<8x128xf32>
    %425 = arith.mulf %420, %424 : vector<8x128xf32>
    %c40_129 = arith.constant 40 : index
    %c0_130 = arith.constant 0 : index
    %426 = vector.load %arg14[%c40_129, %c0_130] : memref<64x128xf32, #tpu.memory_space<vmem>>, vector<8x128xf32>
    tpu.vector_store %arg14[%c40_129, %c0_130], %425 {strides = array<i32>} : memref<64x128xf32, #tpu.memory_space<vmem>>, vector<8x128xf32>,
    %c48_131 = arith.constant 48 : index
    %c0_132 = arith.constant 0 : index
    %427 = vector.load %arg13[%c48_131, %c0_132] : memref<64x512xf32, #tpu.memory_space<vmem>>, vector<8x512xf32>
    %cst_133 = arith.constant dense<0.000000e+00> : vector<8x512xf32>
    %428 = tpu.matmul %425, %244, %cst_133 {dimension_numbers = #tpu.dot_dimension_numbers<[1], [0], [0], [1], [0, 0, 1, 1], [], []>} : vector<8x128xf32>, vector<128x512xf32>, vector<8x512xf32> -> vector<8x512xf32>
    %429 = arith.addf %427, %428 : vector<8x512xf32>
    %430 = vector.extract_strided_slice %429 {offsets = [0, 0], sizes = [8, 128], strides = [1, 1]} : vector<8x512xf32> to vector<8x128xf32>
    %431 = arith.negf %430 : vector<8x128xf32>
    %432 = math.exp %431 : vector<8x128xf32>
    %cst_134 = arith.constant 1.000000e+00 : f32
    %433 = vector.broadcast %cst_134 : f32 to vector<8x128xf32>
    %434 = arith.addf %433, %432 : vector<8x128xf32>
    %435 = arith.divf %433, %434 : vector<8x128xf32>
    %436 = vector.extract_strided_slice %429 {offsets = [0, 128], sizes = [8, 128], strides = [1, 1]} : vector<8x512xf32> to vector<8x128xf32>
    %437 = arith.negf %436 : vector<8x128xf32>
    %438 = math.exp %437 : vector<8x128xf32>
    %cst_135 = arith.constant 1.000000e+00 : f32
    %439 = vector.broadcast %cst_135 : f32 to vector<8x128xf32>
    %440 = arith.addf %439, %438 : vector<8x128xf32>
    %441 = arith.divf %439, %440 : vector<8x128xf32>
    %442 = vector.extract_strided_slice %429 {offsets = [0, 256], sizes = [8, 128], strides = [1, 1]} : vector<8x512xf32> to vector<8x128xf32>
    %443 = math.tanh %442 : vector<8x128xf32>
    %444 = vector.extract_strided_slice %429 {offsets = [0, 384], sizes = [8, 128], strides = [1, 1]} : vector<8x512xf32> to vector<8x128xf32>
    %445 = arith.negf %444 : vector<8x128xf32>
    %446 = math.exp %445 : vector<8x128xf32>
    %cst_136 = arith.constant 1.000000e+00 : f32
    %447 = vector.broadcast %cst_136 : f32 to vector<8x128xf32>
    %448 = arith.addf %447, %446 : vector<8x128xf32>
    %449 = arith.divf %447, %448 : vector<8x128xf32>
    %450 = arith.mulf %441, %423 : vector<8x128xf32>
    %451 = arith.mulf %435, %443 : vector<8x128xf32>
    %452 = arith.addf %450, %451 : vector<8x128xf32>
    %453 = math.tanh %452 : vector<8x128xf32>
    %454 = arith.mulf %449, %453 : vector<8x128xf32>
    %c48_137 = arith.constant 48 : index
    %c0_138 = arith.constant 0 : index
    %455 = vector.load %arg14[%c48_137, %c0_138] : memref<64x128xf32, #tpu.memory_space<vmem>>, vector<8x128xf32>
    tpu.vector_store %arg14[%c48_137, %c0_138], %454 {strides = array<i32>} : memref<64x128xf32, #tpu.memory_space<vmem>>, vector<8x128xf32>,
    %c56_139 = arith.constant 56 : index
    %c0_140 = arith.constant 0 : index
    %456 = vector.load %arg13[%c56_139, %c0_140] : memref<64x512xf32, #tpu.memory_space<vmem>>, vector<8x512xf32>
    %cst_141 = arith.constant dense<0.000000e+00> : vector<8x512xf32>
    %457 = tpu.matmul %454, %244, %cst_141 {dimension_numbers = #tpu.dot_dimension_numbers<[1], [0], [0], [1], [0, 0, 1, 1], [], []>} : vector<8x128xf32>, vector<128x512xf32>, vector<8x512xf32> -> vector<8x512xf32>
    %458 = arith.addf %456, %457 : vector<8x512xf32>
    %459 = vector.extract_strided_slice %458 {offsets = [0, 0], sizes = [8, 128], strides = [1, 1]} : vector<8x512xf32> to vector<8x128xf32>
    %460 = arith.negf %459 : vector<8x128xf32>
    %461 = math.exp %460 : vector<8x128xf32>
    %cst_142 = arith.constant 1.000000e+00 : f32
    %462 = vector.broadcast %cst_142 : f32 to vector<8x128xf32>
    %463 = arith.addf %462, %461 : vector<8x128xf32>
    %464 = arith.divf %462, %463 : vector<8x128xf32>
    %465 = vector.extract_strided_slice %458 {offsets = [0, 128], sizes = [8, 128], strides = [1, 1]} : vector<8x512xf32> to vector<8x128xf32>
    %466 = arith.negf %465 : vector<8x128xf32>
    %467 = math.exp %466 : vector<8x128xf32>
    %cst_143 = arith.constant 1.000000e+00 : f32
    %468 = vector.broadcast %cst_143 : f32 to vector<8x128xf32>
    %469 = arith.addf %468, %467 : vector<8x128xf32>
    %470 = arith.divf %468, %469 : vector<8x128xf32>
    %471 = vector.extract_strided_slice %458 {offsets = [0, 256], sizes = [8, 128], strides = [1, 1]} : vector<8x512xf32> to vector<8x128xf32>
    %472 = math.tanh %471 : vector<8x128xf32>
    %473 = vector.extract_strided_slice %458 {offsets = [0, 384], sizes = [8, 128], strides = [1, 1]} : vector<8x512xf32> to vector<8x128xf32>
    %474 = arith.negf %473 : vector<8x128xf32>
    %475 = math.exp %474 : vector<8x128xf32>
    %cst_144 = arith.constant 1.000000e+00 : f32
    %476 = vector.broadcast %cst_144 : f32 to vector<8x128xf32>
    %477 = arith.addf %476, %475 : vector<8x128xf32>
    %478 = arith.divf %476, %477 : vector<8x128xf32>
    %479 = arith.mulf %470, %452 : vector<8x128xf32>
    %480 = arith.mulf %464, %472 : vector<8x128xf32>
    %481 = arith.addf %479, %480 : vector<8x128xf32>
    %482 = math.tanh %481 : vector<8x128xf32>
    %483 = arith.mulf %478, %482 : vector<8x128xf32>
    %c56_145 = arith.constant 56 : index
    %c0_146 = arith.constant 0 : index
    %484 = vector.load %arg14[%c56_145, %c0_146] : memref<64x128xf32, #tpu.memory_space<vmem>>, vector<8x128xf32>
    tpu.vector_store %arg14[%c56_145, %c0_146], %483 {strides = array<i32>} : memref<64x128xf32, #tpu.memory_space<vmem>>, vector<8x128xf32>,
    %c8_147 = arith.constant 8 : index
    %c0_148 = arith.constant 0 : index
    %485 = vector.load %arg11[%c8_147, %c0_148] : memref<16x128xf32, #tpu.memory_space<vmem>>, vector<8x128xf32>
    tpu.vector_store %arg11[%c8_147, %c0_148], %483 {strides = array<i32>} : memref<16x128xf32, #tpu.memory_space<vmem>>, vector<8x128xf32>,
    %c0_149 = arith.constant 0 : index
    %c0_150 = arith.constant 0 : index
    %486 = vector.load %arg11[%c0_149, %c0_150] : memref<16x128xf32, #tpu.memory_space<vmem>>, vector<16x128xf32>
    %cst_151 = arith.constant 0.000000e+00 : f32
    %487 = vector.broadcast %cst_151 : f32 to vector<16x128xf32>
    %488 = arith.maximumf %486, %487 : vector<16x128xf32>
    %c0_152 = arith.constant 0 : index
    %c0_153 = arith.constant 0 : index
    %489 = vector.load %arg7[%c0_152, %c0_153] : memref<128x128xf32, #tpu.memory_space<vmem>>, vector<128x128xf32>
    %cst_154 = arith.constant dense<0.000000e+00> : vector<16x128xf32>
    %490 = tpu.matmul %488, %489, %cst_154 {dimension_numbers = #tpu.dot_dimension_numbers<[1], [0], [0], [1], [0, 0, 1, 1], [], []>} : vector<16x128xf32>, vector<128x128xf32>, vector<16x128xf32> -> vector<16x128xf32>
    %c0_155 = arith.constant 0 : index
    %c0_156 = arith.constant 0 : index
    %491 = vector.load %arg8[%c0_155, %c0_156] : memref<1x128xf32, #tpu.memory_space<vmem>>, vector<1x128xf32>
    %492 = vector.broadcast %491 : vector<1x128xf32> to vector<16x128xf32>
    %493 = arith.addf %490, %492 : vector<16x128xf32>
    %cst_157 = arith.constant 0.000000e+00 : f32
    %494 = vector.broadcast %cst_157 : f32 to vector<16x128xf32>
    %495 = arith.maximumf %493, %494 : vector<16x128xf32>
    %c0_158 = arith.constant 0 : index
    %c0_159 = arith.constant 0 : index
    %496 = vector.load %arg9[%c0_158, %c0_159] : memref<128x128xf32, #tpu.memory_space<vmem>>, vector<128x128xf32>
    %cst_160 = arith.constant dense<0.000000e+00> : vector<16x128xf32>
    %497 = tpu.matmul %495, %496, %cst_160 {dimension_numbers = #tpu.dot_dimension_numbers<[1], [0], [0], [1], [0, 0, 1, 1], [], []>} : vector<16x128xf32>, vector<128x128xf32>, vector<16x128xf32> -> vector<16x128xf32>
    %c0_161 = arith.constant 0 : index
    %c0_162 = arith.constant 0 : index
    %498 = vector.load %arg10[%c0_161, %c0_162] : memref<1x128xf32, #tpu.memory_space<vmem>>, vector<1x128xf32>
    %499 = vector.broadcast %498 : vector<1x128xf32> to vector<16x128xf32>
    %500 = arith.addf %497, %499 : vector<16x128xf32>
    %c0_163 = arith.constant 0 : index
    %c0_164 = arith.constant 0 : index
    %501 = vector.load %arg12[%c0_163, %c0_164] : memref<16x128xf32, #tpu.memory_space<vmem>>, vector<16x128xf32>
    tpu.vector_store %arg12[%c0_163, %c0_164], %500 {strides = array<i32>} : memref<16x128xf32, #tpu.memory_space<vmem>>, vector<16x128xf32>,
    return
  }
}

</mosaic_0001>

<llo_original>
// kernel: forward.1
$region0: #{forward.1}
  #allocation0 [shape = 'u32[]', space=smem, size = 0x4, offset = 0x4, fixed_abs, tag = 'smem constant byte address 0x4 - core index']
  #allocation1 [shape = 'u32[144,128]{1,0:T(1,128)}', space=vmem, size = 0x12000, scoped, tag = 'internal scratch']
  #allocation2 [shape = 'f32[64,512]{1,0:T(8,128)}', space=vmem, size = 0x20000, scoped, tag = 'scratch operand']
  #allocation3 [shape = 'f32[64,128]{1,0:T(8,128)}', space=vmem, size = 0x8000, scoped, tag = 'scratch operand']
  %s0 = inlined_call_operand.vmem [shape: f32[64,128], index: 0, kind: input, shape index: {}]
  %s1 = inlined_call_operand.hbm [shape: f32[128,512], index: 1, kind: input, shape index: {}]
  %s2 = inlined_call_operand.hbm [shape: f32[128,512], index: 2, kind: input, shape index: {}]
  %s3 = inlined_call_operand.vmem [shape: f32[1,512], index: 3, kind: input, shape index: {}]
  %s4 = inlined_call_operand.hbm [shape: f32[128,512], index: 4, kind: input, shape index: {}]
  %s5 = inlined_call_operand.hbm [shape: f32[128,512], index: 5, kind: input, shape index: {}]
  %s6 = inlined_call_operand.vmem [shape: f32[1,512], index: 6, kind: input, shape index: {}]
  %s7 = inlined_call_operand.hbm [shape: f32[128,128], index: 7, kind: input, shape index: {}]
  %s8 = inlined_call_operand.vmem [shape: f32[1,128], index: 8, kind: input, shape index: {}]
  %s9 = inlined_call_operand.hbm [shape: f32[128,128], index: 9, kind: input, shape index: {}]
  %s10 = inlined_call_operand.vmem [shape: f32[1,128], index: 10, kind: input, shape index: {}]
  %s11 = inlined_call_operand.vmem [shape: f32[16,128], index: 11, kind: output, shape index: {0}]
  %s12 = inlined_call_operand.vmem [shape: f32[16,128], index: 12, kind: output, shape index: {1}]
  %13 = xla_tuple %s11, %s12
  %s14 = sld [smem:[#allocation0]]
  $region86: #{forward.1} parent=0
    _
  %s16 = ssub.s32 1, %s14
  %s17 = scalar_select 0, %s16, %s14
  $region1: #{forward.1} parent=0
    #allocation4 [shape = 'u8[262144]{0}', space=vmem, size = 0x40000, scoped, tag = 'input window, operand 1, single buffered']
    #allocation5 [shape = 's32[1]{0}', space=sflag, size = 0x4, scoped, tag = 'scoped memory for forward.1']
    #allocation6 [shape = 'u8[262144]{0}', space=vmem, size = 0x40000, scoped, tag = 'input window, operand 2, single buffered']
    #allocation7 [shape = 's32[1]{0}', space=sflag, size = 0x4, scoped, tag = 'scoped memory for forward.1']
    #allocation8 [shape = 'u8[262144]{0}', space=vmem, size = 0x40000, scoped, tag = 'input window, operand 4, single buffered']
    #allocation9 [shape = 'u8[262144]{0}', space=vmem, size = 0x40000, scoped, tag = 'input window, operand 5, single buffered']
    #allocation10 [shape = 's32[1]{0}', space=sflag, size = 0x4, scoped, tag = 'scoped memory for forward.1']
    #allocation11 [shape = 'u8[65536]{0}', space=vmem, size = 0x10000, scoped, tag = 'input window, operand 7, single buffered']
    #allocation12 [shape = 'u8[65536]{0}', space=vmem, size = 0x10000, scoped, tag = 'input window, operand 9, single buffered']
    #allocation13 [shape = 's32[1]{0}', space=sflag, size = 0x4, scoped, tag = 'scoped memory for forward.1']
    %18 = vsyncpa [#allocation5], 0
    %19 = vsyncpa [#allocation7], 0
    %20 = vsyncpa [#allocation10], 0
    %21 = vsyncpa [#allocation13], 0
    // Predicated region
    $region2: #{forward.1} parent=1 // pred_check
      _
    $region3: #{forward.1} parent=1 // pred_check_branch
      %23 = sbr.rel (0) target = $region5
    $region4: #{forward.1} parent=1 // pred_region
      _
    $region5: #{forward.1} parent=1 // pred_fallthru
      _
    // Predicated region
    $region6: #{forward.1} parent=1 // pred_check
      _
    $region7: #{forward.1} parent=1 // pred_check_branch
      %25 = sbr.rel (0) target = $region9
    $region8: #{forward.1} parent=1 // pred_region
      %s27 = ssub.s32 8192, 8192
      %28 = vsyncadd [#allocation5], %s27
      %s29 = sshll.u32 [#allocation4], 4
      %s30 = int_to_ptr.vmem [resolvable:$true] %s29
      %35 = dma.hbm_to_vmem [thread:$0]  %s1, 8192, %s30, [#allocation5], 512, 512, 32
    $region9: #{forward.1} parent=1 // pred_fallthru
      _
    // Predicated region
    $region10: #{forward.1} parent=1 // pred_check
      _
    $region11: #{forward.1} parent=1 // pred_check_branch
      %37 = sbr.rel (0) target = $region13
    $region12: #{forward.1} parent=1 // pred_region
      %s39 = ssub.s32 8192, 8192
      %40 = vsyncadd [#allocation7], %s39
      %s41 = sshll.u32 [#allocation6], 4
      %s42 = int_to_ptr.vmem [resolvable:$true] %s41
      %47 = dma.hbm_to_vmem [thread:$0]  %s2, 8192, %s42, [#allocation7], 512, 512, 32
    $region13: #{forward.1} parent=1 // pred_fallthru
      _
    // Predicated region
    $region14: #{forward.1} parent=1 // pred_check
      _
    $region15: #{forward.1} parent=1 // pred_check_branch
      %49 = sbr.rel (0) target = $region17
    $region16: #{forward.1} parent=1 // pred_region
      _
    $region17: #{forward.1} parent=1 // pred_fallthru
      _
    // Predicated region
    $region18: #{forward.1} parent=1 // pred_check
      _
    $region19: #{forward.1} parent=1 // pred_check_branch
      %51 = sbr.rel (0) target = $region21
    $region20: #{forward.1} parent=1 // pred_region
      %s53 = ssub.s32 8192, 8192
      %54 = vsyncadd [#allocation7], %s53
      %s55 = sshll.u32 [#allocation8], 4
      %s56 = int_to_ptr.vmem [resolvable:$true] %s55
      %61 = dma.hbm_to_vmem [thread:$0]  %s4, 8192, %s56, [#allocation7], 512, 512, 32
    $region21: #{forward.1} parent=1 // pred_fallthru
      _
    // Predicated region
    $region22: #{forward.1} parent=1 // pred_check
      _
    $region23: #{forward.1} parent=1 // pred_check_branch
      %63 = sbr.rel (0) target = $region25
    $region24: #{forward.1} parent=1 // pred_region
      %s65 = ssub.s32 8192, 8192
      %66 = vsyncadd [#allocation10], %s65
      %s67 = sshll.u32 [#allocation9], 4
      %s68 = int_to_ptr.vmem [resolvable:$true] %s67
      %73 = dma.hbm_to_vmem [thread:$0]  %s5, 8192, %s68, [#allocation10], 512, 512, 32
    $region25: #{forward.1} parent=1 // pred_fallthru
      _
    // Predicated region
    $region26: #{forward.1} parent=1 // pred_check
      _
    $region27: #{forward.1} parent=1 // pred_check_branch
      %75 = sbr.rel (0) target = $region29
    $region28: #{forward.1} parent=1 // pred_region
      _
    $region29: #{forward.1} parent=1 // pred_fallthru
      _
    // Predicated region
    $region30: #{forward.1} parent=1 // pred_check
      _
    $region31: #{forward.1} parent=1 // pred_check_branch
      %77 = sbr.rel (0) target = $region33
    $region32: #{forward.1} parent=1 // pred_region
      %s79 = ssub.s32 2048, 2048
      %80 = vsyncadd [#allocation10], %s79
      %s81 = sshll.u32 [#allocation11], 4
      %s82 = int_to_ptr.vmem [resolvable:$true] %s81
      %87 = dma.hbm_to_vmem [thread:$0]  %s7, 2048, %s82, [#allocation10], 128, 128, 8
    $region33: #{forward.1} parent=1 // pred_fallthru
      _
    // Predicated region
    $region34: #{forward.1} parent=1 // pred_check
      _
    $region35: #{forward.1} parent=1 // pred_check_branch
      %89 = sbr.rel (0) target = $region37
    $region36: #{forward.1} parent=1 // pred_region
      _
    $region37: #{forward.1} parent=1 // pred_fallthru
      _
    // Predicated region
    $region38: #{forward.1} parent=1 // pred_check
      _
    $region39: #{forward.1} parent=1 // pred_check_branch
      %91 = sbr.rel (0) target = $region41
    $region40: #{forward.1} parent=1 // pred_region
      %s93 = ssub.s32 2048, 2048
      %94 = vsyncadd [#allocation13], %s93
      %s95 = sshll.u32 [#allocation12], 4
      %s96 = int_to_ptr.vmem [resolvable:$true] %s95
      %101 = dma.hbm_to_vmem [thread:$0]  %s9, 2048, %s96, [#allocation13], 128, 128, 8
    $region41: #{forward.1} parent=1 // pred_fallthru
      _
    // Predicated region
    $region42: #{forward.1} parent=1 // pred_check
      _
    $region43: #{forward.1} parent=1 // pred_check_branch
      %103 = sbr.rel (0) target = $region45
    $region44: #{forward.1} parent=1 // pred_region
      _
    $region45: #{forward.1} parent=1 // pred_fallthru
      _
    // Predicated region
    $region46: #{forward.1} parent=1 // pred_check
      _
    $region47: #{forward.1} parent=1 // pred_check_branch
      %105 = sbr.rel (0) target = $region49
    $region48: #{forward.1} parent=1 // pred_region
      %106 = dma.done [#allocation5], 8192
    $region49: #{forward.1} parent=1 // pred_fallthru
      _
    // Predicated region
    $region50: #{forward.1} parent=1 // pred_check
      _
    $region51: #{forward.1} parent=1 // pred_check_branch
      %108 = sbr.rel (0) target = $region53
    $region52: #{forward.1} parent=1 // pred_region
      %109 = dma.done [#allocation7], 8192
    $region53: #{forward.1} parent=1 // pred_fallthru
      _
    // Predicated region
    $region54: #{forward.1} parent=1 // pred_check
      _
    $region55: #{forward.1} parent=1 // pred_check_branch
      %111 = sbr.rel (0) target = $region57
    $region56: #{forward.1} parent=1 // pred_region
      %112 = dma.done [#allocation7], 8192
    $region57: #{forward.1} parent=1 // pred_fallthru
      _
    // Predicated region
    $region58: #{forward.1} parent=1 // pred_check
      _
    $region59: #{forward.1} parent=1 // pred_check_branch
      %114 = sbr.rel (0) target = $region61
    $region60: #{forward.1} parent=1 // pred_region
      %115 = dma.done [#allocation10], 8192
    $region61: #{forward.1} parent=1 // pred_fallthru
      _
    // Predicated region
    $region62: #{forward.1} parent=1 // pred_check
      _
    $region63: #{forward.1} parent=1 // pred_check_branch
      %117 = sbr.rel (0) target = $region65
    $region64: #{forward.1} parent=1 // pred_region
      %118 = dma.done [#allocation10], 2048
    $region65: #{forward.1} parent=1 // pred_fallthru
      _
    // Predicated region
    $region66: #{forward.1} parent=1 // pred_check
      _
    $region67: #{forward.1} parent=1 // pred_check_branch
      %120 = sbr.rel (0) target = $region69
    $region68: #{forward.1} parent=1 // pred_region
      %121 = dma.done [#allocation13], 2048
    $region69: #{forward.1} parent=1 // pred_fallthru
      _
    %v122 = vld [vmem:[#allocation4] sm:$0xff]
    %v123 = vld [vmem:[#allocation4 + $0x8] sm:$0xff]
    %v124 = vld [vmem:[#allocation4 + $0x10] sm:$0xff]
    %v125 = vld [vmem:[#allocation4 + $0x18] sm:$0xff]
    %v126 = vld [vmem:[#allocation4 + $0x20] sm:$0xff]
    %v127 = vld [vmem:[#allocation4 + $0x28] sm:$0xff]
    %v128 = vld [vmem:[#allocation4 + $0x30] sm:$0xff]
    %v129 = vld [vmem:[#allocation4 + $0x38] sm:$0xff]
    %v130 = vld [vmem:[#allocation4 + $0x40] sm:$0xff]
    %v131 = vld [vmem:[#allocation4 + $0x48] sm:$0xff]
    %v132 = vld [vmem:[#allocation4 + $0x50] sm:$0xff]
    %v133 = vld [vmem:[#allocation4 + $0x58] sm:$0xff]
    %v134 = vld [vmem:[#allocation4 + $0x60] sm:$0xff]
    %v135 = vld [vmem:[#allocation4 + $0x68] sm:$0xff]
    %v136 = vld [vmem:[#allocation4 + $0x70] sm:$0xff]
    %v137 = vld [vmem:[#allocation4 + $0x78] sm:$0xff]
    %v138 = vld [vmem:[#allocation4 + $0x80] sm:$0xff]
    %v139 = vld [vmem:[#allocation4 + $0x88] sm:$0xff]
    %v140 = vld [vmem:[#allocation4 + $0x90] sm:$0xff]
    %v141 = vld [vmem:[#allocation4 + $0x98] sm:$0xff]
    %v142 = vld [vmem:[#allocation4 + $0xa0] sm:$0xff]
    %v143 = vld [vmem:[#allocation4 + $0xa8] sm:$0xff]
    %v144 = vld [vmem:[#allocation4 + $0xb0] sm:$0xff]
    %v145 = vld [vmem:[#allocation4 + $0xb8] sm:$0xff]
    %v146 = vld [vmem:[#allocation4 + $0xc0] sm:$0xff]
    %v147 = vld [vmem:[#allocation4 + $0xc8] sm:$0xff]
    %v148 = vld [vmem:[#allocation4 + $0xd0] sm:$0xff]
    %v149 = vld [vmem:[#allocation4 + $0xd8] sm:$0xff]
    %v150 = vld [vmem:[#allocation4 + $0xe0] sm:$0xff]
    %v151 = vld [vmem:[#allocation4 + $0xe8] sm:$0xff]
    %v152 = vld [vmem:[#allocation4 + $0xf0] sm:$0xff]
    %v153 = vld [vmem:[#allocation4 + $0xf8] sm:$0xff]
    %v154 = vld [vmem:[#allocation4 + $0x100] sm:$0xff]
    %v155 = vld [vmem:[#allocation4 + $0x108] sm:$0xff]
    %v156 = vld [vmem:[#allocation4 + $0x110] sm:$0xff]
    %v157 = vld [vmem:[#allocation4 + $0x118] sm:$0xff]
    %v158 = vld [vmem:[#allocation4 + $0x120] sm:$0xff]
    %v159 = vld [vmem:[#allocation4 + $0x128] sm:$0xff]
    %v160 = vld [vmem:[#allocation4 + $0x130] sm:$0xff]
    %v161 = vld [vmem:[#allocation4 + $0x138] sm:$0xff]
    %v162 = vld [vmem:[#allocation4 + $0x140] sm:$0xff]
    %v163 = vld [vmem:[#allocation4 + $0x148] sm:$0xff]
    %v164 = vld [vmem:[#allocation4 + $0x150] sm:$0xff]
    %v165 = vld [vmem:[#allocation4 + $0x158] sm:$0xff]
    %v166 = vld [vmem:[#allocation4 + $0x160] sm:$0xff]
    %v167 = vld [vmem:[#allocation4 + $0x168] sm:$0xff]
    %v168 = vld [vmem:[#allocation4 + $0x170] sm:$0xff]
    %v169 = vld [vmem:[#allocation4 + $0x178] sm:$0xff]
    %v170 = vld [vmem:[#allocation4 + $0x180] sm:$0xff]
    %v171 = vld [vmem:[#allocation4 + $0x188] sm:$0xff]
    %v172 = vld [vmem:[#allocation4 + $0x190] sm:$0xff]
    %v173 = vld [vmem:[#allocation4 + $0x198] sm:$0xff]
    %v174 = vld [vmem:[#allocation4 + $0x1a0] sm:$0xff]
    %v175 = vld [vmem:[#allocation4 + $0x1a8] sm:$0xff]
    %v176 = vld [vmem:[#allocation4 + $0x1b0] sm:$0xff]
    %v177 = vld [vmem:[#allocation4 + $0x1b8] sm:$0xff]
    %v178 = vld [vmem:[#allocation4 + $0x1c0] sm:$0xff]
    %v179 = vld [vmem:[#allocation4 + $0x1c8] sm:$0xff]
    %v180 = vld [vmem:[#allocation4 + $0x1d0] sm:$0xff]
    %v181 = vld [vmem:[#allocation4 + $0x1d8] sm:$0xff]
    %v182 = vld [vmem:[#allocation4 + $0x1e0] sm:$0xff]
    %v183 = vld [vmem:[#allocation4 + $0x1e8] sm:$0xff]
    %v184 = vld [vmem:[#allocation4 + $0x1f0] sm:$0xff]
    %v185 = vld [vmem:[#allocation4 + $0x1f8] sm:$0xff]
    %v186 = vld [vmem:[#allocation6] sm:$0xff]
    %v187 = vld [vmem:[#allocation6 + $0x8] sm:$0xff]
    %v188 = vld [vmem:[#allocation6 + $0x10] sm:$0xff]
    %v189 = vld [vmem:[#allocation6 + $0x18] sm:$0xff]
    %v190 = vld [vmem:[#allocation6 + $0x20] sm:$0xff]
    %v191 = vld [vmem:[#allocation6 + $0x28] sm:$0xff]
    %v192 = vld [vmem:[#allocation6 + $0x30] sm:$0xff]
    %v193 = vld [vmem:[#allocation6 + $0x38] sm:$0xff]
    %v194 = vld [vmem:[#allocation6 + $0x40] sm:$0xff]
    %v195 = vld [vmem:[#allocation6 + $0x48] sm:$0xff]
    %v196 = vld [vmem:[#allocation6 + $0x50] sm:$0xff]
    %v197 = vld [vmem:[#allocation6 + $0x58] sm:$0xff]
    %v198 = vld [vmem:[#allocation6 + $0x60] sm:$0xff]
    %v199 = vld [vmem:[#allocation6 + $0x68] sm:$0xff]
    %v200 = vld [vmem:[#allocation6 + $0x70] sm:$0xff]
    %v201 = vld [vmem:[#allocation6 + $0x78] sm:$0xff]
    %v202 = vld [vmem:[#allocation6 + $0x80] sm:$0xff]
    %v203 = vld [vmem:[#allocation6 + $0x88] sm:$0xff]
    %v204 = vld [vmem:[#allocation6 + $0x90] sm:$0xff]
    %v205 = vld [vmem:[#allocation6 + $0x98] sm:$0xff]
    %v206 = vld [vmem:[#allocation6 + $0xa0] sm:$0xff]
    %v207 = vld [vmem:[#allocation6 + $0xa8] sm:$0xff]
    %v208 = vld [vmem:[#allocation6 + $0xb0] sm:$0xff]
    %v209 = vld [vmem:[#allocation6 + $0xb8] sm:$0xff]
    %v210 = vld [vmem:[#allocation6 + $0xc0] sm:$0xff]
    %v211 = vld [vmem:[#allocation6 + $0xc8] sm:$0xff]
    %v212 = vld [vmem:[#allocation6 + $0xd0] sm:$0xff]
    %v213 = vld [vmem:[#allocation6 + $0xd8] sm:$0xff]
    %v214 = vld [vmem:[#allocation6 + $0xe0] sm:$0xff]
    %v215 = vld [vmem:[#allocation6 + $0xe8] sm:$0xff]
    %v216 = vld [vmem:[#allocation6 + $0xf0] sm:$0xff]
    %v217 = vld [vmem:[#allocation6 + $0xf8] sm:$0xff]
    %v218 = vld [vmem:[#allocation6 + $0x100] sm:$0xff]
    %v219 = vld [vmem:[#allocation6 + $0x108] sm:$0xff]
    %v220 = vld [vmem:[#allocation6 + $0x110] sm:$0xff]
    %v221 = vld [vmem:[#allocation6 + $0x118] sm:$0xff]
    %v222 = vld [vmem:[#allocation6 + $0x120] sm:$0xff]
    %v223 = vld [vmem:[#allocation6 + $0x128] sm:$0xff]
    %v224 = vld [vmem:[#allocation6 + $0x130] sm:$0xff]
    %v225 = vld [vmem:[#allocation6 + $0x138] sm:$0xff]
    %v226 = vld [vmem:[#allocation6 + $0x140] sm:$0xff]
    %v227 = vld [vmem:[#allocation6 + $0x148] sm:$0xff]
    %v228 = vld [vmem:[#allocation6 + $0x150] sm:$0xff]
    %v229 = vld [vmem:[#allocation6 + $0x158] sm:$0xff]
    %v230 = vld [vmem:[#allocation6 + $0x160] sm:$0xff]
    %v231 = vld [vmem:[#allocation6 + $0x168] sm:$0xff]
    %v232 = vld [vmem:[#allocation6 + $0x170] sm:$0xff]
    %v233 = vld [vmem:[#allocation6 + $0x178] sm:$0xff]
    %v234 = vld [vmem:[#allocation6 + $0x180] sm:$0xff]
    %v235 = vld [vmem:[#allocation6 + $0x188] sm:$0xff]
    %v236 = vld [vmem:[#allocation6 + $0x190] sm:$0xff]
    %v237 = vld [vmem:[#allocation6 + $0x198] sm:$0xff]
    %v238 = vld [vmem:[#allocation6 + $0x1a0] sm:$0xff]
    %v239 = vld [vmem:[#allocation6 + $0x1a8] sm:$0xff]
    %v240 = vld [vmem:[#allocation6 + $0x1b0] sm:$0xff]
    %v241 = vld [vmem:[#allocation6 + $0x1b8] sm:$0xff]
    %v242 = vld [vmem:[#allocation6 + $0x1c0] sm:$0xff]
    %v243 = vld [vmem:[#allocation6 + $0x1c8] sm:$0xff]
    %v244 = vld [vmem:[#allocation6 + $0x1d0] sm:$0xff]
    %v245 = vld [vmem:[#allocation6 + $0x1d8] sm:$0xff]
    %v246 = vld [vmem:[#allocation6 + $0x1e0] sm:$0xff]
    %v247 = vld [vmem:[#allocation6 + $0x1e8] sm:$0xff]
    %v248 = vld [vmem:[#allocation6 + $0x1f0] sm:$0xff]
    %v249 = vld [vmem:[#allocation6 + $0x1f8] sm:$0xff]
    %v250 = vld [vmem:[%s3] sm:$0xf]
    %v251 = vld [vmem:[%s0] sm:$0xff]
    %v252 = vld [vmem:[%s0 + $0x8] sm:$0xff]
    %v253 = vld [vmem:[%s0 + $0x10] sm:$0xff]
    %v254 = vld [vmem:[%s0 + $0x18] sm:$0xff]
    %v255 = vld [vmem:[%s0 + $0x20] sm:$0xff]
    %v256 = vld [vmem:[%s0 + $0x28] sm:$0xff]
    %v257 = vld [vmem:[%s0 + $0x30] sm:$0xff]
    %v258 = vld [vmem:[%s0 + $0x38] sm:$0xff]
    %v260 = vlaneseq
    %v261 = vshrl.u32 %v260, 7
    %v262 = vsub.s32 0, %v261
    %v263 = vrot.slane %v250, %v262
    %v264 = vlaneseq
    %v265 = vshrl.u32 %v264, 7
    %v266 = vsub.s32 1, %v265
    %v267 = vrot.slane %v250, %v266
    %v268 = vlaneseq
    %v269 = vshrl.u32 %v268, 7
    %v270 = vsub.s32 2, %v269
    %v271 = vrot.slane %v250, %v270
    %v272 = vlaneseq
    %v273 = vshrl.u32 %v272, 7
    %v274 = vsub.s32 3, %v273
    %v275 = vrot.slane %v250, %v274
    %280 = vmatprep.subr.mxu0 %v123
    %281 = vmatpush1.msra.mxu0 %v122
    %282 = vmatprep.subr.mxu0 %v127
    %283 = vmatpush1.msra.mxu0 %v126
    %284 = vmatprep.subr.mxu0 %v131
    %285 = vmatpush1.msra.mxu0 %v130
    %286 = vmatprep.subr.mxu0 %v135
    %287 = vmatpush1.msra.mxu0 %v134
    %288 = vmatprep.subr.mxu0 %v139
    %289 = vmatpush1.msra.mxu0 %v138
    %290 = vmatprep.subr.mxu0 %v143
    %291 = vmatpush1.msra.mxu0 %v142
    %292 = vmatprep.subr.mxu0 %v147
    %293 = vmatpush1.msra.mxu0 %v146
    %294 = vmatprep.subr.mxu0 %v151
    %295 = vmatpush1.msra.mxu0 %v150
    %296 = vmatprep.subr.mxu0 %v155
    %297 = vmatpush1.msra.mxu0 %v154
    %298 = vmatprep.subr.mxu0 %v159
    %299 = vmatpush1.msra.mxu0 %v158
    %300 = vmatprep.subr.mxu0 %v163
    %301 = vmatpush1.msra.mxu0 %v162
    %302 = vmatprep.subr.mxu0 %v167
    %303 = vmatpush1.msra.mxu0 %v166
    %304 = vmatprep.subr.mxu0 %v171
    %305 = vmatpush1.msra.mxu0 %v170
    %306 = vmatprep.subr.mxu0 %v175
    %307 = vmatpush1.msra.mxu0 %v174
    %308 = vmatprep.subr.mxu0 %v179
    %309 = vmatpush1.msra.mxu0 %v178
    %310 = vmatprep.subr.mxu0 %v183
    %311 = vmatpush1.msra.mxu0 %v182
    %312 = vmatprep.subr.mxu0 0.0
    %313 = vmatpush1.msra.mxu0 0.0
    %314 = vmatprep.subr.mxu0 0.0
    %315 = vmatpush1.msra.mxu0 0.0
    %316 = vmatprep.subr.mxu0 0.0
    %317 = vmatpush1.msra.mxu0 0.0
    %318 = vmatprep.subr.mxu0 0.0
    %319 = vmatpush1.msra.mxu0 0.0
    %320 = vmatprep.subr.mxu0 0.0
    %321 = vmatpush1.msra.mxu0 0.0
    %322 = vmatprep.subr.mxu0 0.0
    %323 = vmatpush1.msra.mxu0 0.0
    %324 = vmatprep.subr.mxu0 0.0
    %325 = vmatpush1.msra.mxu0 0.0
    %326 = vmatprep.subr.mxu0 0.0
    %327 = vmatpush1.msra.mxu0 0.0
    %328 = vmatprep.subr.mxu0 0.0
    %329 = vmatpush1.msra.mxu0 0.0
    %330 = vmatprep.subr.mxu0 0.0
    %331 = vmatpush1.msra.mxu0 0.0
    %332 = vmatprep.subr.mxu0 0.0
    %333 = vmatpush1.msra.mxu0 0.0
    %334 = vmatprep.subr.mxu0 0.0
    %335 = vmatpush1.msra.mxu0 0.0
    %336 = vmatprep.subr.mxu0 0.0
    %337 = vmatpush1.msra.mxu0 0.0
    %338 = vmatprep.subr.mxu0 0.0
    %339 = vmatpush1.msra.mxu0 0.0
    %340 = vmatprep.subr.mxu0 0.0
    %341 = vmatpush1.msra.mxu0 0.0
    %342 = vmatprep.subr.mxu0 0.0
    %343 = vmatpush1.msra.mxu0 0.0
    %344 = vmatprep.mubr.f32.mxu0 0.0
    %345 = vmatmul.mubr.f32.gmra.mrb[0].mxu0 %v251
    %v346 = vpop.f32.mrb[0].mxu0
    %v347 = vadd.f32 %v263, %v346
    %v348 = vpop.f32.mrb[0].mxu0
    %v349 = vadd.f32 %v267, %v348
    %350 = vmatprep.mubr.f32.mxu0 0.0
    %351 = vmatmul.mubr.f32.gmra.mrb[0].mxu0 %v252
    %v352 = vpop.f32.mrb[0].mxu0
    %v353 = vadd.f32 %v263, %v352
    %v354 = vpop.f32.mrb[0].mxu0
    %v355 = vadd.f32 %v267, %v354
    %356 = vmatprep.mubr.f32.mxu0 0.0
    %357 = vmatmul.mubr.f32.gmra.mrb[0].mxu0 %v253
    %v358 = vpop.f32.mrb[0].mxu0
    %v359 = vadd.f32 %v263, %v358
    %v360 = vpop.f32.mrb[0].mxu0
    %v361 = vadd.f32 %v267, %v360
    %362 = vmatprep.mubr.f32.mxu0 0.0
    %363 = vmatmul.mubr.f32.gmra.mrb[0].mxu0 %v254
    %v364 = vpop.f32.mrb[0].mxu0
    %v365 = vadd.f32 %v263, %v364
    %v366 = vpop.f32.mrb[0].mxu0
    %v367 = vadd.f32 %v267, %v366
    %368 = vmatprep.mubr.f32.mxu0 0.0
    %369 = vmatmul.mubr.f32.gmra.mrb[0].mxu0 %v255
    %v370 = vpop.f32.mrb[0].mxu0
    %v371 = vadd.f32 %v263, %v370
    %v372 = vpop.f32.mrb[0].mxu0
    %v373 = vadd.f32 %v267, %v372
    %374 = vmatprep.mubr.f32.mxu0 0.0
    %375 = vmatmul.mubr.f32.gmra.mrb[0].mxu0 %v256
    %v376 = vpop.f32.mrb[0].mxu0
    %v377 = vadd.f32 %v263, %v376
    %v378 = vpop.f32.mrb[0].mxu0
    %v379 = vadd.f32 %v267, %v378
    %380 = vmatprep.mubr.f32.mxu0 0.0
    %381 = vmatmul.mubr.f32.gmra.mrb[0].mxu0 %v257
    %v382 = vpop.f32.mrb[0].mxu0
    %v383 = vadd.f32 %v263, %v382
    %v384 = vpop.f32.mrb[0].mxu0
    %v385 = vadd.f32 %v267, %v384
    %386 = vmatprep.mubr.f32.mxu0 0.0
    %387 = vmatmul.mubr.f32.gmra.mrb[0].mxu0 %v258
    %v388 = vpop.f32.mrb[0].mxu0
    %v389 = vadd.f32 %v263, %v388
    %v390 = vpop.f32.mrb[0].mxu0
    %v391 = vadd.f32 %v267, %v390
    %392 = vdwg.mxu0
    %393 = vmatprep.subr.mxu0 %v125
    %394 = vmatpush1.msra.mxu0 %v124
    %395 = vmatprep.subr.mxu0 %v129
    %396 = vmatpush1.msra.mxu0 %v128
    %397 = vmatprep.subr.mxu0 %v133
    %398 = vmatpush1.msra.mxu0 %v132
    %399 = vmatprep.subr.mxu0 %v137
    %400 = vmatpush1.msra.mxu0 %v136
    %401 = vmatprep.subr.mxu0 %v141
    %402 = vmatpush1.msra.mxu0 %v140
    %403 = vmatprep.subr.mxu0 %v145
    %404 = vmatpush1.msra.mxu0 %v144
    %405 = vmatprep.subr.mxu0 %v149
    %406 = vmatpush1.msra.mxu0 %v148
    %407 = vmatprep.subr.mxu0 %v153
    %408 = vmatpush1.msra.mxu0 %v152
    %409 = vmatprep.subr.mxu0 %v157
    %410 = vmatpush1.msra.mxu0 %v156
    %411 = vmatprep.subr.mxu0 %v161
    %412 = vmatpush1.msra.mxu0 %v160
    %413 = vmatprep.subr.mxu0 %v165
    %414 = vmatpush1.msra.mxu0 %v164
    %415 = vmatprep.subr.mxu0 %v169
    %416 = vmatpush1.msra.mxu0 %v168
    %417 = vmatprep.subr.mxu0 %v173
    %418 = vmatpush1.msra.mxu0 %v172
    %419 = vmatprep.subr.mxu0 %v177
    %420 = vmatpush1.msra.mxu0 %v176
    %421 = vmatprep.subr.mxu0 %v181
    %422 = vmatpush1.msra.mxu0 %v180
    %423 = vmatprep.subr.mxu0 %v185
    %424 = vmatpush1.msra.mxu0 %v184
    %425 = vmatprep.subr.mxu0 0.0
    %426 = vmatpush1.msra.mxu0 0.0
    %427 = vmatprep.subr.mxu0 0.0
    %428 = vmatpush1.msra.mxu0 0.0
    %429 = vmatprep.subr.mxu0 0.0
    %430 = vmatpush1.msra.mxu0 0.0
    %431 = vmatprep.subr.mxu0 0.0
    %432 = vmatpush1.msra.mxu0 0.0
    %433 = vmatprep.subr.mxu0 0.0
    %434 = vmatpush1.msra.mxu0 0.0
    %435 = vmatprep.subr.mxu0 0.0
    %436 = vmatpush1.msra.mxu0 0.0
    %437 = vmatprep.subr.mxu0 0.0
    %438 = vmatpush1.msra.mxu0 0.0
    %439 = vmatprep.subr.mxu0 0.0
    %440 = vmatpush1.msra.mxu0 0.0
    %441 = vmatprep.subr.mxu0 0.0
    %442 = vmatpush1.msra.mxu0 0.0
    %443 = vmatprep.subr.mxu0 0.0
    %444 = vmatpush1.msra.mxu0 0.0
    %445 = vmatprep.subr.mxu0 0.0
    %446 = vmatpush1.msra.mxu0 0.0
    %447 = vmatprep.subr.mxu0 0.0
    %448 = vmatpush1.msra.mxu0 0.0
    %449 = vmatprep.subr.mxu0 0.0
    %450 = vmatpush1.msra.mxu0 0.0
    %451 = vmatprep.subr.mxu0 0.0
    %452 = vmatpush1.msra.mxu0 0.0
    %453 = vmatprep.subr.mxu0 0.0
    %454 = vmatpush1.msra.mxu0 0.0
    %455 = vmatprep.subr.mxu0 0.0
    %456 = vmatpush1.msra.mxu0 0.0
    %457 = vmatprep.mubr.f32.mxu0 0.0
    %458 = vmatmul.mubr.f32.gmra.mrb[0].mxu0 %v251
    %v459 = vpop.f32.mrb[0].mxu0
    %v460 = vadd.f32 %v271, %v459
    %v461 = vpop.f32.mrb[0].mxu0
    %v462 = vadd.f32 %v275, %v461
    %463 = vmatprep.mubr.f32.mxu0 0.0
    %464 = vmatmul.mubr.f32.gmra.mrb[0].mxu0 %v252
    %v465 = vpop.f32.mrb[0].mxu0
    %v466 = vadd.f32 %v271, %v465
    %v467 = vpop.f32.mrb[0].mxu0
    %v468 = vadd.f32 %v275, %v467
    %469 = vmatprep.mubr.f32.mxu0 0.0
    %470 = vmatmul.mubr.f32.gmra.mrb[0].mxu0 %v253
    %v471 = vpop.f32.mrb[0].mxu0
    %v472 = vadd.f32 %v271, %v471
    %v473 = vpop.f32.mrb[0].mxu0
    %v474 = vadd.f32 %v275, %v473
    %475 = vmatprep.mubr.f32.mxu0 0.0
    %476 = vmatmul.mubr.f32.gmra.mrb[0].mxu0 %v254
    %v477 = vpop.f32.mrb[0].mxu0
    %v478 = vadd.f32 %v271, %v477
    %v479 = vpop.f32.mrb[0].mxu0
    %v480 = vadd.f32 %v275, %v479
    %481 = vmatprep.mubr.f32.mxu0 0.0
    %482 = vmatmul.mubr.f32.gmra.mrb[0].mxu0 %v255
    %v483 = vpop.f32.mrb[0].mxu0
    %v484 = vadd.f32 %v271, %v483
    %v485 = vpop.f32.mrb[0].mxu0
    %v486 = vadd.f32 %v275, %v485
    %487 = vmatprep.mubr.f32.mxu0 0.0
    %488 = vmatmul.mubr.f32.gmra.mrb[0].mxu0 %v256
    %v489 = vpop.f32.mrb[0].mxu0
    %v490 = vadd.f32 %v271, %v489
    %v491 = vpop.f32.mrb[0].mxu0
    %v492 = vadd.f32 %v275, %v491
    %493 = vmatprep.mubr.f32.mxu0 0.0
    %494 = vmatmul.mubr.f32.gmra.mrb[0].mxu0 %v257
    %v495 = vpop.f32.mrb[0].mxu0
    %v496 = vadd.f32 %v271, %v495
    %v497 = vpop.f32.mrb[0].mxu0
    %v498 = vadd.f32 %v275, %v497
    %499 = vmatprep.mubr.f32.mxu0 0.0
    %500 = vmatmul.mubr.f32.gmra.mrb[0].mxu0 %v258
    %v501 = vpop.f32.mrb[0].mxu0
    %v502 = vadd.f32 %v271, %v501
    %v503 = vpop.f32.mrb[0].mxu0
    %v504 = vadd.f32 %v275, %v503
    %505 = vdwg.mxu0
    %506 = vst [vmem:[#allocation2] sm:$0xff] %v347
    %507 = vst [vmem:[#allocation2 + $0x8] sm:$0xff] %v349
    %508 = vst [vmem:[#allocation2 + $0x10] sm:$0xff] %v460
    %509 = vst [vmem:[#allocation2 + $0x18] sm:$0xff] %v462
    %510 = vst [vmem:[#allocation2 + $0x20] sm:$0xff] %v353
    %511 = vst [vmem:[#allocation2 + $0x28] sm:$0xff] %v355
    %512 = vst [vmem:[#allocation2 + $0x30] sm:$0xff] %v466
    %513 = vst [vmem:[#allocation2 + $0x38] sm:$0xff] %v468
    %514 = vst [vmem:[#allocation2 + $0x40] sm:$0xff] %v359
    %515 = vst [vmem:[#allocation2 + $0x48] sm:$0xff] %v361
    %516 = vst [vmem:[#allocation2 + $0x50] sm:$0xff] %v472
    %517 = vst [vmem:[#allocation2 + $0x58] sm:$0xff] %v474
    %518 = vst [vmem:[#allocation2 + $0x60] sm:$0xff] %v365
    %519 = vst [vmem:[#allocation2 + $0x68] sm:$0xff] %v367
    %520 = vst [vmem:[#allocation2 + $0x70] sm:$0xff] %v478
    %521 = vst [vmem:[#allocation2 + $0x78] sm:$0xff] %v480
    %522 = vst [vmem:[#allocation2 + $0x80] sm:$0xff] %v371
    %523 = vst [vmem:[#allocation2 + $0x88] sm:$0xff] %v373
    %524 = vst [vmem:[#allocation2 + $0x90] sm:$0xff] %v484
    %525 = vst [vmem:[#allocation2 + $0x98] sm:$0xff] %v486
    %526 = vst [vmem:[#allocation2 + $0xa0] sm:$0xff] %v377
    %527 = vst [vmem:[#allocation2 + $0xa8] sm:$0xff] %v379
    %528 = vst [vmem:[#allocation2 + $0xb0] sm:$0xff] %v490
    %529 = vst [vmem:[#allocation2 + $0xb8] sm:$0xff] %v492
    %530 = vst [vmem:[#allocation2 + $0xc0] sm:$0xff] %v383
    %531 = vst [vmem:[#allocation2 + $0xc8] sm:$0xff] %v385
    %532 = vst [vmem:[#allocation2 + $0xd0] sm:$0xff] %v496
    %533 = vst [vmem:[#allocation2 + $0xd8] sm:$0xff] %v498
    %534 = vst [vmem:[#allocation2 + $0xe0] sm:$0xff] %v389
    %535 = vst [vmem:[#allocation2 + $0xe8] sm:$0xff] %v391
    %536 = vst [vmem:[#allocation2 + $0xf0] sm:$0xff] %v502
    %537 = vst [vmem:[#allocation2 + $0xf8] sm:$0xff] %v504
    %v538 = vld [vmem:[#allocation2] sm:$0xff]
    %v539 = vld [vmem:[#allocation2 + $0x8] sm:$0xff]
    %v540 = vld [vmem:[#allocation2 + $0x10] sm:$0xff]
    %v541 = vld [vmem:[#allocation2 + $0x18] sm:$0xff]
    %542 = vmatprep.subr.mxu0 %v187
    %543 = vmatpush1.msra.mxu0 %v186
    %544 = vmatprep.subr.mxu0 %v191
    %545 = vmatpush1.msra.mxu0 %v190
    %546 = vmatprep.subr.mxu0 %v195
    %547 = vmatpush1.msra.mxu0 %v194
    %548 = vmatprep.subr.mxu0 %v199
    %549 = vmatpush1.msra.mxu0 %v198
    %550 = vmatprep.subr.mxu0 %v203
    %551 = vmatpush1.msra.mxu0 %v202
    %552 = vmatprep.subr.mxu0 %v207
    %553 = vmatpush1.msra.mxu0 %v206
    %554 = vmatprep.subr.mxu0 %v211
    %555 = vmatpush1.msra.mxu0 %v210
    %556 = vmatprep.subr.mxu0 %v215
    %557 = vmatpush1.msra.mxu0 %v214
    %558 = vmatprep.subr.mxu0 %v219
    %559 = vmatpush1.msra.mxu0 %v218
    %560 = vmatprep.subr.mxu0 %v223
    %561 = vmatpush1.msra.mxu0 %v222
    %562 = vmatprep.subr.mxu0 %v227
    %563 = vmatpush1.msra.mxu0 %v226
    %564 = vmatprep.subr.mxu0 %v231
    %565 = vmatpush1.msra.mxu0 %v230
    %566 = vmatprep.subr.mxu0 %v235
    %567 = vmatpush1.msra.mxu0 %v234
    %568 = vmatprep.subr.mxu0 %v239
    %569 = vmatpush1.msra.mxu0 %v238
    %570 = vmatprep.subr.mxu0 %v243
    %571 = vmatpush1.msra.mxu0 %v242
    %572 = vmatprep.subr.mxu0 %v247
    %573 = vmatpush1.msra.mxu0 %v246
    %574 = vmatprep.subr.mxu0 0.0
    %575 = vmatpush1.msra.mxu0 0.0
    %576 = vmatprep.subr.mxu0 0.0
    %577 = vmatpush1.msra.mxu0 0.0
    %578 = vmatprep.subr.mxu0 0.0
    %579 = vmatpush1.msra.mxu0 0.0
    %580 = vmatprep.subr.mxu0 0.0
    %581 = vmatpush1.msra.mxu0 0.0
    %582 = vmatprep.subr.mxu0 0.0
    %583 = vmatpush1.msra.mxu0 0.0
    %584 = vmatprep.subr.mxu0 0.0
    %585 = vmatpush1.msra.mxu0 0.0
    %586 = vmatprep.subr.mxu0 0.0
    %587 = vmatpush1.msra.mxu0 0.0
    %588 = vmatprep.subr.mxu0 0.0
    %589 = vmatpush1.msra.mxu0 0.0
    %590 = vmatprep.subr.mxu0 0.0
    %591 = vmatpush1.msra.mxu0 0.0
    %592 = vmatprep.subr.mxu0 0.0
    %593 = vmatpush1.msra.mxu0 0.0
    %594 = vmatprep.subr.mxu0 0.0
    %595 = vmatpush1.msra.mxu0 0.0
    %596 = vmatprep.subr.mxu0 0.0
    %597 = vmatpush1.msra.mxu0 0.0
    %598 = vmatprep.subr.mxu0 0.0
    %599 = vmatpush1.msra.mxu0 0.0
    %600 = vmatprep.subr.mxu0 0.0
    %601 = vmatpush1.msra.mxu0 0.0
    %602 = vmatprep.subr.mxu0 0.0
    %603 = vmatpush1.msra.mxu0 0.0
    %604 = vmatprep.subr.mxu0 0.0
    %605 = vmatpush1.msra.mxu0 0.0
    %606 = vmatprep.mubr.f32.mxu0 0.0
    %607 = vmatmul.mubr.f32.gmra.mrb[0].mxu0 0.0
    %v608 = vpop.f32.mrb[0].mxu0
    %v609 = vadd.f32 0.0, %v608
    %v610 = vpop.f32.mrb[0].mxu0
    %v611 = vadd.f32 0.0, %v610
    %612 = vdwg.mxu0
    %613 = vmatprep.subr.mxu0 %v189
    %614 = vmatpush1.msra.mxu0 %v188
    %615 = vmatprep.subr.mxu0 %v193
    %616 = vmatpush1.msra.mxu0 %v192
    %617 = vmatprep.subr.mxu0 %v197
    %618 = vmatpush1.msra.mxu0 %v196
    %619 = vmatprep.subr.mxu0 %v201
    %620 = vmatpush1.msra.mxu0 %v200
    %621 = vmatprep.subr.mxu0 %v205
    %622 = vmatpush1.msra.mxu0 %v204
    %623 = vmatprep.subr.mxu0 %v209
    %624 = vmatpush1.msra.mxu0 %v208
    %625 = vmatprep.subr.mxu0 %v213
    %626 = vmatpush1.msra.mxu0 %v212
    %627 = vmatprep.subr.mxu0 %v217
    %628 = vmatpush1.msra.mxu0 %v216
    %629 = vmatprep.subr.mxu0 %v221
    %630 = vmatpush1.msra.mxu0 %v220
    %631 = vmatprep.subr.mxu0 %v225
    %632 = vmatpush1.msra.mxu0 %v224
    %633 = vmatprep.subr.mxu0 %v229
    %634 = vmatpush1.msra.mxu0 %v228
    %635 = vmatprep.subr.mxu0 %v233
    %636 = vmatpush1.msra.mxu0 %v232
    %637 = vmatprep.subr.mxu0 %v237
    %638 = vmatpush1.msra.mxu0 %v236
    %639 = vmatprep.subr.mxu0 %v241
    %640 = vmatpush1.msra.mxu0 %v240
    %641 = vmatprep.subr.mxu0 %v245
    %642 = vmatpush1.msra.mxu0 %v244
    %643 = vmatprep.subr.mxu0 %v249
    %644 = vmatpush1.msra.mxu0 %v248
    %645 = vmatprep.subr.mxu0 0.0
    %646 = vmatpush1.msra.mxu0 0.0
    %647 = vmatprep.subr.mxu0 0.0
    %648 = vmatpush1.msra.mxu0 0.0
    %649 = vmatprep.subr.mxu0 0.0
    %650 = vmatpush1.msra.mxu0 0.0
    %651 = vmatprep.subr.mxu0 0.0
    %652 = vmatpush1.msra.mxu0 0.0
    %653 = vmatprep.subr.mxu0 0.0
    %654 = vmatpush1.msra.mxu0 0.0
    %655 = vmatprep.subr.mxu0 0.0
    %656 = vmatpush1.msra.mxu0 0.0
    %657 = vmatprep.subr.mxu0 0.0
    %658 = vmatpush1.msra.mxu0 0.0
    %659 = vmatprep.subr.mxu0 0.0
    %660 = vmatpush1.msra.mxu0 0.0
    %661 = vmatprep.subr.mxu0 0.0
    %662 = vmatpush1.msra.mxu0 0.0
    %663 = vmatprep.subr.mxu0 0.0
    %664 = vmatpush1.msra.mxu0 0.0
    %665 = vmatprep.subr.mxu0 0.0
    %666 = vmatpush1.msra.mxu0 0.0
    %667 = vmatprep.subr.mxu0 0.0
    %668 = vmatpush1.msra.mxu0 0.0
    %669 = vmatprep.subr.mxu0 0.0
    %670 = vmatpush1.msra.mxu0 0.0
    %671 = vmatprep.subr.mxu0 0.0
    %672 = vmatpush1.msra.mxu0 0.0
    %673 = vmatprep.subr.mxu0 0.0
    %674 = vmatpush1.msra.mxu0 0.0
    %675 = vmatprep.subr.mxu0 0.0
    %676 = vmatpush1.msra.mxu0 0.0
    %677 = vmatprep.mubr.f32.mxu0 0.0
    %678 = vmatmul.mubr.f32.gmra.mrb[0].mxu0 0.0
    %v679 = vpop.f32.mrb[0].mxu0
    %v680 = vadd.f32 0.0, %v679
    %v681 = vpop.f32.mrb[0].mxu0
    %v682 = vadd.f32 0.0, %v681
    %683 = vdwg.mxu0
    %v684 = vadd.f32 %v538, %v609
    %v685 = vadd.f32 %v539, %v611
    %v686 = vadd.f32 %v540, %v680
    %v687 = vadd.f32 %v541, %v682
    %v688 = vxor.u32 %v684, 2147483648
    %v689 = vmul.f32 %v688, 1.442695
    %v690 = vpow.pop %v689
    %v691 = vadd.f32 %v690, 1.0
    %v692 = vrcp.pop %v691
    %v693 = vmul.f32 1.0, %v692
    %v694 = vxor.u32 %v685, 2147483648
    %v695 = vmul.f32 %v694, 1.442695
    %v696 = vpow.pop %v695
    %v697 = vadd.f32 %v696, 1.0
    %v698 = vrcp.pop %v697
    %v699 = vmul.f32 1.0, %v698
    %v700 = vtanh.pop %v686
    %v701 = vxor.u32 %v687, 2147483648
    %v702 = vmul.f32 %v701, 1.442695
    %v703 = vpow.pop %v702
    %v704 = vadd.f32 %v703, 1.0
    %v705 = vrcp.pop %v704
    %v706 = vmul.f32 1.0, %v705
    %v707 = vmul.f32 %v699, 0.0
    %v708 = vmul.f32 %v693, %v700
    %v709 = vadd.f32 %v707, %v708
    %v710 = vtanh.pop %v709
    %v711 = vmul.f32 %v706, %v710
    %712 = vst [vmem:[#allocation3] sm:$0xff] %v711
    %v713 = vld [vmem:[#allocation2 + $0x20] sm:$0xff]
    %v714 = vld [vmem:[#allocation2 + $0x28] sm:$0xff]
    %v715 = vld [vmem:[#allocation2 + $0x30] sm:$0xff]
    %v716 = vld [vmem:[#allocation2 + $0x38] sm:$0xff]
    %717 = vmatprep.subr.mxu0 %v187
    %718 = vmatpush1.msra.mxu0 %v186
    %719 = vmatprep.subr.mxu0 %v191
    %720 = vmatpush1.msra.mxu0 %v190
    %721 = vmatprep.subr.mxu0 %v195
    %722 = vmatpush1.msra.mxu0 %v194
    %723 = vmatprep.subr.mxu0 %v199
    %724 = vmatpush1.msra.mxu0 %v198
    %725 = vmatprep.subr.mxu0 %v203
    %726 = vmatpush1.msra.mxu0 %v202
    %727 = vmatprep.subr.mxu0 %v207
    %728 = vmatpush1.msra.mxu0 %v206
    %729 = vmatprep.subr.mxu0 %v211
    %730 = vmatpush1.msra.mxu0 %v210
    %731 = vmatprep.subr.mxu0 %v215
    %732 = vmatpush1.msra.mxu0 %v214
    %733 = vmatprep.subr.mxu0 %v219
    %734 = vmatpush1.msra.mxu0 %v218
    %735 = vmatprep.subr.mxu0 %v223
    %736 = vmatpush1.msra.mxu0 %v222
    %737 = vmatprep.subr.mxu0 %v227
    %738 = vmatpush1.msra.mxu0 %v226
    %739 = vmatprep.subr.mxu0 %v231
    %740 = vmatpush1.msra.mxu0 %v230
    %741 = vmatprep.subr.mxu0 %v235
    %742 = vmatpush1.msra.mxu0 %v234
    %743 = vmatprep.subr.mxu0 %v239
    %744 = vmatpush1.msra.mxu0 %v238
    %745 = vmatprep.subr.mxu0 %v243
    %746 = vmatpush1.msra.mxu0 %v242
    %747 = vmatprep.subr.mxu0 %v247
    %748 = vmatpush1.msra.mxu0 %v246
    %749 = vmatprep.subr.mxu0 0.0
    %750 = vmatpush1.msra.mxu0 0.0
    %751 = vmatprep.subr.mxu0 0.0
    %752 = vmatpush1.msra.mxu0 0.0
    %753 = vmatprep.subr.mxu0 0.0
    %754 = vmatpush1.msra.mxu0 0.0
    %755 = vmatprep.subr.mxu0 0.0
    %756 = vmatpush1.msra.mxu0 0.0
    %757 = vmatprep.subr.mxu0 0.0
    %758 = vmatpush1.msra.mxu0 0.0
    %759 = vmatprep.subr.mxu0 0.0
    %760 = vmatpush1.msra.mxu0 0.0
    %761 = vmatprep.subr.mxu0 0.0
    %762 = vmatpush1.msra.mxu0 0.0
    %763 = vmatprep.subr.mxu0 0.0
    %764 = vmatpush1.msra.mxu0 0.0
    %765 = vmatprep.subr.mxu0 0.0
    %766 = vmatpush1.msra.mxu0 0.0
    %767 = vmatprep.subr.mxu0 0.0
    %768 = vmatpush1.msra.mxu0 0.0
    %769 = vmatprep.subr.mxu0 0.0
    %770 = vmatpush1.msra.mxu0 0.0
    %771 = vmatprep.subr.mxu0 0.0
    %772 = vmatpush1.msra.mxu0 0.0
    %773 = vmatprep.subr.mxu0 0.0
    %774 = vmatpush1.msra.mxu0 0.0
    %775 = vmatprep.subr.mxu0 0.0
    %776 = vmatpush1.msra.mxu0 0.0
    %777 = vmatprep.subr.mxu0 0.0
    %778 = vmatpush1.msra.mxu0 0.0
    %779 = vmatprep.subr.mxu0 0.0
    %780 = vmatpush1.msra.mxu0 0.0
    %781 = vmatprep.mubr.f32.mxu0 0.0
    %782 = vmatmul.mubr.f32.gmra.mrb[0].mxu0 %v711
    %v783 = vpop.f32.mrb[0].mxu0
    %v784 = vadd.f32 0.0, %v783
    %v785 = vpop.f32.mrb[0].mxu0
    %v786 = vadd.f32 0.0, %v785
    %787 = vdwg.mxu0
    %788 = vmatprep.subr.mxu0 %v189
    %789 = vmatpush1.msra.mxu0 %v188
    %790 = vmatprep.subr.mxu0 %v193
    %791 = vmatpush1.msra.mxu0 %v192
    %792 = vmatprep.subr.mxu0 %v197
    %793 = vmatpush1.msra.mxu0 %v196
    %794 = vmatprep.subr.mxu0 %v201
    %795 = vmatpush1.msra.mxu0 %v200
    %796 = vmatprep.subr.mxu0 %v205
    %797 = vmatpush1.msra.mxu0 %v204
    %798 = vmatprep.subr.mxu0 %v209
    %799 = vmatpush1.msra.mxu0 %v208
    %800 = vmatprep.subr.mxu0 %v213
    %801 = vmatpush1.msra.mxu0 %v212
    %802 = vmatprep.subr.mxu0 %v217
    %803 = vmatpush1.msra.mxu0 %v216
    %804 = vmatprep.subr.mxu0 %v221
    %805 = vmatpush1.msra.mxu0 %v220
    %806 = vmatprep.subr.mxu0 %v225
    %807 = vmatpush1.msra.mxu0 %v224
    %808 = vmatprep.subr.mxu0 %v229
    %809 = vmatpush1.msra.mxu0 %v228
    %810 = vmatprep.subr.mxu0 %v233
    %811 = vmatpush1.msra.mxu0 %v232
    %812 = vmatprep.subr.mxu0 %v237
    %813 = vmatpush1.msra.mxu0 %v236
    %814 = vmatprep.subr.mxu0 %v241
    %815 = vmatpush1.msra.mxu0 %v240
    %816 = vmatprep.subr.mxu0 %v245
    %817 = vmatpush1.msra.mxu0 %v244
    %818 = vmatprep.subr.mxu0 %v249
    %819 = vmatpush1.msra.mxu0 %v248
    %820 = vmatprep.subr.mxu0 0.0
    %821 = vmatpush1.msra.mxu0 0.0
    %822 = vmatprep.subr.mxu0 0.0
    %823 = vmatpush1.msra.mxu0 0.0
    %824 = vmatprep.subr.mxu0 0.0
    %825 = vmatpush1.msra.mxu0 0.0
    %826 = vmatprep.subr.mxu0 0.0
    %827 = vmatpush1.msra.mxu0 0.0
    %828 = vmatprep.subr.mxu0 0.0
    %829 = vmatpush1.msra.mxu0 0.0
    %830 = vmatprep.subr.mxu0 0.0
    %831 = vmatpush1.msra.mxu0 0.0
    %832 = vmatprep.subr.mxu0 0.0
    %833 = vmatpush1.msra.mxu0 0.0
    %834 = vmatprep.subr.mxu0 0.0
    %835 = vmatpush1.msra.mxu0 0.0
    %836 = vmatprep.subr.mxu0 0.0
    %837 = vmatpush1.msra.mxu0 0.0
    %838 = vmatprep.subr.mxu0 0.0
    %839 = vmatpush1.msra.mxu0 0.0
    %840 = vmatprep.subr.mxu0 0.0
    %841 = vmatpush1.msra.mxu0 0.0
    %842 = vmatprep.subr.mxu0 0.0
    %843 = vmatpush1.msra.mxu0 0.0
    %844 = vmatprep.subr.mxu0 0.0
    %845 = vmatpush1.msra.mxu0 0.0
    %846 = vmatprep.subr.mxu0 0.0
    %847 = vmatpush1.msra.mxu0 0.0
    %848 = vmatprep.subr.mxu0 0.0
    %849 = vmatpush1.msra.mxu0 0.0
    %850 = vmatprep.subr.mxu0 0.0
    %851 = vmatpush1.msra.mxu0 0.0
    %852 = vmatprep.mubr.f32.mxu0 0.0
    %853 = vmatmul.mubr.f32.gmra.mrb[0].mxu0 %v711
    %v854 = vpop.f32.mrb[0].mxu0
    %v855 = vadd.f32 0.0, %v854
    %v856 = vpop.f32.mrb[0].mxu0
    %v857 = vadd.f32 0.0, %v856
    %858 = vdwg.mxu0
    %v859 = vadd.f32 %v713, %v784
    %v860 = vadd.f32 %v714, %v786
    %v861 = vadd.f32 %v715, %v855
    %v862 = vadd.f32 %v716, %v857
    %v863 = vxor.u32 %v859, 2147483648
    %v864 = vmul.f32 %v863, 1.442695
    %v865 = vpow.pop %v864
    %v866 = vadd.f32 %v865, 1.0
    %v867 = vrcp.pop %v866
    %v868 = vmul.f32 1.0, %v867
    %v869 = vxor.u32 %v860, 2147483648
    %v870 = vmul.f32 %v869, 1.442695
    %v871 = vpow.pop %v870
    %v872 = vadd.f32 %v871, 1.0
    %v873 = vrcp.pop %v872
    %v874 = vmul.f32 1.0, %v873
    %v875 = vtanh.pop %v861
    %v876 = vxor.u32 %v862, 2147483648
    %v877 = vmul.f32 %v876, 1.442695
    %v878 = vpow.pop %v877
    %v879 = vadd.f32 %v878, 1.0
    %v880 = vrcp.pop %v879
    %v881 = vmul.f32 1.0, %v880
    %v882 = vmul.f32 %v874, %v709
    %v883 = vmul.f32 %v868, %v875
    %v884 = vadd.f32 %v882, %v883
    %v885 = vtanh.pop %v884
    %v886 = vmul.f32 %v881, %v885
    %887 = vst [vmem:[#allocation3 + $0x8] sm:$0xff] %v886
    %v888 = vld [vmem:[#allocation2 + $0x40] sm:$0xff]
    %v889 = vld [vmem:[#allocation2 + $0x48] sm:$0xff]
    %v890 = vld [vmem:[#allocation2 + $0x50] sm:$0xff]
    %v891 = vld [vmem:[#allocation2 + $0x58] sm:$0xff]
    %892 = vmatprep.subr.mxu0 %v187
    %893 = vmatpush1.msra.mxu0 %v186
    %894 = vmatprep.subr.mxu0 %v191
    %895 = vmatpush1.msra.mxu0 %v190
    %896 = vmatprep.subr.mxu0 %v195
    %897 = vmatpush1.msra.mxu0 %v194
    %898 = vmatprep.subr.mxu0 %v199
    %899 = vmatpush1.msra.mxu0 %v198
    %900 = vmatprep.subr.mxu0 %v203
    %901 = vmatpush1.msra.mxu0 %v202
    %902 = vmatprep.subr.mxu0 %v207
    %903 = vmatpush1.msra.mxu0 %v206
    %904 = vmatprep.subr.mxu0 %v211
    %905 = vmatpush1.msra.mxu0 %v210
    %906 = vmatprep.subr.mxu0 %v215
    %907 = vmatpush1.msra.mxu0 %v214
    %908 = vmatprep.subr.mxu0 %v219
    %909 = vmatpush1.msra.mxu0 %v218
    %910 = vmatprep.subr.mxu0 %v223
    %911 = vmatpush1.msra.mxu0 %v222
    %912 = vmatprep.subr.mxu0 %v227
    %913 = vmatpush1.msra.mxu0 %v226
    %914 = vmatprep.subr.mxu0 %v231
    %915 = vmatpush1.msra.mxu0 %v230
    %916 = vmatprep.subr.mxu0 %v235
    %917 = vmatpush1.msra.mxu0 %v234
    %918 = vmatprep.subr.mxu0 %v239
    %919 = vmatpush1.msra.mxu0 %v238
    %920 = vmatprep.subr.mxu0 %v243
    %921 = vmatpush1.msra.mxu0 %v242
    %922 = vmatprep.subr.mxu0 %v247
    %923 = vmatpush1.msra.mxu0 %v246
    %924 = vmatprep.subr.mxu0 0.0
    %925 = vmatpush1.msra.mxu0 0.0
    %926 = vmatprep.subr.mxu0 0.0
    %927 = vmatpush1.msra.mxu0 0.0
    %928 = vmatprep.subr.mxu0 0.0
    %929 = vmatpush1.msra.mxu0 0.0
    %930 = vmatprep.subr.mxu0 0.0
    %931 = vmatpush1.msra.mxu0 0.0
    %932 = vmatprep.subr.mxu0 0.0
    %933 = vmatpush1.msra.mxu0 0.0
    %934 = vmatprep.subr.mxu0 0.0
    %935 = vmatpush1.msra.mxu0 0.0
    %936 = vmatprep.subr.mxu0 0.0
    %937 = vmatpush1.msra.mxu0 0.0
    %938 = vmatprep.subr.mxu0 0.0
    %939 = vmatpush1.msra.mxu0 0.0
    %940 = vmatprep.subr.mxu0 0.0
    %941 = vmatpush1.msra.mxu0 0.0
    %942 = vmatprep.subr.mxu0 0.0
    %943 = vmatpush1.msra.mxu0 0.0
    %944 = vmatprep.subr.mxu0 0.0
    %945 = vmatpush1.msra.mxu0 0.0
    %946 = vmatprep.subr.mxu0 0.0
    %947 = vmatpush1.msra.mxu0 0.0
    %948 = vmatprep.subr.mxu0 0.0
    %949 = vmatpush1.msra.mxu0 0.0
    %950 = vmatprep.subr.mxu0 0.0
    %951 = vmatpush1.msra.mxu0 0.0
    %952 = vmatprep.subr.mxu0 0.0
    %953 = vmatpush1.msra.mxu0 0.0
    %954 = vmatprep.subr.mxu0 0.0
    %955 = vmatpush1.msra.mxu0 0.0
    %956 = vmatprep.mubr.f32.mxu0 0.0
    %957 = vmatmul.mubr.f32.gmra.mrb[0].mxu0 %v886
    %v958 = vpop.f32.mrb[0].mxu0
    %v959 = vadd.f32 0.0, %v958
    %v960 = vpop.f32.mrb[0].mxu0
    %v961 = vadd.f32 0.0, %v960
    %962 = vdwg.mxu0
    %963 = vmatprep.subr.mxu0 %v189
    %964 = vmatpush1.msra.mxu0 %v188
    %965 = vmatprep.subr.mxu0 %v193
    %966 = vmatpush1.msra.mxu0 %v192
    %967 = vmatprep.subr.mxu0 %v197
    %968 = vmatpush1.msra.mxu0 %v196
    %969 = vmatprep.subr.mxu0 %v201
    %970 = vmatpush1.msra.mxu0 %v200
    %971 = vmatprep.subr.mxu0 %v205
    %972 = vmatpush1.msra.mxu0 %v204
    %973 = vmatprep.subr.mxu0 %v209
    %974 = vmatpush1.msra.mxu0 %v208
    %975 = vmatprep.subr.mxu0 %v213
    %976 = vmatpush1.msra.mxu0 %v212
    %977 = vmatprep.subr.mxu0 %v217
    %978 = vmatpush1.msra.mxu0 %v216
    %979 = vmatprep.subr.mxu0 %v221
    %980 = vmatpush1.msra.mxu0 %v220
    %981 = vmatprep.subr.mxu0 %v225
    %982 = vmatpush1.msra.mxu0 %v224
    %983 = vmatprep.subr.mxu0 %v229
    %984 = vmatpush1.msra.mxu0 %v228
    %985 = vmatprep.subr.mxu0 %v233
    %986 = vmatpush1.msra.mxu0 %v232
    %987 = vmatprep.subr.mxu0 %v237
    %988 = vmatpush1.msra.mxu0 %v236
    %989 = vmatprep.subr.mxu0 %v241
    %990 = vmatpush1.msra.mxu0 %v240
    %991 = vmatprep.subr.mxu0 %v245
    %992 = vmatpush1.msra.mxu0 %v244
    %993 = vmatprep.subr.mxu0 %v249
    %994 = vmatpush1.msra.mxu0 %v248
    %995 = vmatprep.subr.mxu0 0.0
    %996 = vmatpush1.msra.mxu0 0.0
    %997 = vmatprep.subr.mxu0 0.0
    %998 = vmatpush1.msra.mxu0 0.0
    %999 = vmatprep.subr.mxu0 0.0
    %1000 = vmatpush1.msra.mxu0 0.0
    %1001 = vmatprep.subr.mxu0 0.0
    %1002 = vmatpush1.msra.mxu0 0.0
    %1003 = vmatprep.subr.mxu0 0.0
    %1004 = vmatpush1.msra.mxu0 0.0
    %1005 = vmatprep.subr.mxu0 0.0
    %1006 = vmatpush1.msra.mxu0 0.0
    %1007 = vmatprep.subr.mxu0 0.0
    %1008 = vmatpush1.msra.mxu0 0.0
    %1009 = vmatprep.subr.mxu0 0.0
    %1010 = vmatpush1.msra.mxu0 0.0
    %1011 = vmatprep.subr.mxu0 0.0
    %1012 = vmatpush1.msra.mxu0 0.0
    %1013 = vmatprep.subr.mxu0 0.0
    %1014 = vmatpush1.msra.mxu0 0.0
    %1015 = vmatprep.subr.mxu0 0.0
    %1016 = vmatpush1.msra.mxu0 0.0
    %1017 = vmatprep.subr.mxu0 0.0
    %1018 = vmatpush1.msra.mxu0 0.0
    %1019 = vmatprep.subr.mxu0 0.0
    %1020 = vmatpush1.msra.mxu0 0.0
    %1021 = vmatprep.subr.mxu0 0.0
    %1022 = vmatpush1.msra.mxu0 0.0
    %1023 = vmatprep.subr.mxu0 0.0
    %1024 = vmatpush1.msra.mxu0 0.0
    %1025 = vmatprep.subr.mxu0 0.0
    %1026 = vmatpush1.msra.mxu0 0.0
    %1027 = vmatprep.mubr.f32.mxu0 0.0
    %1028 = vmatmul.mubr.f32.gmra.mrb[0].mxu0 %v886
    %v1029 = vpop.f32.mrb[0].mxu0
    %v1030 = vadd.f32 0.0, %v1029
    %v1031 = vpop.f32.mrb[0].mxu0
    %v1032 = vadd.f32 0.0, %v1031
    %1033 = vdwg.mxu0
    %v1034 = vadd.f32 %v888, %v959
    %v1035 = vadd.f32 %v889, %v961
    %v1036 = vadd.f32 %v890, %v1030
    %v1037 = vadd.f32 %v891, %v1032
    %v1038 = vxor.u32 %v1034, 2147483648
    %v1039 = vmul.f32 %v1038, 1.442695
    %v1040 = vpow.pop %v1039
    %v1041 = vadd.f32 %v1040, 1.0
    %v1042 = vrcp.pop %v1041
    %v1043 = vmul.f32 1.0, %v1042
    %v1044 = vxor.u32 %v1035, 2147483648
    %v1045 = vmul.f32 %v1044, 1.442695
    %v1046 = vpow.pop %v1045
    %v1047 = vadd.f32 %v1046, 1.0
    %v1048 = vrcp.pop %v1047
    %v1049 = vmul.f32 1.0, %v1048
    %v1050 = vtanh.pop %v1036
    %v1051 = vxor.u32 %v1037, 2147483648
    %v1052 = vmul.f32 %v1051, 1.442695
    %v1053 = vpow.pop %v1052
    %v1054 = vadd.f32 %v1053, 1.0
    %v1055 = vrcp.pop %v1054
    %v1056 = vmul.f32 1.0, %v1055
    %v1057 = vmul.f32 %v1049, %v884
    %v1058 = vmul.f32 %v1043, %v1050
    %v1059 = vadd.f32 %v1057, %v1058
    %v1060 = vtanh.pop %v1059
    %v1061 = vmul.f32 %v1056, %v1060
    %1062 = vst [vmem:[#allocation3 + $0x10] sm:$0xff] %v1061
    %v1063 = vld [vmem:[#allocation2 + $0x60] sm:$0xff]
    %v1064 = vld [vmem:[#allocation2 + $0x68] sm:$0xff]
    %v1065 = vld [vmem:[#allocation2 + $0x70] sm:$0xff]
    %v1066 = vld [vmem:[#allocation2 + $0x78] sm:$0xff]
    %1067 = vmatprep.subr.mxu0 %v187
    %1068 = vmatpush1.msra.mxu0 %v186
    %1069 = vmatprep.subr.mxu0 %v191
    %1070 = vmatpush1.msra.mxu0 %v190
    %1071 = vmatprep.subr.mxu0 %v195
    %1072 = vmatpush1.msra.mxu0 %v194
    %1073 = vmatprep.subr.mxu0 %v199
    %1074 = vmatpush1.msra.mxu0 %v198
    %1075 = vmatprep.subr.mxu0 %v203
    %1076 = vmatpush1.msra.mxu0 %v202
    %1077 = vmatprep.subr.mxu0 %v207
    %1078 = vmatpush1.msra.mxu0 %v206
    %1079 = vmatprep.subr.mxu0 %v211
    %1080 = vmatpush1.msra.mxu0 %v210
    %1081 = vmatprep.subr.mxu0 %v215
    %1082 = vmatpush1.msra.mxu0 %v214
    %1083 = vmatprep.subr.mxu0 %v219
    %1084 = vmatpush1.msra.mxu0 %v218
    %1085 = vmatprep.subr.mxu0 %v223
    %1086 = vmatpush1.msra.mxu0 %v222
    %1087 = vmatprep.subr.mxu0 %v227
    %1088 = vmatpush1.msra.mxu0 %v226
    %1089 = vmatprep.subr.mxu0 %v231
    %1090 = vmatpush1.msra.mxu0 %v230
    %1091 = vmatprep.subr.mxu0 %v235
    %1092 = vmatpush1.msra.mxu0 %v234
    %1093 = vmatprep.subr.mxu0 %v239
    %1094 = vmatpush1.msra.mxu0 %v238
    %1095 = vmatprep.subr.mxu0 %v243
    %1096 = vmatpush1.msra.mxu0 %v242
    %1097 = vmatprep.subr.mxu0 %v247
    %1098 = vmatpush1.msra.mxu0 %v246
    %1099 = vmatprep.subr.mxu0 0.0
    %1100 = vmatpush1.msra.mxu0 0.0
    %1101 = vmatprep.subr.mxu0 0.0
    %1102 = vmatpush1.msra.mxu0 0.0
    %1103 = vmatprep.subr.mxu0 0.0
    %1104 = vmatpush1.msra.mxu0 0.0
    %1105 = vmatprep.subr.mxu0 0.0
    %1106 = vmatpush1.msra.mxu0 0.0
    %1107 = vmatprep.subr.mxu0 0.0
    %1108 = vmatpush1.msra.mxu0 0.0
    %1109 = vmatprep.subr.mxu0 0.0
    %1110 = vmatpush1.msra.mxu0 0.0
    %1111 = vmatprep.subr.mxu0 0.0
    %1112 = vmatpush1.msra.mxu0 0.0
    %1113 = vmatprep.subr.mxu0 0.0
    %1114 = vmatpush1.msra.mxu0 0.0
    %1115 = vmatprep.subr.mxu0 0.0
    %1116 = vmatpush1.msra.mxu0 0.0
    %1117 = vmatprep.subr.mxu0 0.0
    %1118 = vmatpush1.msra.mxu0 0.0
    %1119 = vmatprep.subr.mxu0 0.0
    %1120 = vmatpush1.msra.mxu0 0.0
    %1121 = vmatprep.subr.mxu0 0.0
    %1122 = vmatpush1.msra.mxu0 0.0
    %1123 = vmatprep.subr.mxu0 0.0
    %1124 = vmatpush1.msra.mxu0 0.0
    %1125 = vmatprep.subr.mxu0 0.0
    %1126 = vmatpush1.msra.mxu0 0.0
    %1127 = vmatprep.subr.mxu0 0.0
    %1128 = vmatpush1.msra.mxu0 0.0
    %1129 = vmatprep.subr.mxu0 0.0
    %1130 = vmatpush1.msra.mxu0 0.0
    %1131 = vmatprep.mubr.f32.mxu0 0.0
    %1132 = vmatmul.mubr.f32.gmra.mrb[0].mxu0 %v1061
    %v1133 = vpop.f32.mrb[0].mxu0
    %v1134 = vadd.f32 0.0, %v1133
    %v1135 = vpop.f32.mrb[0].mxu0
    %v1136 = vadd.f32 0.0, %v1135
    %1137 = vdwg.mxu0
    %1138 = vmatprep.subr.mxu0 %v189
    %1139 = vmatpush1.msra.mxu0 %v188
    %1140 = vmatprep.subr.mxu0 %v193
    %1141 = vmatpush1.msra.mxu0 %v192
    %1142 = vmatprep.subr.mxu0 %v197
    %1143 = vmatpush1.msra.mxu0 %v196
    %1144 = vmatprep.subr.mxu0 %v201
    %1145 = vmatpush1.msra.mxu0 %v200
    %1146 = vmatprep.subr.mxu0 %v205
    %1147 = vmatpush1.msra.mxu0 %v204
    %1148 = vmatprep.subr.mxu0 %v209
    %1149 = vmatpush1.msra.mxu0 %v208
    %1150 = vmatprep.subr.mxu0 %v213
    %1151 = vmatpush1.msra.mxu0 %v212
    %1152 = vmatprep.subr.mxu0 %v217
    %1153 = vmatpush1.msra.mxu0 %v216
    %1154 = vmatprep.subr.mxu0 %v221
    %1155 = vmatpush1.msra.mxu0 %v220
    %1156 = vmatprep.subr.mxu0 %v225
    %1157 = vmatpush1.msra.mxu0 %v224
    %1158 = vmatprep.subr.mxu0 %v229
    %1159 = vmatpush1.msra.mxu0 %v228
    %1160 = vmatprep.subr.mxu0 %v233
    %1161 = vmatpush1.msra.mxu0 %v232
    %1162 = vmatprep.subr.mxu0 %v237
    %1163 = vmatpush1.msra.mxu0 %v236
    %1164 = vmatprep.subr.mxu0 %v241
    %1165 = vmatpush1.msra.mxu0 %v240
    %1166 = vmatprep.subr.mxu0 %v245
    %1167 = vmatpush1.msra.mxu0 %v244
    %1168 = vmatprep.subr.mxu0 %v249
    %1169 = vmatpush1.msra.mxu0 %v248
    %1170 = vmatprep.subr.mxu0 0.0
    %1171 = vmatpush1.msra.mxu0 0.0
    %1172 = vmatprep.subr.mxu0 0.0
    %1173 = vmatpush1.msra.mxu0 0.0
    %1174 = vmatprep.subr.mxu0 0.0
    %1175 = vmatpush1.msra.mxu0 0.0
    %1176 = vmatprep.subr.mxu0 0.0
    %1177 = vmatpush1.msra.mxu0 0.0
    %1178 = vmatprep.subr.mxu0 0.0
    %1179 = vmatpush1.msra.mxu0 0.0
    %1180 = vmatprep.subr.mxu0 0.0
    %1181 = vmatpush1.msra.mxu0 0.0
    %1182 = vmatprep.subr.mxu0 0.0
    %1183 = vmatpush1.msra.mxu0 0.0
    %1184 = vmatprep.subr.mxu0 0.0
    %1185 = vmatpush1.msra.mxu0 0.0
    %1186 = vmatprep.subr.mxu0 0.0
    %1187 = vmatpush1.msra.mxu0 0.0
    %1188 = vmatprep.subr.mxu0 0.0
    %1189 = vmatpush1.msra.mxu0 0.0
    %1190 = vmatprep.subr.mxu0 0.0
    %1191 = vmatpush1.msra.mxu0 0.0
    %1192 = vmatprep.subr.mxu0 0.0
    %1193 = vmatpush1.msra.mxu0 0.0
    %1194 = vmatprep.subr.mxu0 0.0
    %1195 = vmatpush1.msra.mxu0 0.0
    %1196 = vmatprep.subr.mxu0 0.0
    %1197 = vmatpush1.msra.mxu0 0.0
    %1198 = vmatprep.subr.mxu0 0.0
    %1199 = vmatpush1.msra.mxu0 0.0
    %1200 = vmatprep.subr.mxu0 0.0
    %1201 = vmatpush1.msra.mxu0 0.0
    %1202 = vmatprep.mubr.f32.mxu0 0.0
    %1203 = vmatmul.mubr.f32.gmra.mrb[0].mxu0 %v1061
    %v1204 = vpop.f32.mrb[0].mxu0
    %v1205 = vadd.f32 0.0, %v1204
    %v1206 = vpop.f32.mrb[0].mxu0
    %v1207 = vadd.f32 0.0, %v1206
    %1208 = vdwg.mxu0
    %v1209 = vadd.f32 %v1063, %v1134
    %v1210 = vadd.f32 %v1064, %v1136
    %v1211 = vadd.f32 %v1065, %v1205
    %v1212 = vadd.f32 %v1066, %v1207
    %v1213 = vxor.u32 %v1209, 2147483648
    %v1214 = vmul.f32 %v1213, 1.442695
    %v1215 = vpow.pop %v1214
    %v1216 = vadd.f32 %v1215, 1.0
    %v1217 = vrcp.pop %v1216
    %v1218 = vmul.f32 1.0, %v1217
    %v1219 = vxor.u32 %v1210, 2147483648
    %v1220 = vmul.f32 %v1219, 1.442695
    %v1221 = vpow.pop %v1220
    %v1222 = vadd.f32 %v1221, 1.0
    %v1223 = vrcp.pop %v1222
    %v1224 = vmul.f32 1.0, %v1223
    %v1225 = vtanh.pop %v1211
    %v1226 = vxor.u32 %v1212, 2147483648
    %v1227 = vmul.f32 %v1226, 1.442695
    %v1228 = vpow.pop %v1227
    %v1229 = vadd.f32 %v1228, 1.0
    %v1230 = vrcp.pop %v1229
    %v1231 = vmul.f32 1.0, %v1230
    %v1232 = vmul.f32 %v1224, %v1059
    %v1233 = vmul.f32 %v1218, %v1225
    %v1234 = vadd.f32 %v1232, %v1233
    %v1235 = vtanh.pop %v1234
    %v1236 = vmul.f32 %v1231, %v1235
    %1237 = vst [vmem:[#allocation3 + $0x18] sm:$0xff] %v1236
    %v1238 = vld [vmem:[#allocation2 + $0x80] sm:$0xff]
    %v1239 = vld [vmem:[#allocation2 + $0x88] sm:$0xff]
    %v1240 = vld [vmem:[#allocation2 + $0x90] sm:$0xff]
    %v1241 = vld [vmem:[#allocation2 + $0x98] sm:$0xff]
    %1242 = vmatprep.subr.mxu0 %v187
    %1243 = vmatpush1.msra.mxu0 %v186
    %1244 = vmatprep.subr.mxu0 %v191
    %1245 = vmatpush1.msra.mxu0 %v190
    %1246 = vmatprep.subr.mxu0 %v195
    %1247 = vmatpush1.msra.mxu0 %v194
    %1248 = vmatprep.subr.mxu0 %v199
    %1249 = vmatpush1.msra.mxu0 %v198
    %1250 = vmatprep.subr.mxu0 %v203
    %1251 = vmatpush1.msra.mxu0 %v202
    %1252 = vmatprep.subr.mxu0 %v207
    %1253 = vmatpush1.msra.mxu0 %v206
    %1254 = vmatprep.subr.mxu0 %v211
    %1255 = vmatpush1.msra.mxu0 %v210
    %1256 = vmatprep.subr.mxu0 %v215
    %1257 = vmatpush1.msra.mxu0 %v214
    %1258 = vmatprep.subr.mxu0 %v219
    %1259 = vmatpush1.msra.mxu0 %v218
    %1260 = vmatprep.subr.mxu0 %v223
    %1261 = vmatpush1.msra.mxu0 %v222
    %1262 = vmatprep.subr.mxu0 %v227
    %1263 = vmatpush1.msra.mxu0 %v226
    %1264 = vmatprep.subr.mxu0 %v231
    %1265 = vmatpush1.msra.mxu0 %v230
    %1266 = vmatprep.subr.mxu0 %v235
    %1267 = vmatpush1.msra.mxu0 %v234
    %1268 = vmatprep.subr.mxu0 %v239
    %1269 = vmatpush1.msra.mxu0 %v238
    %1270 = vmatprep.subr.mxu0 %v243
    %1271 = vmatpush1.msra.mxu0 %v242
    %1272 = vmatprep.subr.mxu0 %v247
    %1273 = vmatpush1.msra.mxu0 %v246
    %1274 = vmatprep.subr.mxu0 0.0
    %1275 = vmatpush1.msra.mxu0 0.0
    %1276 = vmatprep.subr.mxu0 0.0
    %1277 = vmatpush1.msra.mxu0 0.0
    %1278 = vmatprep.subr.mxu0 0.0
    %1279 = vmatpush1.msra.mxu0 0.0
    %1280 = vmatprep.subr.mxu0 0.0
    %1281 = vmatpush1.msra.mxu0 0.0
    %1282 = vmatprep.subr.mxu0 0.0
    %1283 = vmatpush1.msra.mxu0 0.0
    %1284 = vmatprep.subr.mxu0 0.0
    %1285 = vmatpush1.msra.mxu0 0.0
    %1286 = vmatprep.subr.mxu0 0.0
    %1287 = vmatpush1.msra.mxu0 0.0
    %1288 = vmatprep.subr.mxu0 0.0
    %1289 = vmatpush1.msra.mxu0 0.0
    %1290 = vmatprep.subr.mxu0 0.0
    %1291 = vmatpush1.msra.mxu0 0.0
    %1292 = vmatprep.subr.mxu0 0.0
    %1293 = vmatpush1.msra.mxu0 0.0
    %1294 = vmatprep.subr.mxu0 0.0
    %1295 = vmatpush1.msra.mxu0 0.0
    %1296 = vmatprep.subr.mxu0 0.0
    %1297 = vmatpush1.msra.mxu0 0.0
    %1298 = vmatprep.subr.mxu0 0.0
    %1299 = vmatpush1.msra.mxu0 0.0
    %1300 = vmatprep.subr.mxu0 0.0
    %1301 = vmatpush1.msra.mxu0 0.0
    %1302 = vmatprep.subr.mxu0 0.0
    %1303 = vmatpush1.msra.mxu0 0.0
    %1304 = vmatprep.subr.mxu0 0.0
    %1305 = vmatpush1.msra.mxu0 0.0
    %1306 = vmatprep.mubr.f32.mxu0 0.0
    %1307 = vmatmul.mubr.f32.gmra.mrb[0].mxu0 %v1236
    %v1308 = vpop.f32.mrb[0].mxu0
    %v1309 = vadd.f32 0.0, %v1308
    %v1310 = vpop.f32.mrb[0].mxu0
    %v1311 = vadd.f32 0.0, %v1310
    %1312 = vdwg.mxu0
    %1313 = vmatprep.subr.mxu0 %v189
    %1314 = vmatpush1.msra.mxu0 %v188
    %1315 = vmatprep.subr.mxu0 %v193
    %1316 = vmatpush1.msra.mxu0 %v192
    %1317 = vmatprep.subr.mxu0 %v197
    %1318 = vmatpush1.msra.mxu0 %v196
    %1319 = vmatprep.subr.mxu0 %v201
    %1320 = vmatpush1.msra.mxu0 %v200
    %1321 = vmatprep.subr.mxu0 %v205
    %1322 = vmatpush1.msra.mxu0 %v204
    %1323 = vmatprep.subr.mxu0 %v209
    %1324 = vmatpush1.msra.mxu0 %v208
    %1325 = vmatprep.subr.mxu0 %v213
    %1326 = vmatpush1.msra.mxu0 %v212
    %1327 = vmatprep.subr.mxu0 %v217
    %1328 = vmatpush1.msra.mxu0 %v216
    %1329 = vmatprep.subr.mxu0 %v221
    %1330 = vmatpush1.msra.mxu0 %v220
    %1331 = vmatprep.subr.mxu0 %v225
    %1332 = vmatpush1.msra.mxu0 %v224
    %1333 = vmatprep.subr.mxu0 %v229
    %1334 = vmatpush1.msra.mxu0 %v228
    %1335 = vmatprep.subr.mxu0 %v233
    %1336 = vmatpush1.msra.mxu0 %v232
    %1337 = vmatprep.subr.mxu0 %v237
    %1338 = vmatpush1.msra.mxu0 %v236
    %1339 = vmatprep.subr.mxu0 %v241
    %1340 = vmatpush1.msra.mxu0 %v240
    %1341 = vmatprep.subr.mxu0 %v245
    %1342 = vmatpush1.msra.mxu0 %v244
    %1343 = vmatprep.subr.mxu0 %v249
    %1344 = vmatpush1.msra.mxu0 %v248
    %1345 = vmatprep.subr.mxu0 0.0
    %1346 = vmatpush1.msra.mxu0 0.0
    %1347 = vmatprep.subr.mxu0 0.0
    %1348 = vmatpush1.msra.mxu0 0.0
    %1349 = vmatprep.subr.mxu0 0.0
    %1350 = vmatpush1.msra.mxu0 0.0
    %1351 = vmatprep.subr.mxu0 0.0
    %1352 = vmatpush1.msra.mxu0 0.0
    %1353 = vmatprep.subr.mxu0 0.0
    %1354 = vmatpush1.msra.mxu0 0.0
    %1355 = vmatprep.subr.mxu0 0.0
    %1356 = vmatpush1.msra.mxu0 0.0
    %1357 = vmatprep.subr.mxu0 0.0
    %1358 = vmatpush1.msra.mxu0 0.0
    %1359 = vmatprep.subr.mxu0 0.0
    %1360 = vmatpush1.msra.mxu0 0.0
    %1361 = vmatprep.subr.mxu0 0.0
    %1362 = vmatpush1.msra.mxu0 0.0
    %1363 = vmatprep.subr.mxu0 0.0
    %1364 = vmatpush1.msra.mxu0 0.0
    %1365 = vmatprep.subr.mxu0 0.0
    %1366 = vmatpush1.msra.mxu0 0.0
    %1367 = vmatprep.subr.mxu0 0.0
    %1368 = vmatpush1.msra.mxu0 0.0
    %1369 = vmatprep.subr.mxu0 0.0
    %1370 = vmatpush1.msra.mxu0 0.0
    %1371 = vmatprep.subr.mxu0 0.0
    %1372 = vmatpush1.msra.mxu0 0.0
    %1373 = vmatprep.subr.mxu0 0.0
    %1374 = vmatpush1.msra.mxu0 0.0
    %1375 = vmatprep.subr.mxu0 0.0
    %1376 = vmatpush1.msra.mxu0 0.0
    %1377 = vmatprep.mubr.f32.mxu0 0.0
    %1378 = vmatmul.mubr.f32.gmra.mrb[0].mxu0 %v1236
    %v1379 = vpop.f32.mrb[0].mxu0
    %v1380 = vadd.f32 0.0, %v1379
    %v1381 = vpop.f32.mrb[0].mxu0
    %v1382 = vadd.f32 0.0, %v1381
    %1383 = vdwg.mxu0
    %v1384 = vadd.f32 %v1238, %v1309
    %v1385 = vadd.f32 %v1239, %v1311
    %v1386 = vadd.f32 %v1240, %v1380
    %v1387 = vadd.f32 %v1241, %v1382
    %v1388 = vxor.u32 %v1384, 2147483648
    %v1389 = vmul.f32 %v1388, 1.442695
    %v1390 = vpow.pop %v1389
    %v1391 = vadd.f32 %v1390, 1.0
    %v1392 = vrcp.pop %v1391
    %v1393 = vmul.f32 1.0, %v1392
    %v1394 = vxor.u32 %v1385, 2147483648
    %v1395 = vmul.f32 %v1394, 1.442695
    %v1396 = vpow.pop %v1395
    %v1397 = vadd.f32 %v1396, 1.0
    %v1398 = vrcp.pop %v1397
    %v1399 = vmul.f32 1.0, %v1398
    %v1400 = vtanh.pop %v1386
    %v1401 = vxor.u32 %v1387, 2147483648
    %v1402 = vmul.f32 %v1401, 1.442695
    %v1403 = vpow.pop %v1402
    %v1404 = vadd.f32 %v1403, 1.0
    %v1405 = vrcp.pop %v1404
    %v1406 = vmul.f32 1.0, %v1405
    %v1407 = vmul.f32 %v1399, %v1234
    %v1408 = vmul.f32 %v1393, %v1400
    %v1409 = vadd.f32 %v1407, %v1408
    %v1410 = vtanh.pop %v1409
    %v1411 = vmul.f32 %v1406, %v1410
    %1412 = vst [vmem:[#allocation3 + $0x20] sm:$0xff] %v1411
    %v1413 = vld [vmem:[#allocation2 + $0xa0] sm:$0xff]
    %v1414 = vld [vmem:[#allocation2 + $0xa8] sm:$0xff]
    %v1415 = vld [vmem:[#allocation2 + $0xb0] sm:$0xff]
    %v1416 = vld [vmem:[#allocation2 + $0xb8] sm:$0xff]
    %1417 = vmatprep.subr.mxu0 %v187
    %1418 = vmatpush1.msra.mxu0 %v186
    %1419 = vmatprep.subr.mxu0 %v191
    %1420 = vmatpush1.msra.mxu0 %v190
    %1421 = vmatprep.subr.mxu0 %v195
    %1422 = vmatpush1.msra.mxu0 %v194
    %1423 = vmatprep.subr.mxu0 %v199
    %1424 = vmatpush1.msra.mxu0 %v198
    %1425 = vmatprep.subr.mxu0 %v203
    %1426 = vmatpush1.msra.mxu0 %v202
    %1427 = vmatprep.subr.mxu0 %v207
    %1428 = vmatpush1.msra.mxu0 %v206
    %1429 = vmatprep.subr.mxu0 %v211
    %1430 = vmatpush1.msra.mxu0 %v210
    %1431 = vmatprep.subr.mxu0 %v215
    %1432 = vmatpush1.msra.mxu0 %v214
    %1433 = vmatprep.subr.mxu0 %v219
    %1434 = vmatpush1.msra.mxu0 %v218
    %1435 = vmatprep.subr.mxu0 %v223
    %1436 = vmatpush1.msra.mxu0 %v222
    %1437 = vmatprep.subr.mxu0 %v227
    %1438 = vmatpush1.msra.mxu0 %v226
    %1439 = vmatprep.subr.mxu0 %v231
    %1440 = vmatpush1.msra.mxu0 %v230
    %1441 = vmatprep.subr.mxu0 %v235
    %1442 = vmatpush1.msra.mxu0 %v234
    %1443 = vmatprep.subr.mxu0 %v239
    %1444 = vmatpush1.msra.mxu0 %v238
    %1445 = vmatprep.subr.mxu0 %v243
    %1446 = vmatpush1.msra.mxu0 %v242
    %1447 = vmatprep.subr.mxu0 %v247
    %1448 = vmatpush1.msra.mxu0 %v246
    %1449 = vmatprep.subr.mxu0 0.0
    %1450 = vmatpush1.msra.mxu0 0.0
    %1451 = vmatprep.subr.mxu0 0.0
    %1452 = vmatpush1.msra.mxu0 0.0
    %1453 = vmatprep.subr.mxu0 0.0
    %1454 = vmatpush1.msra.mxu0 0.0
    %1455 = vmatprep.subr.mxu0 0.0
    %1456 = vmatpush1.msra.mxu0 0.0
    %1457 = vmatprep.subr.mxu0 0.0
    %1458 = vmatpush1.msra.mxu0 0.0
    %1459 = vmatprep.subr.mxu0 0.0
    %1460 = vmatpush1.msra.mxu0 0.0
    %1461 = vmatprep.subr.mxu0 0.0
    %1462 = vmatpush1.msra.mxu0 0.0
    %1463 = vmatprep.subr.mxu0 0.0
    %1464 = vmatpush1.msra.mxu0 0.0
    %1465 = vmatprep.subr.mxu0 0.0
    %1466 = vmatpush1.msra.mxu0 0.0
    %1467 = vmatprep.subr.mxu0 0.0
    %1468 = vmatpush1.msra.mxu0 0.0
    %1469 = vmatprep.subr.mxu0 0.0
    %1470 = vmatpush1.msra.mxu0 0.0
    %1471 = vmatprep.subr.mxu0 0.0
    %1472 = vmatpush1.msra.mxu0 0.0
    %1473 = vmatprep.subr.mxu0 0.0
    %1474 = vmatpush1.msra.mxu0 0.0
    %1475 = vmatprep.subr.mxu0 0.0
    %1476 = vmatpush1.msra.mxu0 0.0
    %1477 = vmatprep.subr.mxu0 0.0
    %1478 = vmatpush1.msra.mxu0 0.0
    %1479 = vmatprep.subr.mxu0 0.0
    %1480 = vmatpush1.msra.mxu0 0.0
    %1481 = vmatprep.mubr.f32.mxu0 0.0
    %1482 = vmatmul.mubr.f32.gmra.mrb[0].mxu0 %v1411
    %v1483 = vpop.f32.mrb[0].mxu0
    %v1484 = vadd.f32 0.0, %v1483
    %v1485 = vpop.f32.mrb[0].mxu0
    %v1486 = vadd.f32 0.0, %v1485
    %1487 = vdwg.mxu0
    %1488 = vmatprep.subr.mxu0 %v189
    %1489 = vmatpush1.msra.mxu0 %v188
    %1490 = vmatprep.subr.mxu0 %v193
    %1491 = vmatpush1.msra.mxu0 %v192
    %1492 = vmatprep.subr.mxu0 %v197
    %1493 = vmatpush1.msra.mxu0 %v196
    %1494 = vmatprep.subr.mxu0 %v201
    %1495 = vmatpush1.msra.mxu0 %v200
    %1496 = vmatprep.subr.mxu0 %v205
    %1497 = vmatpush1.msra.mxu0 %v204
    %1498 = vmatprep.subr.mxu0 %v209
    %1499 = vmatpush1.msra.mxu0 %v208
    %1500 = vmatprep.subr.mxu0 %v213
    %1501 = vmatpush1.msra.mxu0 %v212
    %1502 = vmatprep.subr.mxu0 %v217
    %1503 = vmatpush1.msra.mxu0 %v216
    %1504 = vmatprep.subr.mxu0 %v221
    %1505 = vmatpush1.msra.mxu0 %v220
    %1506 = vmatprep.subr.mxu0 %v225
    %1507 = vmatpush1.msra.mxu0 %v224
    %1508 = vmatprep.subr.mxu0 %v229
    %1509 = vmatpush1.msra.mxu0 %v228
    %1510 = vmatprep.subr.mxu0 %v233
    %1511 = vmatpush1.msra.mxu0 %v232
    %1512 = vmatprep.subr.mxu0 %v237
    %1513 = vmatpush1.msra.mxu0 %v236
    %1514 = vmatprep.subr.mxu0 %v241
    %1515 = vmatpush1.msra.mxu0 %v240
    %1516 = vmatprep.subr.mxu0 %v245
    %1517 = vmatpush1.msra.mxu0 %v244
    %1518 = vmatprep.subr.mxu0 %v249
    %1519 = vmatpush1.msra.mxu0 %v248
    %1520 = vmatprep.subr.mxu0 0.0
    %1521 = vmatpush1.msra.mxu0 0.0
    %1522 = vmatprep.subr.mxu0 0.0
    %1523 = vmatpush1.msra.mxu0 0.0
    %1524 = vmatprep.subr.mxu0 0.0
    %1525 = vmatpush1.msra.mxu0 0.0
    %1526 = vmatprep.subr.mxu0 0.0
    %1527 = vmatpush1.msra.mxu0 0.0
    %1528 = vmatprep.subr.mxu0 0.0
    %1529 = vmatpush1.msra.mxu0 0.0
    %1530 = vmatprep.subr.mxu0 0.0
    %1531 = vmatpush1.msra.mxu0 0.0
    %1532 = vmatprep.subr.mxu0 0.0
    %1533 = vmatpush1.msra.mxu0 0.0
    %1534 = vmatprep.subr.mxu0 0.0
    %1535 = vmatpush1.msra.mxu0 0.0
    %1536 = vmatprep.subr.mxu0 0.0
    %1537 = vmatpush1.msra.mxu0 0.0
    %1538 = vmatprep.subr.mxu0 0.0
    %1539 = vmatpush1.msra.mxu0 0.0
    %1540 = vmatprep.subr.mxu0 0.0
    %1541 = vmatpush1.msra.mxu0 0.0
    %1542 = vmatprep.subr.mxu0 0.0
    %1543 = vmatpush1.msra.mxu0 0.0
    %1544 = vmatprep.subr.mxu0 0.0
    %1545 = vmatpush1.msra.mxu0 0.0
    %1546 = vmatprep.subr.mxu0 0.0
    %1547 = vmatpush1.msra.mxu0 0.0
    %1548 = vmatprep.subr.mxu0 0.0
    %1549 = vmatpush1.msra.mxu0 0.0
    %1550 = vmatprep.subr.mxu0 0.0
    %1551 = vmatpush1.msra.mxu0 0.0
    %1552 = vmatprep.mubr.f32.mxu0 0.0
    %1553 = vmatmul.mubr.f32.gmra.mrb[0].mxu0 %v1411
    %v1554 = vpop.f32.mrb[0].mxu0
    %v1555 = vadd.f32 0.0, %v1554
    %v1556 = vpop.f32.mrb[0].mxu0
    %v1557 = vadd.f32 0.0, %v1556
    %1558 = vdwg.mxu0
    %v1559 = vadd.f32 %v1413, %v1484
    %v1560 = vadd.f32 %v1414, %v1486
    %v1561 = vadd.f32 %v1415, %v1555
    %v1562 = vadd.f32 %v1416, %v1557
    %v1563 = vxor.u32 %v1559, 2147483648
    %v1564 = vmul.f32 %v1563, 1.442695
    %v1565 = vpow.pop %v1564
    %v1566 = vadd.f32 %v1565, 1.0
    %v1567 = vrcp.pop %v1566
    %v1568 = vmul.f32 1.0, %v1567
    %v1569 = vxor.u32 %v1560, 2147483648
    %v1570 = vmul.f32 %v1569, 1.442695
    %v1571 = vpow.pop %v1570
    %v1572 = vadd.f32 %v1571, 1.0
    %v1573 = vrcp.pop %v1572
    %v1574 = vmul.f32 1.0, %v1573
    %v1575 = vtanh.pop %v1561
    %v1576 = vxor.u32 %v1562, 2147483648
    %v1577 = vmul.f32 %v1576, 1.442695
    %v1578 = vpow.pop %v1577
    %v1579 = vadd.f32 %v1578, 1.0
    %v1580 = vrcp.pop %v1579
    %v1581 = vmul.f32 1.0, %v1580
    %v1582 = vmul.f32 %v1574, %v1409
    %v1583 = vmul.f32 %v1568, %v1575
    %v1584 = vadd.f32 %v1582, %v1583
    %v1585 = vtanh.pop %v1584
    %v1586 = vmul.f32 %v1581, %v1585
    %1587 = vst [vmem:[#allocation3 + $0x28] sm:$0xff] %v1586
    %v1588 = vld [vmem:[#allocation2 + $0xc0] sm:$0xff]
    %v1589 = vld [vmem:[#allocation2 + $0xc8] sm:$0xff]
    %v1590 = vld [vmem:[#allocation2 + $0xd0] sm:$0xff]
    %v1591 = vld [vmem:[#allocation2 + $0xd8] sm:$0xff]
    %1592 = vmatprep.subr.mxu0 %v187
    %1593 = vmatpush1.msra.mxu0 %v186
    %1594 = vmatprep.subr.mxu0 %v191
    %1595 = vmatpush1.msra.mxu0 %v190
    %1596 = vmatprep.subr.mxu0 %v195
    %1597 = vmatpush1.msra.mxu0 %v194
    %1598 = vmatprep.subr.mxu0 %v199
    %1599 = vmatpush1.msra.mxu0 %v198
    %1600 = vmatprep.subr.mxu0 %v203
    %1601 = vmatpush1.msra.mxu0 %v202
    %1602 = vmatprep.subr.mxu0 %v207
    %1603 = vmatpush1.msra.mxu0 %v206
    %1604 = vmatprep.subr.mxu0 %v211
    %1605 = vmatpush1.msra.mxu0 %v210
    %1606 = vmatprep.subr.mxu0 %v215
    %1607 = vmatpush1.msra.mxu0 %v214
    %1608 = vmatprep.subr.mxu0 %v219
    %1609 = vmatpush1.msra.mxu0 %v218
    %1610 = vmatprep.subr.mxu0 %v223
    %1611 = vmatpush1.msra.mxu0 %v222
    %1612 = vmatprep.subr.mxu0 %v227
    %1613 = vmatpush1.msra.mxu0 %v226
    %1614 = vmatprep.subr.mxu0 %v231
    %1615 = vmatpush1.msra.mxu0 %v230
    %1616 = vmatprep.subr.mxu0 %v235
    %1617 = vmatpush1.msra.mxu0 %v234
    %1618 = vmatprep.subr.mxu0 %v239
    %1619 = vmatpush1.msra.mxu0 %v238
    %1620 = vmatprep.subr.mxu0 %v243
    %1621 = vmatpush1.msra.mxu0 %v242
    %1622 = vmatprep.subr.mxu0 %v247
    %1623 = vmatpush1.msra.mxu0 %v246
    %1624 = vmatprep.subr.mxu0 0.0
    %1625 = vmatpush1.msra.mxu0 0.0
    %1626 = vmatprep.subr.mxu0 0.0
    %1627 = vmatpush1.msra.mxu0 0.0
    %1628 = vmatprep.subr.mxu0 0.0
    %1629 = vmatpush1.msra.mxu0 0.0
    %1630 = vmatprep.subr.mxu0 0.0
    %1631 = vmatpush1.msra.mxu0 0.0
    %1632 = vmatprep.subr.mxu0 0.0
    %1633 = vmatpush1.msra.mxu0 0.0
    %1634 = vmatprep.subr.mxu0 0.0
    %1635 = vmatpush1.msra.mxu0 0.0
    %1636 = vmatprep.subr.mxu0 0.0
    %1637 = vmatpush1.msra.mxu0 0.0
    %1638 = vmatprep.subr.mxu0 0.0
    %1639 = vmatpush1.msra.mxu0 0.0
    %1640 = vmatprep.subr.mxu0 0.0
    %1641 = vmatpush1.msra.mxu0 0.0
    %1642 = vmatprep.subr.mxu0 0.0
    %1643 = vmatpush1.msra.mxu0 0.0
    %1644 = vmatprep.subr.mxu0 0.0
    %1645 = vmatpush1.msra.mxu0 0.0
    %1646 = vmatprep.subr.mxu0 0.0
    %1647 = vmatpush1.msra.mxu0 0.0
    %1648 = vmatprep.subr.mxu0 0.0
    %1649 = vmatpush1.msra.mxu0 0.0
    %1650 = vmatprep.subr.mxu0 0.0
    %1651 = vmatpush1.msra.mxu0 0.0
    %1652 = vmatprep.subr.mxu0 0.0
    %1653 = vmatpush1.msra.mxu0 0.0
    %1654 = vmatprep.subr.mxu0 0.0
    %1655 = vmatpush1.msra.mxu0 0.0
    %1656 = vmatprep.mubr.f32.mxu0 0.0
    %1657 = vmatmul.mubr.f32.gmra.mrb[0].mxu0 %v1586
    %v1658 = vpop.f32.mrb[0].mxu0
    %v1659 = vadd.f32 0.0, %v1658
    %v1660 = vpop.f32.mrb[0].mxu0
    %v1661 = vadd.f32 0.0, %v1660
    %1662 = vdwg.mxu0
    %1663 = vmatprep.subr.mxu0 %v189
    %1664 = vmatpush1.msra.mxu0 %v188
    %1665 = vmatprep.subr.mxu0 %v193
    %1666 = vmatpush1.msra.mxu0 %v192
    %1667 = vmatprep.subr.mxu0 %v197
    %1668 = vmatpush1.msra.mxu0 %v196
    %1669 = vmatprep.subr.mxu0 %v201
    %1670 = vmatpush1.msra.mxu0 %v200
    %1671 = vmatprep.subr.mxu0 %v205
    %1672 = vmatpush1.msra.mxu0 %v204
    %1673 = vmatprep.subr.mxu0 %v209
    %1674 = vmatpush1.msra.mxu0 %v208
    %1675 = vmatprep.subr.mxu0 %v213
    %1676 = vmatpush1.msra.mxu0 %v212
    %1677 = vmatprep.subr.mxu0 %v217
    %1678 = vmatpush1.msra.mxu0 %v216
    %1679 = vmatprep.subr.mxu0 %v221
    %1680 = vmatpush1.msra.mxu0 %v220
    %1681 = vmatprep.subr.mxu0 %v225
    %1682 = vmatpush1.msra.mxu0 %v224
    %1683 = vmatprep.subr.mxu0 %v229
    %1684 = vmatpush1.msra.mxu0 %v228
    %1685 = vmatprep.subr.mxu0 %v233
    %1686 = vmatpush1.msra.mxu0 %v232
    %1687 = vmatprep.subr.mxu0 %v237
    %1688 = vmatpush1.msra.mxu0 %v236
    %1689 = vmatprep.subr.mxu0 %v241
    %1690 = vmatpush1.msra.mxu0 %v240
    %1691 = vmatprep.subr.mxu0 %v245
    %1692 = vmatpush1.msra.mxu0 %v244
    %1693 = vmatprep.subr.mxu0 %v249
    %1694 = vmatpush1.msra.mxu0 %v248
    %1695 = vmatprep.subr.mxu0 0.0
    %1696 = vmatpush1.msra.mxu0 0.0
    %1697 = vmatprep.subr.mxu0 0.0
    %1698 = vmatpush1.msra.mxu0 0.0
    %1699 = vmatprep.subr.mxu0 0.0
    %1700 = vmatpush1.msra.mxu0 0.0
    %1701 = vmatprep.subr.mxu0 0.0
    %1702 = vmatpush1.msra.mxu0 0.0
    %1703 = vmatprep.subr.mxu0 0.0
    %1704 = vmatpush1.msra.mxu0 0.0
    %1705 = vmatprep.subr.mxu0 0.0
    %1706 = vmatpush1.msra.mxu0 0.0
    %1707 = vmatprep.subr.mxu0 0.0
    %1708 = vmatpush1.msra.mxu0 0.0
    %1709 = vmatprep.subr.mxu0 0.0
    %1710 = vmatpush1.msra.mxu0 0.0
    %1711 = vmatprep.subr.mxu0 0.0
    %1712 = vmatpush1.msra.mxu0 0.0
    %1713 = vmatprep.subr.mxu0 0.0
    %1714 = vmatpush1.msra.mxu0 0.0
    %1715 = vmatprep.subr.mxu0 0.0
    %1716 = vmatpush1.msra.mxu0 0.0
    %1717 = vmatprep.subr.mxu0 0.0
    %1718 = vmatpush1.msra.mxu0 0.0
    %1719 = vmatprep.subr.mxu0 0.0
    %1720 = vmatpush1.msra.mxu0 0.0
    %1721 = vmatprep.subr.mxu0 0.0
    %1722 = vmatpush1.msra.mxu0 0.0
    %1723 = vmatprep.subr.mxu0 0.0
    %1724 = vmatpush1.msra.mxu0 0.0
    %1725 = vmatprep.subr.mxu0 0.0
    %1726 = vmatpush1.msra.mxu0 0.0
    %1727 = vmatprep.mubr.f32.mxu0 0.0
    %1728 = vmatmul.mubr.f32.gmra.mrb[0].mxu0 %v1586
    %v1729 = vpop.f32.mrb[0].mxu0
    %v1730 = vadd.f32 0.0, %v1729
    %v1731 = vpop.f32.mrb[0].mxu0
    %v1732 = vadd.f32 0.0, %v1731
    %1733 = vdwg.mxu0
    %v1734 = vadd.f32 %v1588, %v1659
    %v1735 = vadd.f32 %v1589, %v1661
    %v1736 = vadd.f32 %v1590, %v1730
    %v1737 = vadd.f32 %v1591, %v1732
    %v1738 = vxor.u32 %v1734, 2147483648
    %v1739 = vmul.f32 %v1738, 1.442695
    %v1740 = vpow.pop %v1739
    %v1741 = vadd.f32 %v1740, 1.0
    %v1742 = vrcp.pop %v1741
    %v1743 = vmul.f32 1.0, %v1742
    %v1744 = vxor.u32 %v1735, 2147483648
    %v1745 = vmul.f32 %v1744, 1.442695
    %v1746 = vpow.pop %v1745
    %v1747 = vadd.f32 %v1746, 1.0
    %v1748 = vrcp.pop %v1747
    %v1749 = vmul.f32 1.0, %v1748
    %v1750 = vtanh.pop %v1736
    %v1751 = vxor.u32 %v1737, 2147483648
    %v1752 = vmul.f32 %v1751, 1.442695
    %v1753 = vpow.pop %v1752
    %v1754 = vadd.f32 %v1753, 1.0
    %v1755 = vrcp.pop %v1754
    %v1756 = vmul.f32 1.0, %v1755
    %v1757 = vmul.f32 %v1749, %v1584
    %v1758 = vmul.f32 %v1743, %v1750
    %v1759 = vadd.f32 %v1757, %v1758
    %v1760 = vtanh.pop %v1759
    %v1761 = vmul.f32 %v1756, %v1760
    %1762 = vst [vmem:[#allocation3 + $0x30] sm:$0xff] %v1761
    %v1763 = vld [vmem:[#allocation2 + $0xe0] sm:$0xff]
    %v1764 = vld [vmem:[#allocation2 + $0xe8] sm:$0xff]
    %v1765 = vld [vmem:[#allocation2 + $0xf0] sm:$0xff]
    %v1766 = vld [vmem:[#allocation2 + $0xf8] sm:$0xff]
    %1767 = vmatprep.subr.mxu0 %v187
    %1768 = vmatpush1.msra.mxu0 %v186
    %1769 = vmatprep.subr.mxu0 %v191
    %1770 = vmatpush1.msra.mxu0 %v190
    %1771 = vmatprep.subr.mxu0 %v195
    %1772 = vmatpush1.msra.mxu0 %v194
    %1773 = vmatprep.subr.mxu0 %v199
    %1774 = vmatpush1.msra.mxu0 %v198
    %1775 = vmatprep.subr.mxu0 %v203
    %1776 = vmatpush1.msra.mxu0 %v202
    %1777 = vmatprep.subr.mxu0 %v207
    %1778 = vmatpush1.msra.mxu0 %v206
    %1779 = vmatprep.subr.mxu0 %v211
    %1780 = vmatpush1.msra.mxu0 %v210
    %1781 = vmatprep.subr.mxu0 %v215
    %1782 = vmatpush1.msra.mxu0 %v214
    %1783 = vmatprep.subr.mxu0 %v219
    %1784 = vmatpush1.msra.mxu0 %v218
    %1785 = vmatprep.subr.mxu0 %v223
    %1786 = vmatpush1.msra.mxu0 %v222
    %1787 = vmatprep.subr.mxu0 %v227
    %1788 = vmatpush1.msra.mxu0 %v226
    %1789 = vmatprep.subr.mxu0 %v231
    %1790 = vmatpush1.msra.mxu0 %v230
    %1791 = vmatprep.subr.mxu0 %v235
    %1792 = vmatpush1.msra.mxu0 %v234
    %1793 = vmatprep.subr.mxu0 %v239
    %1794 = vmatpush1.msra.mxu0 %v238
    %1795 = vmatprep.subr.mxu0 %v243
    %1796 = vmatpush1.msra.mxu0 %v242
    %1797 = vmatprep.subr.mxu0 %v247
    %1798 = vmatpush1.msra.mxu0 %v246
    %1799 = vmatprep.subr.mxu0 0.0
    %1800 = vmatpush1.msra.mxu0 0.0
    %1801 = vmatprep.subr.mxu0 0.0
    %1802 = vmatpush1.msra.mxu0 0.0
    %1803 = vmatprep.subr.mxu0 0.0
    %1804 = vmatpush1.msra.mxu0 0.0
    %1805 = vmatprep.subr.mxu0 0.0
    %1806 = vmatpush1.msra.mxu0 0.0
    %1807 = vmatprep.subr.mxu0 0.0
    %1808 = vmatpush1.msra.mxu0 0.0
    %1809 = vmatprep.subr.mxu0 0.0
    %1810 = vmatpush1.msra.mxu0 0.0
    %1811 = vmatprep.subr.mxu0 0.0
    %1812 = vmatpush1.msra.mxu0 0.0
    %1813 = vmatprep.subr.mxu0 0.0
    %1814 = vmatpush1.msra.mxu0 0.0
    %1815 = vmatprep.subr.mxu0 0.0
    %1816 = vmatpush1.msra.mxu0 0.0
    %1817 = vmatprep.subr.mxu0 0.0
    %1818 = vmatpush1.msra.mxu0 0.0
    %1819 = vmatprep.subr.mxu0 0.0
    %1820 = vmatpush1.msra.mxu0 0.0
    %1821 = vmatprep.subr.mxu0 0.0
    %1822 = vmatpush1.msra.mxu0 0.0
    %1823 = vmatprep.subr.mxu0 0.0
    %1824 = vmatpush1.msra.mxu0 0.0
    %1825 = vmatprep.subr.mxu0 0.0
    %1826 = vmatpush1.msra.mxu0 0.0
    %1827 = vmatprep.subr.mxu0 0.0
    %1828 = vmatpush1.msra.mxu0 0.0
    %1829 = vmatprep.subr.mxu0 0.0
    %1830 = vmatpush1.msra.mxu0 0.0
    %1831 = vmatprep.mubr.f32.mxu0 0.0
    %1832 = vmatmul.mubr.f32.gmra.mrb[0].mxu0 %v1761
    %v1833 = vpop.f32.mrb[0].mxu0
    %v1834 = vadd.f32 0.0, %v1833
    %v1835 = vpop.f32.mrb[0].mxu0
    %v1836 = vadd.f32 0.0, %v1835
    %1837 = vdwg.mxu0
    %1838 = vmatprep.subr.mxu0 %v189
    %1839 = vmatpush1.msra.mxu0 %v188
    %1840 = vmatprep.subr.mxu0 %v193
    %1841 = vmatpush1.msra.mxu0 %v192
    %1842 = vmatprep.subr.mxu0 %v197
    %1843 = vmatpush1.msra.mxu0 %v196
    %1844 = vmatprep.subr.mxu0 %v201
    %1845 = vmatpush1.msra.mxu0 %v200
    %1846 = vmatprep.subr.mxu0 %v205
    %1847 = vmatpush1.msra.mxu0 %v204
    %1848 = vmatprep.subr.mxu0 %v209
    %1849 = vmatpush1.msra.mxu0 %v208
    %1850 = vmatprep.subr.mxu0 %v213
    %1851 = vmatpush1.msra.mxu0 %v212
    %1852 = vmatprep.subr.mxu0 %v217
    %1853 = vmatpush1.msra.mxu0 %v216
    %1854 = vmatprep.subr.mxu0 %v221
    %1855 = vmatpush1.msra.mxu0 %v220
    %1856 = vmatprep.subr.mxu0 %v225
    %1857 = vmatpush1.msra.mxu0 %v224
    %1858 = vmatprep.subr.mxu0 %v229
    %1859 = vmatpush1.msra.mxu0 %v228
    %1860 = vmatprep.subr.mxu0 %v233
    %1861 = vmatpush1.msra.mxu0 %v232
    %1862 = vmatprep.subr.mxu0 %v237
    %1863 = vmatpush1.msra.mxu0 %v236
    %1864 = vmatprep.subr.mxu0 %v241
    %1865 = vmatpush1.msra.mxu0 %v240
    %1866 = vmatprep.subr.mxu0 %v245
    %1867 = vmatpush1.msra.mxu0 %v244
    %1868 = vmatprep.subr.mxu0 %v249
    %1869 = vmatpush1.msra.mxu0 %v248
    %1870 = vmatprep.subr.mxu0 0.0
    %1871 = vmatpush1.msra.mxu0 0.0
    %1872 = vmatprep.subr.mxu0 0.0
    %1873 = vmatpush1.msra.mxu0 0.0
    %1874 = vmatprep.subr.mxu0 0.0
    %1875 = vmatpush1.msra.mxu0 0.0
    %1876 = vmatprep.subr.mxu0 0.0
    %1877 = vmatpush1.msra.mxu0 0.0
    %1878 = vmatprep.subr.mxu0 0.0
    %1879 = vmatpush1.msra.mxu0 0.0
    %1880 = vmatprep.subr.mxu0 0.0
    %1881 = vmatpush1.msra.mxu0 0.0
    %1882 = vmatprep.subr.mxu0 0.0
    %1883 = vmatpush1.msra.mxu0 0.0
    %1884 = vmatprep.subr.mxu0 0.0
    %1885 = vmatpush1.msra.mxu0 0.0
    %1886 = vmatprep.subr.mxu0 0.0
    %1887 = vmatpush1.msra.mxu0 0.0
    %1888 = vmatprep.subr.mxu0 0.0
    %1889 = vmatpush1.msra.mxu0 0.0
    %1890 = vmatprep.subr.mxu0 0.0
    %1891 = vmatpush1.msra.mxu0 0.0
    %1892 = vmatprep.subr.mxu0 0.0
    %1893 = vmatpush1.msra.mxu0 0.0
    %1894 = vmatprep.subr.mxu0 0.0
    %1895 = vmatpush1.msra.mxu0 0.0
    %1896 = vmatprep.subr.mxu0 0.0
    %1897 = vmatpush1.msra.mxu0 0.0
    %1898 = vmatprep.subr.mxu0 0.0
    %1899 = vmatpush1.msra.mxu0 0.0
    %1900 = vmatprep.subr.mxu0 0.0
    %1901 = vmatpush1.msra.mxu0 0.0
    %1902 = vmatprep.mubr.f32.mxu0 0.0
    %1903 = vmatmul.mubr.f32.gmra.mrb[0].mxu0 %v1761
    %v1904 = vpop.f32.mrb[0].mxu0
    %v1905 = vadd.f32 0.0, %v1904
    %v1906 = vpop.f32.mrb[0].mxu0
    %v1907 = vadd.f32 0.0, %v1906
    %1908 = vdwg.mxu0
    %v1909 = vadd.f32 %v1763, %v1834
    %v1910 = vadd.f32 %v1764, %v1836
    %v1911 = vadd.f32 %v1765, %v1905
    %v1912 = vadd.f32 %v1766, %v1907
    %v1913 = vxor.u32 %v1909, 2147483648
    %v1914 = vmul.f32 %v1913, 1.442695
    %v1915 = vpow.pop %v1914
    %v1916 = vadd.f32 %v1915, 1.0
    %v1917 = vrcp.pop %v1916
    %v1918 = vmul.f32 1.0, %v1917
    %v1919 = vxor.u32 %v1910, 2147483648
    %v1920 = vmul.f32 %v1919, 1.442695
    %v1921 = vpow.pop %v1920
    %v1922 = vadd.f32 %v1921, 1.0
    %v1923 = vrcp.pop %v1922
    %v1924 = vmul.f32 1.0, %v1923
    %v1925 = vtanh.pop %v1911
    %v1926 = vxor.u32 %v1912, 2147483648
    %v1927 = vmul.f32 %v1926, 1.442695
    %v1928 = vpow.pop %v1927
    %v1929 = vadd.f32 %v1928, 1.0
    %v1930 = vrcp.pop %v1929
    %v1931 = vmul.f32 1.0, %v1930
    %v1932 = vmul.f32 %v1924, %v1759
    %v1933 = vmul.f32 %v1918, %v1925
    %v1934 = vadd.f32 %v1932, %v1933
    %v1935 = vtanh.pop %v1934
    %v1936 = vmul.f32 %v1931, %v1935
    %1937 = vst [vmem:[#allocation3 + $0x38] sm:$0xff] %v1936
    %1938 = vst [vmem:[%s11] sm:$0xff] %v1936
    %v1939 = vld [vmem:[#allocation8] sm:$0xff]
    %v1940 = vld [vmem:[#allocation8 + $0x8] sm:$0xff]
    %v1941 = vld [vmem:[#allocation8 + $0x10] sm:$0xff]
    %v1942 = vld [vmem:[#allocation8 + $0x18] sm:$0xff]
    %v1943 = vld [vmem:[#allocation8 + $0x20] sm:$0xff]
    %v1944 = vld [vmem:[#allocation8 + $0x28] sm:$0xff]
    %v1945 = vld [vmem:[#allocation8 + $0x30] sm:$0xff]
    %v1946 = vld [vmem:[#allocation8 + $0x38] sm:$0xff]
    %v1947 = vld [vmem:[#allocation8 + $0x40] sm:$0xff]
    %v1948 = vld [vmem:[#allocation8 + $0x48] sm:$0xff]
    %v1949 = vld [vmem:[#allocation8 + $0x50] sm:$0xff]
    %v1950 = vld [vmem:[#allocation8 + $0x58] sm:$0xff]
    %v1951 = vld [vmem:[#allocation8 + $0x60] sm:$0xff]
    %v1952 = vld [vmem:[#allocation8 + $0x68] sm:$0xff]
    %v1953 = vld [vmem:[#allocation8 + $0x70] sm:$0xff]
    %v1954 = vld [vmem:[#allocation8 + $0x78] sm:$0xff]
    %v1955 = vld [vmem:[#allocation8 + $0x80] sm:$0xff]
    %v1956 = vld [vmem:[#allocation8 + $0x88] sm:$0xff]
    %v1957 = vld [vmem:[#allocation8 + $0x90] sm:$0xff]
    %v1958 = vld [vmem:[#allocation8 + $0x98] sm:$0xff]
    %v1959 = vld [vmem:[#allocation8 + $0xa0] sm:$0xff]
    %v1960 = vld [vmem:[#allocation8 + $0xa8] sm:$0xff]
    %v1961 = vld [vmem:[#allocation8 + $0xb0] sm:$0xff]
    %v1962 = vld [vmem:[#allocation8 + $0xb8] sm:$0xff]
    %v1963 = vld [vmem:[#allocation8 + $0xc0] sm:$0xff]
    %v1964 = vld [vmem:[#allocation8 + $0xc8] sm:$0xff]
    %v1965 = vld [vmem:[#allocation8 + $0xd0] sm:$0xff]
    %v1966 = vld [vmem:[#allocation8 + $0xd8] sm:$0xff]
    %v1967 = vld [vmem:[#allocation8 + $0xe0] sm:$0xff]
    %v1968 = vld [vmem:[#allocation8 + $0xe8] sm:$0xff]
    %v1969 = vld [vmem:[#allocation8 + $0xf0] sm:$0xff]
    %v1970 = vld [vmem:[#allocation8 + $0xf8] sm:$0xff]
    %v1971 = vld [vmem:[#allocation8 + $0x100] sm:$0xff]
    %v1972 = vld [vmem:[#allocation8 + $0x108] sm:$0xff]
    %v1973 = vld [vmem:[#allocation8 + $0x110] sm:$0xff]
    %v1974 = vld [vmem:[#allocation8 + $0x118] sm:$0xff]
    %v1975 = vld [vmem:[#allocation8 + $0x120] sm:$0xff]
    %v1976 = vld [vmem:[#allocation8 + $0x128] sm:$0xff]
    %v1977 = vld [vmem:[#allocation8 + $0x130] sm:$0xff]
    %v1978 = vld [vmem:[#allocation8 + $0x138] sm:$0xff]
    %v1979 = vld [vmem:[#allocation8 + $0x140] sm:$0xff]
    %v1980 = vld [vmem:[#allocation8 + $0x148] sm:$0xff]
    %v1981 = vld [vmem:[#allocation8 + $0x150] sm:$0xff]
    %v1982 = vld [vmem:[#allocation8 + $0x158] sm:$0xff]
    %v1983 = vld [vmem:[#allocation8 + $0x160] sm:$0xff]
    %v1984 = vld [vmem:[#allocation8 + $0x168] sm:$0xff]
    %v1985 = vld [vmem:[#allocation8 + $0x170] sm:$0xff]
    %v1986 = vld [vmem:[#allocation8 + $0x178] sm:$0xff]
    %v1987 = vld [vmem:[#allocation8 + $0x180] sm:$0xff]
    %v1988 = vld [vmem:[#allocation8 + $0x188] sm:$0xff]
    %v1989 = vld [vmem:[#allocation8 + $0x190] sm:$0xff]
    %v1990 = vld [vmem:[#allocation8 + $0x198] sm:$0xff]
    %v1991 = vld [vmem:[#allocation8 + $0x1a0] sm:$0xff]
    %v1992 = vld [vmem:[#allocation8 + $0x1a8] sm:$0xff]
    %v1993 = vld [vmem:[#allocation8 + $0x1b0] sm:$0xff]
    %v1994 = vld [vmem:[#allocation8 + $0x1b8] sm:$0xff]
    %v1995 = vld [vmem:[#allocation8 + $0x1c0] sm:$0xff]
    %v1996 = vld [vmem:[#allocation8 + $0x1c8] sm:$0xff]
    %v1997 = vld [vmem:[#allocation8 + $0x1d0] sm:$0xff]
    %v1998 = vld [vmem:[#allocation8 + $0x1d8] sm:$0xff]
    %v1999 = vld [vmem:[#allocation8 + $0x1e0] sm:$0xff]
    %v2000 = vld [vmem:[#allocation8 + $0x1e8] sm:$0xff]
    %v2001 = vld [vmem:[#allocation8 + $0x1f0] sm:$0xff]
    %v2002 = vld [vmem:[#allocation8 + $0x1f8] sm:$0xff]
    %v2003 = vld [vmem:[#allocation9] sm:$0xff]
    %v2004 = vld [vmem:[#allocation9 + $0x8] sm:$0xff]
    %v2005 = vld [vmem:[#allocation9 + $0x10] sm:$0xff]
    %v2006 = vld [vmem:[#allocation9 + $0x18] sm:$0xff]
    %v2007 = vld [vmem:[#allocation9 + $0x20] sm:$0xff]
    %v2008 = vld [vmem:[#allocation9 + $0x28] sm:$0xff]
    %v2009 = vld [vmem:[#allocation9 + $0x30] sm:$0xff]
    %v2010 = vld [vmem:[#allocation9 + $0x38] sm:$0xff]
    %v2011 = vld [vmem:[#allocation9 + $0x40] sm:$0xff]
    %v2012 = vld [vmem:[#allocation9 + $0x48] sm:$0xff]
    %v2013 = vld [vmem:[#allocation9 + $0x50] sm:$0xff]
    %v2014 = vld [vmem:[#allocation9 + $0x58] sm:$0xff]
    %v2015 = vld [vmem:[#allocation9 + $0x60] sm:$0xff]
    %v2016 = vld [vmem:[#allocation9 + $0x68] sm:$0xff]
    %v2017 = vld [vmem:[#allocation9 + $0x70] sm:$0xff]
    %v2018 = vld [vmem:[#allocation9 + $0x78] sm:$0xff]
    %v2019 = vld [vmem:[#allocation9 + $0x80] sm:$0xff]
    %v2020 = vld [vmem:[#allocation9 + $0x88] sm:$0xff]
    %v2021 = vld [vmem:[#allocation9 + $0x90] sm:$0xff]
    %v2022 = vld [vmem:[#allocation9 + $0x98] sm:$0xff]
    %v2023 = vld [vmem:[#allocation9 + $0xa0] sm:$0xff]
    %v2024 = vld [vmem:[#allocation9 + $0xa8] sm:$0xff]
    %v2025 = vld [vmem:[#allocation9 + $0xb0] sm:$0xff]
    %v2026 = vld [vmem:[#allocation9 + $0xb8] sm:$0xff]
    %v2027 = vld [vmem:[#allocation9 + $0xc0] sm:$0xff]
    %v2028 = vld [vmem:[#allocation9 + $0xc8] sm:$0xff]
    %v2029 = vld [vmem:[#allocation9 + $0xd0] sm:$0xff]
    %v2030 = vld [vmem:[#allocation9 + $0xd8] sm:$0xff]
    %v2031 = vld [vmem:[#allocation9 + $0xe0] sm:$0xff]
    %v2032 = vld [vmem:[#allocation9 + $0xe8] sm:$0xff]
    %v2033 = vld [vmem:[#allocation9 + $0xf0] sm:$0xff]
    %v2034 = vld [vmem:[#allocation9 + $0xf8] sm:$0xff]
    %v2035 = vld [vmem:[#allocation9 + $0x100] sm:$0xff]
    %v2036 = vld [vmem:[#allocation9 + $0x108] sm:$0xff]
    %v2037 = vld [vmem:[#allocation9 + $0x110] sm:$0xff]
    %v2038 = vld [vmem:[#allocation9 + $0x118] sm:$0xff]
    %v2039 = vld [vmem:[#allocation9 + $0x120] sm:$0xff]
    %v2040 = vld [vmem:[#allocation9 + $0x128] sm:$0xff]
    %v2041 = vld [vmem:[#allocation9 + $0x130] sm:$0xff]
    %v2042 = vld [vmem:[#allocation9 + $0x138] sm:$0xff]
    %v2043 = vld [vmem:[#allocation9 + $0x140] sm:$0xff]
    %v2044 = vld [vmem:[#allocation9 + $0x148] sm:$0xff]
    %v2045 = vld [vmem:[#allocation9 + $0x150] sm:$0xff]
    %v2046 = vld [vmem:[#allocation9 + $0x158] sm:$0xff]
    %v2047 = vld [vmem:[#allocation9 + $0x160] sm:$0xff]
    %v2048 = vld [vmem:[#allocation9 + $0x168] sm:$0xff]
    %v2049 = vld [vmem:[#allocation9 + $0x170] sm:$0xff]
    %v2050 = vld [vmem:[#allocation9 + $0x178] sm:$0xff]
    %v2051 = vld [vmem:[#allocation9 + $0x180] sm:$0xff]
    %v2052 = vld [vmem:[#allocation9 + $0x188] sm:$0xff]
    %v2053 = vld [vmem:[#allocation9 + $0x190] sm:$0xff]
    %v2054 = vld [vmem:[#allocation9 + $0x198] sm:$0xff]
    %v2055 = vld [vmem:[#allocation9 + $0x1a0] sm:$0xff]
    %v2056 = vld [vmem:[#allocation9 + $0x1a8] sm:$0xff]
    %v2057 = vld [vmem:[#allocation9 + $0x1b0] sm:$0xff]
    %v2058 = vld [vmem:[#allocation9 + $0x1b8] sm:$0xff]
    %v2059 = vld [vmem:[#allocation9 + $0x1c0] sm:$0xff]
    %v2060 = vld [vmem:[#allocation9 + $0x1c8] sm:$0xff]
    %v2061 = vld [vmem:[#allocation9 + $0x1d0] sm:$0xff]
    %v2062 = vld [vmem:[#allocation9 + $0x1d8] sm:$0xff]
    %v2063 = vld [vmem:[#allocation9 + $0x1e0] sm:$0xff]
    %v2064 = vld [vmem:[#allocation9 + $0x1e8] sm:$0xff]
    %v2065 = vld [vmem:[#allocation9 + $0x1f0] sm:$0xff]
    %v2066 = vld [vmem:[#allocation9 + $0x1f8] sm:$0xff]
    %v2067 = vld [vmem:[%s6] sm:$0xf]
    %v2068 = vld [vmem:[#allocation3] sm:$0xff]
    %v2069 = vld [vmem:[#allocation3 + $0x8] sm:$0xff]
    %v2070 = vld [vmem:[#allocation3 + $0x10] sm:$0xff]
    %v2071 = vld [vmem:[#allocation3 + $0x18] sm:$0xff]
    %v2072 = vld [vmem:[#allocation3 + $0x20] sm:$0xff]
    %v2073 = vld [vmem:[#allocation3 + $0x28] sm:$0xff]
    %v2074 = vld [vmem:[#allocation3 + $0x30] sm:$0xff]
    %v2075 = vld [vmem:[#allocation3 + $0x38] sm:$0xff]
    %v2077 = vlaneseq
    %v2078 = vshrl.u32 %v2077, 7
    %v2079 = vsub.s32 0, %v2078
    %v2080 = vrot.slane %v2067, %v2079
    %v2081 = vlaneseq
    %v2082 = vshrl.u32 %v2081, 7
    %v2083 = vsub.s32 1, %v2082
    %v2084 = vrot.slane %v2067, %v2083
    %v2085 = vlaneseq
    %v2086 = vshrl.u32 %v2085, 7
    %v2087 = vsub.s32 2, %v2086
    %v2088 = vrot.slane %v2067, %v2087
    %v2089 = vlaneseq
    %v2090 = vshrl.u32 %v2089, 7
    %v2091 = vsub.s32 3, %v2090
    %v2092 = vrot.slane %v2067, %v2091
    %2097 = vmatprep.subr.mxu0 %v1940
    %2098 = vmatpush1.msra.mxu0 %v1939
    %2099 = vmatprep.subr.mxu0 %v1944
    %2100 = vmatpush1.msra.mxu0 %v1943
    %2101 = vmatprep.subr.mxu0 %v1948
    %2102 = vmatpush1.msra.mxu0 %v1947
    %2103 = vmatprep.subr.mxu0 %v1952
    %2104 = vmatpush1.msra.mxu0 %v1951
    %2105 = vmatprep.subr.mxu0 %v1956
    %2106 = vmatpush1.msra.mxu0 %v1955
    %2107 = vmatprep.subr.mxu0 %v1960
    %2108 = vmatpush1.msra.mxu0 %v1959
    %2109 = vmatprep.subr.mxu0 %v1964
    %2110 = vmatpush1.msra.mxu0 %v1963
    %2111 = vmatprep.subr.mxu0 %v1968
    %2112 = vmatpush1.msra.mxu0 %v1967
    %2113 = vmatprep.subr.mxu0 %v1972
    %2114 = vmatpush1.msra.mxu0 %v1971
    %2115 = vmatprep.subr.mxu0 %v1976
    %2116 = vmatpush1.msra.mxu0 %v1975
    %2117 = vmatprep.subr.mxu0 %v1980
    %2118 = vmatpush1.msra.mxu0 %v1979
    %2119 = vmatprep.subr.mxu0 %v1984
    %2120 = vmatpush1.msra.mxu0 %v1983
    %2121 = vmatprep.subr.mxu0 %v1988
    %2122 = vmatpush1.msra.mxu0 %v1987
    %2123 = vmatprep.subr.mxu0 %v1992
    %2124 = vmatpush1.msra.mxu0 %v1991
    %2125 = vmatprep.subr.mxu0 %v1996
    %2126 = vmatpush1.msra.mxu0 %v1995
    %2127 = vmatprep.subr.mxu0 %v2000
    %2128 = vmatpush1.msra.mxu0 %v1999
    %2129 = vmatprep.subr.mxu0 0.0
    %2130 = vmatpush1.msra.mxu0 0.0
    %2131 = vmatprep.subr.mxu0 0.0
    %2132 = vmatpush1.msra.mxu0 0.0
    %2133 = vmatprep.subr.mxu0 0.0
    %2134 = vmatpush1.msra.mxu0 0.0
    %2135 = vmatprep.subr.mxu0 0.0
    %2136 = vmatpush1.msra.mxu0 0.0
    %2137 = vmatprep.subr.mxu0 0.0
    %2138 = vmatpush1.msra.mxu0 0.0
    %2139 = vmatprep.subr.mxu0 0.0
    %2140 = vmatpush1.msra.mxu0 0.0
    %2141 = vmatprep.subr.mxu0 0.0
    %2142 = vmatpush1.msra.mxu0 0.0
    %2143 = vmatprep.subr.mxu0 0.0
    %2144 = vmatpush1.msra.mxu0 0.0
    %2145 = vmatprep.subr.mxu0 0.0
    %2146 = vmatpush1.msra.mxu0 0.0
    %2147 = vmatprep.subr.mxu0 0.0
    %2148 = vmatpush1.msra.mxu0 0.0
    %2149 = vmatprep.subr.mxu0 0.0
    %2150 = vmatpush1.msra.mxu0 0.0
    %2151 = vmatprep.subr.mxu0 0.0
    %2152 = vmatpush1.msra.mxu0 0.0
    %2153 = vmatprep.subr.mxu0 0.0
    %2154 = vmatpush1.msra.mxu0 0.0
    %2155 = vmatprep.subr.mxu0 0.0
    %2156 = vmatpush1.msra.mxu0 0.0
    %2157 = vmatprep.subr.mxu0 0.0
    %2158 = vmatpush1.msra.mxu0 0.0
    %2159 = vmatprep.subr.mxu0 0.0
    %2160 = vmatpush1.msra.mxu0 0.0
    %2161 = vmatprep.mubr.f32.mxu0 0.0
    %2162 = vmatmul.mubr.f32.gmra.mrb[0].mxu0 %v2068
    %v2163 = vpop.f32.mrb[0].mxu0
    %v2164 = vadd.f32 %v2080, %v2163
    %v2165 = vpop.f32.mrb[0].mxu0
    %v2166 = vadd.f32 %v2084, %v2165
    %2167 = vmatprep.mubr.f32.mxu0 0.0
    %2168 = vmatmul.mubr.f32.gmra.mrb[0].mxu0 %v2069
    %v2169 = vpop.f32.mrb[0].mxu0
    %v2170 = vadd.f32 %v2080, %v2169
    %v2171 = vpop.f32.mrb[0].mxu0
    %v2172 = vadd.f32 %v2084, %v2171
    %2173 = vmatprep.mubr.f32.mxu0 0.0
    %2174 = vmatmul.mubr.f32.gmra.mrb[0].mxu0 %v2070
    %v2175 = vpop.f32.mrb[0].mxu0
    %v2176 = vadd.f32 %v2080, %v2175
    %v2177 = vpop.f32.mrb[0].mxu0
    %v2178 = vadd.f32 %v2084, %v2177
    %2179 = vmatprep.mubr.f32.mxu0 0.0
    %2180 = vmatmul.mubr.f32.gmra.mrb[0].mxu0 %v2071
    %v2181 = vpop.f32.mrb[0].mxu0
    %v2182 = vadd.f32 %v2080, %v2181
    %v2183 = vpop.f32.mrb[0].mxu0
    %v2184 = vadd.f32 %v2084, %v2183
    %2185 = vmatprep.mubr.f32.mxu0 0.0
    %2186 = vmatmul.mubr.f32.gmra.mrb[0].mxu0 %v2072
    %v2187 = vpop.f32.mrb[0].mxu0
    %v2188 = vadd.f32 %v2080, %v2187
    %v2189 = vpop.f32.mrb[0].mxu0
    %v2190 = vadd.f32 %v2084, %v2189
    %2191 = vmatprep.mubr.f32.mxu0 0.0
    %2192 = vmatmul.mubr.f32.gmra.mrb[0].mxu0 %v2073
    %v2193 = vpop.f32.mrb[0].mxu0
    %v2194 = vadd.f32 %v2080, %v2193
    %v2195 = vpop.f32.mrb[0].mxu0
    %v2196 = vadd.f32 %v2084, %v2195
    %2197 = vmatprep.mubr.f32.mxu0 0.0
    %2198 = vmatmul.mubr.f32.gmra.mrb[0].mxu0 %v2074
    %v2199 = vpop.f32.mrb[0].mxu0
    %v2200 = vadd.f32 %v2080, %v2199
    %v2201 = vpop.f32.mrb[0].mxu0
    %v2202 = vadd.f32 %v2084, %v2201
    %2203 = vmatprep.mubr.f32.mxu0 0.0
    %2204 = vmatmul.mubr.f32.gmra.mrb[0].mxu0 %v2075
    %v2205 = vpop.f32.mrb[0].mxu0
    %v2206 = vadd.f32 %v2080, %v2205
    %v2207 = vpop.f32.mrb[0].mxu0
    %v2208 = vadd.f32 %v2084, %v2207
    %2209 = vdwg.mxu0
    %2210 = vmatprep.subr.mxu0 %v1942
    %2211 = vmatpush1.msra.mxu0 %v1941
    %2212 = vmatprep.subr.mxu0 %v1946
    %2213 = vmatpush1.msra.mxu0 %v1945
    %2214 = vmatprep.subr.mxu0 %v1950
    %2215 = vmatpush1.msra.mxu0 %v1949
    %2216 = vmatprep.subr.mxu0 %v1954
    %2217 = vmatpush1.msra.mxu0 %v1953
    %2218 = vmatprep.subr.mxu0 %v1958
    %2219 = vmatpush1.msra.mxu0 %v1957
    %2220 = vmatprep.subr.mxu0 %v1962
    %2221 = vmatpush1.msra.mxu0 %v1961
    %2222 = vmatprep.subr.mxu0 %v1966
    %2223 = vmatpush1.msra.mxu0 %v1965
    %2224 = vmatprep.subr.mxu0 %v1970
    %2225 = vmatpush1.msra.mxu0 %v1969
    %2226 = vmatprep.subr.mxu0 %v1974
    %2227 = vmatpush1.msra.mxu0 %v1973
    %2228 = vmatprep.subr.mxu0 %v1978
    %2229 = vmatpush1.msra.mxu0 %v1977
    %2230 = vmatprep.subr.mxu0 %v1982
    %2231 = vmatpush1.msra.mxu0 %v1981
    %2232 = vmatprep.subr.mxu0 %v1986
    %2233 = vmatpush1.msra.mxu0 %v1985
    %2234 = vmatprep.subr.mxu0 %v1990
    %2235 = vmatpush1.msra.mxu0 %v1989
    %2236 = vmatprep.subr.mxu0 %v1994
    %2237 = vmatpush1.msra.mxu0 %v1993
    %2238 = vmatprep.subr.mxu0 %v1998
    %2239 = vmatpush1.msra.mxu0 %v1997
    %2240 = vmatprep.subr.mxu0 %v2002
    %2241 = vmatpush1.msra.mxu0 %v2001
    %2242 = vmatprep.subr.mxu0 0.0
    %2243 = vmatpush1.msra.mxu0 0.0
    %2244 = vmatprep.subr.mxu0 0.0
    %2245 = vmatpush1.msra.mxu0 0.0
    %2246 = vmatprep.subr.mxu0 0.0
    %2247 = vmatpush1.msra.mxu0 0.0
    %2248 = vmatprep.subr.mxu0 0.0
    %2249 = vmatpush1.msra.mxu0 0.0
    %2250 = vmatprep.subr.mxu0 0.0
    %2251 = vmatpush1.msra.mxu0 0.0
    %2252 = vmatprep.subr.mxu0 0.0
    %2253 = vmatpush1.msra.mxu0 0.0
    %2254 = vmatprep.subr.mxu0 0.0
    %2255 = vmatpush1.msra.mxu0 0.0
    %2256 = vmatprep.subr.mxu0 0.0
    %2257 = vmatpush1.msra.mxu0 0.0
    %2258 = vmatprep.subr.mxu0 0.0
    %2259 = vmatpush1.msra.mxu0 0.0
    %2260 = vmatprep.subr.mxu0 0.0
    %2261 = vmatpush1.msra.mxu0 0.0
    %2262 = vmatprep.subr.mxu0 0.0
    %2263 = vmatpush1.msra.mxu0 0.0
    %2264 = vmatprep.subr.mxu0 0.0
    %2265 = vmatpush1.msra.mxu0 0.0
    %2266 = vmatprep.subr.mxu0 0.0
    %2267 = vmatpush1.msra.mxu0 0.0
    %2268 = vmatprep.subr.mxu0 0.0
    %2269 = vmatpush1.msra.mxu0 0.0
    %2270 = vmatprep.subr.mxu0 0.0
    %2271 = vmatpush1.msra.mxu0 0.0
    %2272 = vmatprep.subr.mxu0 0.0
    %2273 = vmatpush1.msra.mxu0 0.0
    %2274 = vmatprep.mubr.f32.mxu0 0.0
    %2275 = vmatmul.mubr.f32.gmra.mrb[0].mxu0 %v2068
    %v2276 = vpop.f32.mrb[0].mxu0
    %v2277 = vadd.f32 %v2088, %v2276
    %v2278 = vpop.f32.mrb[0].mxu0
    %v2279 = vadd.f32 %v2092, %v2278
    %2280 = vmatprep.mubr.f32.mxu0 0.0
    %2281 = vmatmul.mubr.f32.gmra.mrb[0].mxu0 %v2069
    %v2282 = vpop.f32.mrb[0].mxu0
    %v2283 = vadd.f32 %v2088, %v2282
    %v2284 = vpop.f32.mrb[0].mxu0
    %v2285 = vadd.f32 %v2092, %v2284
    %2286 = vmatprep.mubr.f32.mxu0 0.0
    %2287 = vmatmul.mubr.f32.gmra.mrb[0].mxu0 %v2070
    %v2288 = vpop.f32.mrb[0].mxu0
    %v2289 = vadd.f32 %v2088, %v2288
    %v2290 = vpop.f32.mrb[0].mxu0
    %v2291 = vadd.f32 %v2092, %v2290
    %2292 = vmatprep.mubr.f32.mxu0 0.0
    %2293 = vmatmul.mubr.f32.gmra.mrb[0].mxu0 %v2071
    %v2294 = vpop.f32.mrb[0].mxu0
    %v2295 = vadd.f32 %v2088, %v2294
    %v2296 = vpop.f32.mrb[0].mxu0
    %v2297 = vadd.f32 %v2092, %v2296
    %2298 = vmatprep.mubr.f32.mxu0 0.0
    %2299 = vmatmul.mubr.f32.gmra.mrb[0].mxu0 %v2072
    %v2300 = vpop.f32.mrb[0].mxu0
    %v2301 = vadd.f32 %v2088, %v2300
    %v2302 = vpop.f32.mrb[0].mxu0
    %v2303 = vadd.f32 %v2092, %v2302
    %2304 = vmatprep.mubr.f32.mxu0 0.0
    %2305 = vmatmul.mubr.f32.gmra.mrb[0].mxu0 %v2073
    %v2306 = vpop.f32.mrb[0].mxu0
    %v2307 = vadd.f32 %v2088, %v2306
    %v2308 = vpop.f32.mrb[0].mxu0
    %v2309 = vadd.f32 %v2092, %v2308
    %2310 = vmatprep.mubr.f32.mxu0 0.0
    %2311 = vmatmul.mubr.f32.gmra.mrb[0].mxu0 %v2074
    %v2312 = vpop.f32.mrb[0].mxu0
    %v2313 = vadd.f32 %v2088, %v2312
    %v2314 = vpop.f32.mrb[0].mxu0
    %v2315 = vadd.f32 %v2092, %v2314
    %2316 = vmatprep.mubr.f32.mxu0 0.0
    %2317 = vmatmul.mubr.f32.gmra.mrb[0].mxu0 %v2075
    %v2318 = vpop.f32.mrb[0].mxu0
    %v2319 = vadd.f32 %v2088, %v2318
    %v2320 = vpop.f32.mrb[0].mxu0
    %v2321 = vadd.f32 %v2092, %v2320
    %2322 = vdwg.mxu0
    %2323 = vst [vmem:[#allocation2] sm:$0xff] %v2164
    %2324 = vst [vmem:[#allocation2 + $0x8] sm:$0xff] %v2166
    %2325 = vst [vmem:[#allocation2 + $0x10] sm:$0xff] %v2277
    %2326 = vst [vmem:[#allocation2 + $0x18] sm:$0xff] %v2279
    %2327 = vst [vmem:[#allocation2 + $0x20] sm:$0xff] %v2170
    %2328 = vst [vmem:[#allocation2 + $0x28] sm:$0xff] %v2172
    %2329 = vst [vmem:[#allocation2 + $0x30] sm:$0xff] %v2283
    %2330 = vst [vmem:[#allocation2 + $0x38] sm:$0xff] %v2285
    %2331 = vst [vmem:[#allocation2 + $0x40] sm:$0xff] %v2176
    %2332 = vst [vmem:[#allocation2 + $0x48] sm:$0xff] %v2178
    %2333 = vst [vmem:[#allocation2 + $0x50] sm:$0xff] %v2289
    %2334 = vst [vmem:[#allocation2 + $0x58] sm:$0xff] %v2291
    %2335 = vst [vmem:[#allocation2 + $0x60] sm:$0xff] %v2182
    %2336 = vst [vmem:[#allocation2 + $0x68] sm:$0xff] %v2184
    %2337 = vst [vmem:[#allocation2 + $0x70] sm:$0xff] %v2295
    %2338 = vst [vmem:[#allocation2 + $0x78] sm:$0xff] %v2297
    %2339 = vst [vmem:[#allocation2 + $0x80] sm:$0xff] %v2188
    %2340 = vst [vmem:[#allocation2 + $0x88] sm:$0xff] %v2190
    %2341 = vst [vmem:[#allocation2 + $0x90] sm:$0xff] %v2301
    %2342 = vst [vmem:[#allocation2 + $0x98] sm:$0xff] %v2303
    %2343 = vst [vmem:[#allocation2 + $0xa0] sm:$0xff] %v2194
    %2344 = vst [vmem:[#allocation2 + $0xa8] sm:$0xff] %v2196
    %2345 = vst [vmem:[#allocation2 + $0xb0] sm:$0xff] %v2307
    %2346 = vst [vmem:[#allocation2 + $0xb8] sm:$0xff] %v2309
    %2347 = vst [vmem:[#allocation2 + $0xc0] sm:$0xff] %v2200
    %2348 = vst [vmem:[#allocation2 + $0xc8] sm:$0xff] %v2202
    %2349 = vst [vmem:[#allocation2 + $0xd0] sm:$0xff] %v2313
    %2350 = vst [vmem:[#allocation2 + $0xd8] sm:$0xff] %v2315
    %2351 = vst [vmem:[#allocation2 + $0xe0] sm:$0xff] %v2206
    %2352 = vst [vmem:[#allocation2 + $0xe8] sm:$0xff] %v2208
    %2353 = vst [vmem:[#allocation2 + $0xf0] sm:$0xff] %v2319
    %2354 = vst [vmem:[#allocation2 + $0xf8] sm:$0xff] %v2321
    %v2355 = vld [vmem:[#allocation2] sm:$0xff]
    %v2356 = vld [vmem:[#allocation2 + $0x8] sm:$0xff]
    %v2357 = vld [vmem:[#allocation2 + $0x10] sm:$0xff]
    %v2358 = vld [vmem:[#allocation2 + $0x18] sm:$0xff]
    %2359 = vmatprep.subr.mxu0 %v2004
    %2360 = vmatpush1.msra.mxu0 %v2003
    %2361 = vmatprep.subr.mxu0 %v2008
    %2362 = vmatpush1.msra.mxu0 %v2007
    %2363 = vmatprep.subr.mxu0 %v2012
    %2364 = vmatpush1.msra.mxu0 %v2011
    %2365 = vmatprep.subr.mxu0 %v2016
    %2366 = vmatpush1.msra.mxu0 %v2015
    %2367 = vmatprep.subr.mxu0 %v2020
    %2368 = vmatpush1.msra.mxu0 %v2019
    %2369 = vmatprep.subr.mxu0 %v2024
    %2370 = vmatpush1.msra.mxu0 %v2023
    %2371 = vmatprep.subr.mxu0 %v2028
    %2372 = vmatpush1.msra.mxu0 %v2027
    %2373 = vmatprep.subr.mxu0 %v2032
    %2374 = vmatpush1.msra.mxu0 %v2031
    %2375 = vmatprep.subr.mxu0 %v2036
    %2376 = vmatpush1.msra.mxu0 %v2035
    %2377 = vmatprep.subr.mxu0 %v2040
    %2378 = vmatpush1.msra.mxu0 %v2039
    %2379 = vmatprep.subr.mxu0 %v2044
    %2380 = vmatpush1.msra.mxu0 %v2043
    %2381 = vmatprep.subr.mxu0 %v2048
    %2382 = vmatpush1.msra.mxu0 %v2047
    %2383 = vmatprep.subr.mxu0 %v2052
    %2384 = vmatpush1.msra.mxu0 %v2051
    %2385 = vmatprep.subr.mxu0 %v2056
    %2386 = vmatpush1.msra.mxu0 %v2055
    %2387 = vmatprep.subr.mxu0 %v2060
    %2388 = vmatpush1.msra.mxu0 %v2059
    %2389 = vmatprep.subr.mxu0 %v2064
    %2390 = vmatpush1.msra.mxu0 %v2063
    %2391 = vmatprep.subr.mxu0 0.0
    %2392 = vmatpush1.msra.mxu0 0.0
    %2393 = vmatprep.subr.mxu0 0.0
    %2394 = vmatpush1.msra.mxu0 0.0
    %2395 = vmatprep.subr.mxu0 0.0
    %2396 = vmatpush1.msra.mxu0 0.0
    %2397 = vmatprep.subr.mxu0 0.0
    %2398 = vmatpush1.msra.mxu0 0.0
    %2399 = vmatprep.subr.mxu0 0.0
    %2400 = vmatpush1.msra.mxu0 0.0
    %2401 = vmatprep.subr.mxu0 0.0
    %2402 = vmatpush1.msra.mxu0 0.0
    %2403 = vmatprep.subr.mxu0 0.0
    %2404 = vmatpush1.msra.mxu0 0.0
    %2405 = vmatprep.subr.mxu0 0.0
    %2406 = vmatpush1.msra.mxu0 0.0
    %2407 = vmatprep.subr.mxu0 0.0
    %2408 = vmatpush1.msra.mxu0 0.0
    %2409 = vmatprep.subr.mxu0 0.0
    %2410 = vmatpush1.msra.mxu0 0.0
    %2411 = vmatprep.subr.mxu0 0.0
    %2412 = vmatpush1.msra.mxu0 0.0
    %2413 = vmatprep.subr.mxu0 0.0
    %2414 = vmatpush1.msra.mxu0 0.0
    %2415 = vmatprep.subr.mxu0 0.0
    %2416 = vmatpush1.msra.mxu0 0.0
    %2417 = vmatprep.subr.mxu0 0.0
    %2418 = vmatpush1.msra.mxu0 0.0
    %2419 = vmatprep.subr.mxu0 0.0
    %2420 = vmatpush1.msra.mxu0 0.0
    %2421 = vmatprep.subr.mxu0 0.0
    %2422 = vmatpush1.msra.mxu0 0.0
    %2423 = vmatprep.mubr.f32.mxu0 0.0
    %2424 = vmatmul.mubr.f32.gmra.mrb[0].mxu0 0.0
    %v2425 = vpop.f32.mrb[0].mxu0
    %v2426 = vadd.f32 0.0, %v2425
    %v2427 = vpop.f32.mrb[0].mxu0
    %v2428 = vadd.f32 0.0, %v2427
    %2429 = vdwg.mxu0
    %2430 = vmatprep.subr.mxu0 %v2006
    %2431 = vmatpush1.msra.mxu0 %v2005
    %2432 = vmatprep.subr.mxu0 %v2010
    %2433 = vmatpush1.msra.mxu0 %v2009
    %2434 = vmatprep.subr.mxu0 %v2014
    %2435 = vmatpush1.msra.mxu0 %v2013
    %2436 = vmatprep.subr.mxu0 %v2018
    %2437 = vmatpush1.msra.mxu0 %v2017
    %2438 = vmatprep.subr.mxu0 %v2022
    %2439 = vmatpush1.msra.mxu0 %v2021
    %2440 = vmatprep.subr.mxu0 %v2026
    %2441 = vmatpush1.msra.mxu0 %v2025
    %2442 = vmatprep.subr.mxu0 %v2030
    %2443 = vmatpush1.msra.mxu0 %v2029
    %2444 = vmatprep.subr.mxu0 %v2034
    %2445 = vmatpush1.msra.mxu0 %v2033
    %2446 = vmatprep.subr.mxu0 %v2038
    %2447 = vmatpush1.msra.mxu0 %v2037
    %2448 = vmatprep.subr.mxu0 %v2042
    %2449 = vmatpush1.msra.mxu0 %v2041
    %2450 = vmatprep.subr.mxu0 %v2046
    %2451 = vmatpush1.msra.mxu0 %v2045
    %2452 = vmatprep.subr.mxu0 %v2050
    %2453 = vmatpush1.msra.mxu0 %v2049
    %2454 = vmatprep.subr.mxu0 %v2054
    %2455 = vmatpush1.msra.mxu0 %v2053
    %2456 = vmatprep.subr.mxu0 %v2058
    %2457 = vmatpush1.msra.mxu0 %v2057
    %2458 = vmatprep.subr.mxu0 %v2062
    %2459 = vmatpush1.msra.mxu0 %v2061
    %2460 = vmatprep.subr.mxu0 %v2066
    %2461 = vmatpush1.msra.mxu0 %v2065
    %2462 = vmatprep.subr.mxu0 0.0
    %2463 = vmatpush1.msra.mxu0 0.0
    %2464 = vmatprep.subr.mxu0 0.0
    %2465 = vmatpush1.msra.mxu0 0.0
    %2466 = vmatprep.subr.mxu0 0.0
    %2467 = vmatpush1.msra.mxu0 0.0
    %2468 = vmatprep.subr.mxu0 0.0
    %2469 = vmatpush1.msra.mxu0 0.0
    %2470 = vmatprep.subr.mxu0 0.0
    %2471 = vmatpush1.msra.mxu0 0.0
    %2472 = vmatprep.subr.mxu0 0.0
    %2473 = vmatpush1.msra.mxu0 0.0
    %2474 = vmatprep.subr.mxu0 0.0
    %2475 = vmatpush1.msra.mxu0 0.0
    %2476 = vmatprep.subr.mxu0 0.0
    %2477 = vmatpush1.msra.mxu0 0.0
    %2478 = vmatprep.subr.mxu0 0.0
    %2479 = vmatpush1.msra.mxu0 0.0
    %2480 = vmatprep.subr.mxu0 0.0
    %2481 = vmatpush1.msra.mxu0 0.0
    %2482 = vmatprep.subr.mxu0 0.0
    %2483 = vmatpush1.msra.mxu0 0.0
    %2484 = vmatprep.subr.mxu0 0.0
    %2485 = vmatpush1.msra.mxu0 0.0
    %2486 = vmatprep.subr.mxu0 0.0
    %2487 = vmatpush1.msra.mxu0 0.0
    %2488 = vmatprep.subr.mxu0 0.0
    %2489 = vmatpush1.msra.mxu0 0.0
    %2490 = vmatprep.subr.mxu0 0.0
    %2491 = vmatpush1.msra.mxu0 0.0
    %2492 = vmatprep.subr.mxu0 0.0
    %2493 = vmatpush1.msra.mxu0 0.0
    %2494 = vmatprep.mubr.f32.mxu0 0.0
    %2495 = vmatmul.mubr.f32.gmra.mrb[0].mxu0 0.0
    %v2496 = vpop.f32.mrb[0].mxu0
    %v2497 = vadd.f32 0.0, %v2496
    %v2498 = vpop.f32.mrb[0].mxu0
    %v2499 = vadd.f32 0.0, %v2498
    %2500 = vdwg.mxu0
    %v2501 = vadd.f32 %v2355, %v2426
    %v2502 = vadd.f32 %v2356, %v2428
    %v2503 = vadd.f32 %v2357, %v2497
    %v2504 = vadd.f32 %v2358, %v2499
    %v2505 = vxor.u32 %v2501, 2147483648
    %v2506 = vmul.f32 %v2505, 1.442695
    %v2507 = vpow.pop %v2506
    %v2508 = vadd.f32 %v2507, 1.0
    %v2509 = vrcp.pop %v2508
    %v2510 = vmul.f32 1.0, %v2509
    %v2511 = vxor.u32 %v2502, 2147483648
    %v2512 = vmul.f32 %v2511, 1.442695
    %v2513 = vpow.pop %v2512
    %v2514 = vadd.f32 %v2513, 1.0
    %v2515 = vrcp.pop %v2514
    %v2516 = vmul.f32 1.0, %v2515
    %v2517 = vtanh.pop %v2503
    %v2518 = vxor.u32 %v2504, 2147483648
    %v2519 = vmul.f32 %v2518, 1.442695
    %v2520 = vpow.pop %v2519
    %v2521 = vadd.f32 %v2520, 1.0
    %v2522 = vrcp.pop %v2521
    %v2523 = vmul.f32 1.0, %v2522
    %v2524 = vmul.f32 %v2516, 0.0
    %v2525 = vmul.f32 %v2510, %v2517
    %v2526 = vadd.f32 %v2524, %v2525
    %v2527 = vtanh.pop %v2526
    %v2528 = vmul.f32 %v2523, %v2527
    %2529 = vst [vmem:[#allocation3] sm:$0xff] %v2528
    %v2530 = vld [vmem:[#allocation2 + $0x20] sm:$0xff]
    %v2531 = vld [vmem:[#allocation2 + $0x28] sm:$0xff]
    %v2532 = vld [vmem:[#allocation2 + $0x30] sm:$0xff]
    %v2533 = vld [vmem:[#allocation2 + $0x38] sm:$0xff]
    %2534 = vmatprep.subr.mxu0 %v2004
    %2535 = vmatpush1.msra.mxu0 %v2003
    %2536 = vmatprep.subr.mxu0 %v2008
    %2537 = vmatpush1.msra.mxu0 %v2007
    %2538 = vmatprep.subr.mxu0 %v2012
    %2539 = vmatpush1.msra.mxu0 %v2011
    %2540 = vmatprep.subr.mxu0 %v2016
    %2541 = vmatpush1.msra.mxu0 %v2015
    %2542 = vmatprep.subr.mxu0 %v2020
    %2543 = vmatpush1.msra.mxu0 %v2019
    %2544 = vmatprep.subr.mxu0 %v2024
    %2545 = vmatpush1.msra.mxu0 %v2023
    %2546 = vmatprep.subr.mxu0 %v2028
    %2547 = vmatpush1.msra.mxu0 %v2027
    %2548 = vmatprep.subr.mxu0 %v2032
    %2549 = vmatpush1.msra.mxu0 %v2031
    %2550 = vmatprep.subr.mxu0 %v2036
    %2551 = vmatpush1.msra.mxu0 %v2035
    %2552 = vmatprep.subr.mxu0 %v2040
    %2553 = vmatpush1.msra.mxu0 %v2039
    %2554 = vmatprep.subr.mxu0 %v2044
    %2555 = vmatpush1.msra.mxu0 %v2043
    %2556 = vmatprep.subr.mxu0 %v2048
    %2557 = vmatpush1.msra.mxu0 %v2047
    %2558 = vmatprep.subr.mxu0 %v2052
    %2559 = vmatpush1.msra.mxu0 %v2051
    %2560 = vmatprep.subr.mxu0 %v2056
    %2561 = vmatpush1.msra.mxu0 %v2055
    %2562 = vmatprep.subr.mxu0 %v2060
    %2563 = vmatpush1.msra.mxu0 %v2059
    %2564 = vmatprep.subr.mxu0 %v2064
    %2565 = vmatpush1.msra.mxu0 %v2063
    %2566 = vmatprep.subr.mxu0 0.0
    %2567 = vmatpush1.msra.mxu0 0.0
    %2568 = vmatprep.subr.mxu0 0.0
    %2569 = vmatpush1.msra.mxu0 0.0
    %2570 = vmatprep.subr.mxu0 0.0
    %2571 = vmatpush1.msra.mxu0 0.0
    %2572 = vmatprep.subr.mxu0 0.0
    %2573 = vmatpush1.msra.mxu0 0.0
    %2574 = vmatprep.subr.mxu0 0.0
    %2575 = vmatpush1.msra.mxu0 0.0
    %2576 = vmatprep.subr.mxu0 0.0
    %2577 = vmatpush1.msra.mxu0 0.0
    %2578 = vmatprep.subr.mxu0 0.0
    %2579 = vmatpush1.msra.mxu0 0.0
    %2580 = vmatprep.subr.mxu0 0.0
    %2581 = vmatpush1.msra.mxu0 0.0
    %2582 = vmatprep.subr.mxu0 0.0
    %2583 = vmatpush1.msra.mxu0 0.0
    %2584 = vmatprep.subr.mxu0 0.0
    %2585 = vmatpush1.msra.mxu0 0.0
    %2586 = vmatprep.subr.mxu0 0.0
    %2587 = vmatpush1.msra.mxu0 0.0
    %2588 = vmatprep.subr.mxu0 0.0
    %2589 = vmatpush1.msra.mxu0 0.0
    %2590 = vmatprep.subr.mxu0 0.0
    %2591 = vmatpush1.msra.mxu0 0.0
    %2592 = vmatprep.subr.mxu0 0.0
    %2593 = vmatpush1.msra.mxu0 0.0
    %2594 = vmatprep.subr.mxu0 0.0
    %2595 = vmatpush1.msra.mxu0 0.0
    %2596 = vmatprep.subr.mxu0 0.0
    %2597 = vmatpush1.msra.mxu0 0.0
    %2598 = vmatprep.mubr.f32.mxu0 0.0
    %2599 = vmatmul.mubr.f32.gmra.mrb[0].mxu0 %v2528
    %v2600 = vpop.f32.mrb[0].mxu0
    %v2601 = vadd.f32 0.0, %v2600
    %v2602 = vpop.f32.mrb[0].mxu0
    %v2603 = vadd.f32 0.0, %v2602
    %2604 = vdwg.mxu0
    %2605 = vmatprep.subr.mxu0 %v2006
    %2606 = vmatpush1.msra.mxu0 %v2005
    %2607 = vmatprep.subr.mxu0 %v2010
    %2608 = vmatpush1.msra.mxu0 %v2009
    %2609 = vmatprep.subr.mxu0 %v2014
    %2610 = vmatpush1.msra.mxu0 %v2013
    %2611 = vmatprep.subr.mxu0 %v2018
    %2612 = vmatpush1.msra.mxu0 %v2017
    %2613 = vmatprep.subr.mxu0 %v2022
    %2614 = vmatpush1.msra.mxu0 %v2021
    %2615 = vmatprep.subr.mxu0 %v2026
    %2616 = vmatpush1.msra.mxu0 %v2025
    %2617 = vmatprep.subr.mxu0 %v2030
    %2618 = vmatpush1.msra.mxu0 %v2029
    %2619 = vmatprep.subr.mxu0 %v2034
    %2620 = vmatpush1.msra.mxu0 %v2033
    %2621 = vmatprep.subr.mxu0 %v2038
    %2622 = vmatpush1.msra.mxu0 %v2037
    %2623 = vmatprep.subr.mxu0 %v2042
    %2624 = vmatpush1.msra.mxu0 %v2041
    %2625 = vmatprep.subr.mxu0 %v2046
    %2626 = vmatpush1.msra.mxu0 %v2045
    %2627 = vmatprep.subr.mxu0 %v2050
    %2628 = vmatpush1.msra.mxu0 %v2049
    %2629 = vmatprep.subr.mxu0 %v2054
    %2630 = vmatpush1.msra.mxu0 %v2053
    %2631 = vmatprep.subr.mxu0 %v2058
    %2632 = vmatpush1.msra.mxu0 %v2057
    %2633 = vmatprep.subr.mxu0 %v2062
    %2634 = vmatpush1.msra.mxu0 %v2061
    %2635 = vmatprep.subr.mxu0 %v2066
    %2636 = vmatpush1.msra.mxu0 %v2065
    %2637 = vmatprep.subr.mxu0 0.0
    %2638 = vmatpush1.msra.mxu0 0.0
    %2639 = vmatprep.subr.mxu0 0.0
    %2640 = vmatpush1.msra.mxu0 0.0
    %2641 = vmatprep.subr.mxu0 0.0
    %2642 = vmatpush1.msra.mxu0 0.0
    %2643 = vmatprep.subr.mxu0 0.0
    %2644 = vmatpush1.msra.mxu0 0.0
    %2645 = vmatprep.subr.mxu0 0.0
    %2646 = vmatpush1.msra.mxu0 0.0
    %2647 = vmatprep.subr.mxu0 0.0
    %2648 = vmatpush1.msra.mxu0 0.0
    %2649 = vmatprep.subr.mxu0 0.0
    %2650 = vmatpush1.msra.mxu0 0.0
    %2651 = vmatprep.subr.mxu0 0.0
    %2652 = vmatpush1.msra.mxu0 0.0
    %2653 = vmatprep.subr.mxu0 0.0
    %2654 = vmatpush1.msra.mxu0 0.0
    %2655 = vmatprep.subr.mxu0 0.0
    %2656 = vmatpush1.msra.mxu0 0.0
    %2657 = vmatprep.subr.mxu0 0.0
    %2658 = vmatpush1.msra.mxu0 0.0
    %2659 = vmatprep.subr.mxu0 0.0
    %2660 = vmatpush1.msra.mxu0 0.0
    %2661 = vmatprep.subr.mxu0 0.0
    %2662 = vmatpush1.msra.mxu0 0.0
    %2663 = vmatprep.subr.mxu0 0.0
    %2664 = vmatpush1.msra.mxu0 0.0
    %2665 = vmatprep.subr.mxu0 0.0
    %2666 = vmatpush1.msra.mxu0 0.0
    %2667 = vmatprep.subr.mxu0 0.0
    %2668 = vmatpush1.msra.mxu0 0.0
    %2669 = vmatprep.mubr.f32.mxu0 0.0
    %2670 = vmatmul.mubr.f32.gmra.mrb[0].mxu0 %v2528
    %v2671 = vpop.f32.mrb[0].mxu0
    %v2672 = vadd.f32 0.0, %v2671
    %v2673 = vpop.f32.mrb[0].mxu0
    %v2674 = vadd.f32 0.0, %v2673
    %2675 = vdwg.mxu0
    %v2676 = vadd.f32 %v2530, %v2601
    %v2677 = vadd.f32 %v2531, %v2603
    %v2678 = vadd.f32 %v2532, %v2672
    %v2679 = vadd.f32 %v2533, %v2674
    %v2680 = vxor.u32 %v2676, 2147483648
    %v2681 = vmul.f32 %v2680, 1.442695
    %v2682 = vpow.pop %v2681
    %v2683 = vadd.f32 %v2682, 1.0
    %v2684 = vrcp.pop %v2683
    %v2685 = vmul.f32 1.0, %v2684
    %v2686 = vxor.u32 %v2677, 2147483648
    %v2687 = vmul.f32 %v2686, 1.442695
    %v2688 = vpow.pop %v2687
    %v2689 = vadd.f32 %v2688, 1.0
    %v2690 = vrcp.pop %v2689
    %v2691 = vmul.f32 1.0, %v2690
    %v2692 = vtanh.pop %v2678
    %v2693 = vxor.u32 %v2679, 2147483648
    %v2694 = vmul.f32 %v2693, 1.442695
    %v2695 = vpow.pop %v2694
    %v2696 = vadd.f32 %v2695, 1.0
    %v2697 = vrcp.pop %v2696
    %v2698 = vmul.f32 1.0, %v2697
    %v2699 = vmul.f32 %v2691, %v2526
    %v2700 = vmul.f32 %v2685, %v2692
    %v2701 = vadd.f32 %v2699, %v2700
    %v2702 = vtanh.pop %v2701
    %v2703 = vmul.f32 %v2698, %v2702
    %2704 = vst [vmem:[#allocation3 + $0x8] sm:$0xff] %v2703
    %v2705 = vld [vmem:[#allocation2 + $0x40] sm:$0xff]
    %v2706 = vld [vmem:[#allocation2 + $0x48] sm:$0xff]
    %v2707 = vld [vmem:[#allocation2 + $0x50] sm:$0xff]
    %v2708 = vld [vmem:[#allocation2 + $0x58] sm:$0xff]
    %2709 = vmatprep.subr.mxu0 %v2004
    %2710 = vmatpush1.msra.mxu0 %v2003
    %2711 = vmatprep.subr.mxu0 %v2008
    %2712 = vmatpush1.msra.mxu0 %v2007
    %2713 = vmatprep.subr.mxu0 %v2012
    %2714 = vmatpush1.msra.mxu0 %v2011
    %2715 = vmatprep.subr.mxu0 %v2016
    %2716 = vmatpush1.msra.mxu0 %v2015
    %2717 = vmatprep.subr.mxu0 %v2020
    %2718 = vmatpush1.msra.mxu0 %v2019
    %2719 = vmatprep.subr.mxu0 %v2024
    %2720 = vmatpush1.msra.mxu0 %v2023
    %2721 = vmatprep.subr.mxu0 %v2028
    %2722 = vmatpush1.msra.mxu0 %v2027
    %2723 = vmatprep.subr.mxu0 %v2032
    %2724 = vmatpush1.msra.mxu0 %v2031
    %2725 = vmatprep.subr.mxu0 %v2036
    %2726 = vmatpush1.msra.mxu0 %v2035
    %2727 = vmatprep.subr.mxu0 %v2040
    %2728 = vmatpush1.msra.mxu0 %v2039
    %2729 = vmatprep.subr.mxu0 %v2044
    %2730 = vmatpush1.msra.mxu0 %v2043
    %2731 = vmatprep.subr.mxu0 %v2048
    %2732 = vmatpush1.msra.mxu0 %v2047
    %2733 = vmatprep.subr.mxu0 %v2052
    %2734 = vmatpush1.msra.mxu0 %v2051
    %2735 = vmatprep.subr.mxu0 %v2056
    %2736 = vmatpush1.msra.mxu0 %v2055
    %2737 = vmatprep.subr.mxu0 %v2060
    %2738 = vmatpush1.msra.mxu0 %v2059
    %2739 = vmatprep.subr.mxu0 %v2064
    %2740 = vmatpush1.msra.mxu0 %v2063
    %2741 = vmatprep.subr.mxu0 0.0
    %2742 = vmatpush1.msra.mxu0 0.0
    %2743 = vmatprep.subr.mxu0 0.0
    %2744 = vmatpush1.msra.mxu0 0.0
    %2745 = vmatprep.subr.mxu0 0.0
    %2746 = vmatpush1.msra.mxu0 0.0
    %2747 = vmatprep.subr.mxu0 0.0
    %2748 = vmatpush1.msra.mxu0 0.0
    %2749 = vmatprep.subr.mxu0 0.0
    %2750 = vmatpush1.msra.mxu0 0.0
    %2751 = vmatprep.subr.mxu0 0.0
    %2752 = vmatpush1.msra.mxu0 0.0
    %2753 = vmatprep.subr.mxu0 0.0
    %2754 = vmatpush1.msra.mxu0 0.0
    %2755 = vmatprep.subr.mxu0 0.0
    %2756 = vmatpush1.msra.mxu0 0.0
    %2757 = vmatprep.subr.mxu0 0.0
    %2758 = vmatpush1.msra.mxu0 0.0
    %2759 = vmatprep.subr.mxu0 0.0
    %2760 = vmatpush1.msra.mxu0 0.0
    %2761 = vmatprep.subr.mxu0 0.0
    %2762 = vmatpush1.msra.mxu0 0.0
    %2763 = vmatprep.subr.mxu0 0.0
    %2764 = vmatpush1.msra.mxu0 0.0
    %2765 = vmatprep.subr.mxu0 0.0
    %2766 = vmatpush1.msra.mxu0 0.0
    %2767 = vmatprep.subr.mxu0 0.0
    %2768 = vmatpush1.msra.mxu0 0.0
    %2769 = vmatprep.subr.mxu0 0.0
    %2770 = vmatpush1.msra.mxu0 0.0
    %2771 = vmatprep.subr.mxu0 0.0
    %2772 = vmatpush1.msra.mxu0 0.0
    %2773 = vmatprep.mubr.f32.mxu0 0.0
    %2774 = vmatmul.mubr.f32.gmra.mrb[0].mxu0 %v2703
    %v2775 = vpop.f32.mrb[0].mxu0
    %v2776 = vadd.f32 0.0, %v2775
    %v2777 = vpop.f32.mrb[0].mxu0
    %v2778 = vadd.f32 0.0, %v2777
    %2779 = vdwg.mxu0
    %2780 = vmatprep.subr.mxu0 %v2006
    %2781 = vmatpush1.msra.mxu0 %v2005
    %2782 = vmatprep.subr.mxu0 %v2010
    %2783 = vmatpush1.msra.mxu0 %v2009
    %2784 = vmatprep.subr.mxu0 %v2014
    %2785 = vmatpush1.msra.mxu0 %v2013
    %2786 = vmatprep.subr.mxu0 %v2018
    %2787 = vmatpush1.msra.mxu0 %v2017
    %2788 = vmatprep.subr.mxu0 %v2022
    %2789 = vmatpush1.msra.mxu0 %v2021
    %2790 = vmatprep.subr.mxu0 %v2026
    %2791 = vmatpush1.msra.mxu0 %v2025
    %2792 = vmatprep.subr.mxu0 %v2030
    %2793 = vmatpush1.msra.mxu0 %v2029
    %2794 = vmatprep.subr.mxu0 %v2034
    %2795 = vmatpush1.msra.mxu0 %v2033
    %2796 = vmatprep.subr.mxu0 %v2038
    %2797 = vmatpush1.msra.mxu0 %v2037
    %2798 = vmatprep.subr.mxu0 %v2042
    %2799 = vmatpush1.msra.mxu0 %v2041
    %2800 = vmatprep.subr.mxu0 %v2046
    %2801 = vmatpush1.msra.mxu0 %v2045
    %2802 = vmatprep.subr.mxu0 %v2050
    %2803 = vmatpush1.msra.mxu0 %v2049
    %2804 = vmatprep.subr.mxu0 %v2054
    %2805 = vmatpush1.msra.mxu0 %v2053
    %2806 = vmatprep.subr.mxu0 %v2058
    %2807 = vmatpush1.msra.mxu0 %v2057
    %2808 = vmatprep.subr.mxu0 %v2062
    %2809 = vmatpush1.msra.mxu0 %v2061
    %2810 = vmatprep.subr.mxu0 %v2066
    %2811 = vmatpush1.msra.mxu0 %v2065
    %2812 = vmatprep.subr.mxu0 0.0
    %2813 = vmatpush1.msra.mxu0 0.0
    %2814 = vmatprep.subr.mxu0 0.0
    %2815 = vmatpush1.msra.mxu0 0.0
    %2816 = vmatprep.subr.mxu0 0.0
    %2817 = vmatpush1.msra.mxu0 0.0
    %2818 = vmatprep.subr.mxu0 0.0
    %2819 = vmatpush1.msra.mxu0 0.0
    %2820 = vmatprep.subr.mxu0 0.0
    %2821 = vmatpush1.msra.mxu0 0.0
    %2822 = vmatprep.subr.mxu0 0.0
    %2823 = vmatpush1.msra.mxu0 0.0
    %2824 = vmatprep.subr.mxu0 0.0
    %2825 = vmatpush1.msra.mxu0 0.0
    %2826 = vmatprep.subr.mxu0 0.0
    %2827 = vmatpush1.msra.mxu0 0.0
    %2828 = vmatprep.subr.mxu0 0.0
    %2829 = vmatpush1.msra.mxu0 0.0
    %2830 = vmatprep.subr.mxu0 0.0
    %2831 = vmatpush1.msra.mxu0 0.0
    %2832 = vmatprep.subr.mxu0 0.0
    %2833 = vmatpush1.msra.mxu0 0.0
    %2834 = vmatprep.subr.mxu0 0.0
    %2835 = vmatpush1.msra.mxu0 0.0
    %2836 = vmatprep.subr.mxu0 0.0
    %2837 = vmatpush1.msra.mxu0 0.0
    %2838 = vmatprep.subr.mxu0 0.0
    %2839 = vmatpush1.msra.mxu0 0.0
    %2840 = vmatprep.subr.mxu0 0.0
    %2841 = vmatpush1.msra.mxu0 0.0
    %2842 = vmatprep.subr.mxu0 0.0
    %2843 = vmatpush1.msra.mxu0 0.0
    %2844 = vmatprep.mubr.f32.mxu0 0.0
    %2845 = vmatmul.mubr.f32.gmra.mrb[0].mxu0 %v2703
    %v2846 = vpop.f32.mrb[0].mxu0
    %v2847 = vadd.f32 0.0, %v2846
    %v2848 = vpop.f32.mrb[0].mxu0
    %v2849 = vadd.f32 0.0, %v2848
    %2850 = vdwg.mxu0
    %v2851 = vadd.f32 %v2705, %v2776
    %v2852 = vadd.f32 %v2706, %v2778
    %v2853 = vadd.f32 %v2707, %v2847
    %v2854 = vadd.f32 %v2708, %v2849
    %v2855 = vxor.u32 %v2851, 2147483648
    %v2856 = vmul.f32 %v2855, 1.442695
    %v2857 = vpow.pop %v2856
    %v2858 = vadd.f32 %v2857, 1.0
    %v2859 = vrcp.pop %v2858
    %v2860 = vmul.f32 1.0, %v2859
    %v2861 = vxor.u32 %v2852, 2147483648
    %v2862 = vmul.f32 %v2861, 1.442695
    %v2863 = vpow.pop %v2862
    %v2864 = vadd.f32 %v2863, 1.0
    %v2865 = vrcp.pop %v2864
    %v2866 = vmul.f32 1.0, %v2865
    %v2867 = vtanh.pop %v2853
    %v2868 = vxor.u32 %v2854, 2147483648
    %v2869 = vmul.f32 %v2868, 1.442695
    %v2870 = vpow.pop %v2869
    %v2871 = vadd.f32 %v2870, 1.0
    %v2872 = vrcp.pop %v2871
    %v2873 = vmul.f32 1.0, %v2872
    %v2874 = vmul.f32 %v2866, %v2701
    %v2875 = vmul.f32 %v2860, %v2867
    %v2876 = vadd.f32 %v2874, %v2875
    %v2877 = vtanh.pop %v2876
    %v2878 = vmul.f32 %v2873, %v2877
    %2879 = vst [vmem:[#allocation3 + $0x10] sm:$0xff] %v2878
    %v2880 = vld [vmem:[#allocation2 + $0x60] sm:$0xff]
    %v2881 = vld [vmem:[#allocation2 + $0x68] sm:$0xff]
    %v2882 = vld [vmem:[#allocation2 + $0x70] sm:$0xff]
    %v2883 = vld [vmem:[#allocation2 + $0x78] sm:$0xff]
    %2884 = vmatprep.subr.mxu0 %v2004
    %2885 = vmatpush1.msra.mxu0 %v2003
    %2886 = vmatprep.subr.mxu0 %v2008
    %2887 = vmatpush1.msra.mxu0 %v2007
    %2888 = vmatprep.subr.mxu0 %v2012
    %2889 = vmatpush1.msra.mxu0 %v2011
    %2890 = vmatprep.subr.mxu0 %v2016
    %2891 = vmatpush1.msra.mxu0 %v2015
    %2892 = vmatprep.subr.mxu0 %v2020
    %2893 = vmatpush1.msra.mxu0 %v2019
    %2894 = vmatprep.subr.mxu0 %v2024
    %2895 = vmatpush1.msra.mxu0 %v2023
    %2896 = vmatprep.subr.mxu0 %v2028
    %2897 = vmatpush1.msra.mxu0 %v2027
    %2898 = vmatprep.subr.mxu0 %v2032
    %2899 = vmatpush1.msra.mxu0 %v2031
    %2900 = vmatprep.subr.mxu0 %v2036
    %2901 = vmatpush1.msra.mxu0 %v2035
    %2902 = vmatprep.subr.mxu0 %v2040
    %2903 = vmatpush1.msra.mxu0 %v2039
    %2904 = vmatprep.subr.mxu0 %v2044
    %2905 = vmatpush1.msra.mxu0 %v2043
    %2906 = vmatprep.subr.mxu0 %v2048
    %2907 = vmatpush1.msra.mxu0 %v2047
    %2908 = vmatprep.subr.mxu0 %v2052
    %2909 = vmatpush1.msra.mxu0 %v2051
    %2910 = vmatprep.subr.mxu0 %v2056
    %2911 = vmatpush1.msra.mxu0 %v2055
    %2912 = vmatprep.subr.mxu0 %v2060
    %2913 = vmatpush1.msra.mxu0 %v2059
    %2914 = vmatprep.subr.mxu0 %v2064
    %2915 = vmatpush1.msra.mxu0 %v2063
    %2916 = vmatprep.subr.mxu0 0.0
    %2917 = vmatpush1.msra.mxu0 0.0
    %2918 = vmatprep.subr.mxu0 0.0
    %2919 = vmatpush1.msra.mxu0 0.0
    %2920 = vmatprep.subr.mxu0 0.0
    %2921 = vmatpush1.msra.mxu0 0.0
    %2922 = vmatprep.subr.mxu0 0.0
    %2923 = vmatpush1.msra.mxu0 0.0
    %2924 = vmatprep.subr.mxu0 0.0
    %2925 = vmatpush1.msra.mxu0 0.0
    %2926 = vmatprep.subr.mxu0 0.0
    %2927 = vmatpush1.msra.mxu0 0.0
    %2928 = vmatprep.subr.mxu0 0.0
    %2929 = vmatpush1.msra.mxu0 0.0
    %2930 = vmatprep.subr.mxu0 0.0
    %2931 = vmatpush1.msra.mxu0 0.0
    %2932 = vmatprep.subr.mxu0 0.0
    %2933 = vmatpush1.msra.mxu0 0.0
    %2934 = vmatprep.subr.mxu0 0.0
    %2935 = vmatpush1.msra.mxu0 0.0
    %2936 = vmatprep.subr.mxu0 0.0
    %2937 = vmatpush1.msra.mxu0 0.0
    %2938 = vmatprep.subr.mxu0 0.0
    %2939 = vmatpush1.msra.mxu0 0.0
    %2940 = vmatprep.subr.mxu0 0.0
    %2941 = vmatpush1.msra.mxu0 0.0
    %2942 = vmatprep.subr.mxu0 0.0
    %2943 = vmatpush1.msra.mxu0 0.0
    %2944 = vmatprep.subr.mxu0 0.0
    %2945 = vmatpush1.msra.mxu0 0.0
    %2946 = vmatprep.subr.mxu0 0.0
    %2947 = vmatpush1.msra.mxu0 0.0
    %2948 = vmatprep.mubr.f32.mxu0 0.0
    %2949 = vmatmul.mubr.f32.gmra.mrb[0].mxu0 %v2878
    %v2950 = vpop.f32.mrb[0].mxu0
    %v2951 = vadd.f32 0.0, %v2950
    %v2952 = vpop.f32.mrb[0].mxu0
    %v2953 = vadd.f32 0.0, %v2952
    %2954 = vdwg.mxu0
    %2955 = vmatprep.subr.mxu0 %v2006
    %2956 = vmatpush1.msra.mxu0 %v2005
    %2957 = vmatprep.subr.mxu0 %v2010
    %2958 = vmatpush1.msra.mxu0 %v2009
    %2959 = vmatprep.subr.mxu0 %v2014
    %2960 = vmatpush1.msra.mxu0 %v2013
    %2961 = vmatprep.subr.mxu0 %v2018
    %2962 = vmatpush1.msra.mxu0 %v2017
    %2963 = vmatprep.subr.mxu0 %v2022
    %2964 = vmatpush1.msra.mxu0 %v2021
    %2965 = vmatprep.subr.mxu0 %v2026
    %2966 = vmatpush1.msra.mxu0 %v2025
    %2967 = vmatprep.subr.mxu0 %v2030
    %2968 = vmatpush1.msra.mxu0 %v2029
    %2969 = vmatprep.subr.mxu0 %v2034
    %2970 = vmatpush1.msra.mxu0 %v2033
    %2971 = vmatprep.subr.mxu0 %v2038
    %2972 = vmatpush1.msra.mxu0 %v2037
    %2973 = vmatprep.subr.mxu0 %v2042
    %2974 = vmatpush1.msra.mxu0 %v2041
    %2975 = vmatprep.subr.mxu0 %v2046
    %2976 = vmatpush1.msra.mxu0 %v2045
    %2977 = vmatprep.subr.mxu0 %v2050
    %2978 = vmatpush1.msra.mxu0 %v2049
    %2979 = vmatprep.subr.mxu0 %v2054
    %2980 = vmatpush1.msra.mxu0 %v2053
    %2981 = vmatprep.subr.mxu0 %v2058
    %2982 = vmatpush1.msra.mxu0 %v2057
    %2983 = vmatprep.subr.mxu0 %v2062
    %2984 = vmatpush1.msra.mxu0 %v2061
    %2985 = vmatprep.subr.mxu0 %v2066
    %2986 = vmatpush1.msra.mxu0 %v2065
    %2987 = vmatprep.subr.mxu0 0.0
    %2988 = vmatpush1.msra.mxu0 0.0
    %2989 = vmatprep.subr.mxu0 0.0
    %2990 = vmatpush1.msra.mxu0 0.0
    %2991 = vmatprep.subr.mxu0 0.0
    %2992 = vmatpush1.msra.mxu0 0.0
    %2993 = vmatprep.subr.mxu0 0.0
    %2994 = vmatpush1.msra.mxu0 0.0
    %2995 = vmatprep.subr.mxu0 0.0
    %2996 = vmatpush1.msra.mxu0 0.0
    %2997 = vmatprep.subr.mxu0 0.0
    %2998 = vmatpush1.msra.mxu0 0.0
    %2999 = vmatprep.subr.mxu0 0.0
    %3000 = vmatpush1.msra.mxu0 0.0
    %3001 = vmatprep.subr.mxu0 0.0
    %3002 = vmatpush1.msra.mxu0 0.0
    %3003 = vmatprep.subr.mxu0 0.0
    %3004 = vmatpush1.msra.mxu0 0.0
    %3005 = vmatprep.subr.mxu0 0.0
    %3006 = vmatpush1.msra.mxu0 0.0
    %3007 = vmatprep.subr.mxu0 0.0
    %3008 = vmatpush1.msra.mxu0 0.0
    %3009 = vmatprep.subr.mxu0 0.0
    %3010 = vmatpush1.msra.mxu0 0.0
    %3011 = vmatprep.subr.mxu0 0.0
    %3012 = vmatpush1.msra.mxu0 0.0
    %3013 = vmatprep.subr.mxu0 0.0
    %3014 = vmatpush1.msra.mxu0 0.0
    %3015 = vmatprep.subr.mxu0 0.0
    %3016 = vmatpush1.msra.mxu0 0.0
    %3017 = vmatprep.subr.mxu0 0.0
    %3018 = vmatpush1.msra.mxu0 0.0
    %3019 = vmatprep.mubr.f32.mxu0 0.0
    %3020 = vmatmul.mubr.f32.gmra.mrb[0].mxu0 %v2878
    %v3021 = vpop.f32.mrb[0].mxu0
    %v3022 = vadd.f32 0.0, %v3021
    %v3023 = vpop.f32.mrb[0].mxu0
    %v3024 = vadd.f32 0.0, %v3023
    %3025 = vdwg.mxu0
    %v3026 = vadd.f32 %v2880, %v2951
    %v3027 = vadd.f32 %v2881, %v2953
    %v3028 = vadd.f32 %v2882, %v3022
    %v3029 = vadd.f32 %v2883, %v3024
    %v3030 = vxor.u32 %v3026, 2147483648
    %v3031 = vmul.f32 %v3030, 1.442695
    %v3032 = vpow.pop %v3031
    %v3033 = vadd.f32 %v3032, 1.0
    %v3034 = vrcp.pop %v3033
    %v3035 = vmul.f32 1.0, %v3034
    %v3036 = vxor.u32 %v3027, 2147483648
    %v3037 = vmul.f32 %v3036, 1.442695
    %v3038 = vpow.pop %v3037
    %v3039 = vadd.f32 %v3038, 1.0
    %v3040 = vrcp.pop %v3039
    %v3041 = vmul.f32 1.0, %v3040
    %v3042 = vtanh.pop %v3028
    %v3043 = vxor.u32 %v3029, 2147483648
    %v3044 = vmul.f32 %v3043, 1.442695
    %v3045 = vpow.pop %v3044
    %v3046 = vadd.f32 %v3045, 1.0
    %v3047 = vrcp.pop %v3046
    %v3048 = vmul.f32 1.0, %v3047
    %v3049 = vmul.f32 %v3041, %v2876
    %v3050 = vmul.f32 %v3035, %v3042
    %v3051 = vadd.f32 %v3049, %v3050
    %v3052 = vtanh.pop %v3051
    %v3053 = vmul.f32 %v3048, %v3052
    %3054 = vst [vmem:[#allocation3 + $0x18] sm:$0xff] %v3053
    %v3055 = vld [vmem:[#allocation2 + $0x80] sm:$0xff]
    %v3056 = vld [vmem:[#allocation2 + $0x88] sm:$0xff]
    %v3057 = vld [vmem:[#allocation2 + $0x90] sm:$0xff]
    %v3058 = vld [vmem:[#allocation2 + $0x98] sm:$0xff]
    %3059 = vmatprep.subr.mxu0 %v2004
    %3060 = vmatpush1.msra.mxu0 %v2003
    %3061 = vmatprep.subr.mxu0 %v2008
    %3062 = vmatpush1.msra.mxu0 %v2007
    %3063 = vmatprep.subr.mxu0 %v2012
    %3064 = vmatpush1.msra.mxu0 %v2011
    %3065 = vmatprep.subr.mxu0 %v2016
    %3066 = vmatpush1.msra.mxu0 %v2015
    %3067 = vmatprep.subr.mxu0 %v2020
    %3068 = vmatpush1.msra.mxu0 %v2019
    %3069 = vmatprep.subr.mxu0 %v2024
    %3070 = vmatpush1.msra.mxu0 %v2023
    %3071 = vmatprep.subr.mxu0 %v2028
    %3072 = vmatpush1.msra.mxu0 %v2027
    %3073 = vmatprep.subr.mxu0 %v2032
    %3074 = vmatpush1.msra.mxu0 %v2031
    %3075 = vmatprep.subr.mxu0 %v2036
    %3076 = vmatpush1.msra.mxu0 %v2035
    %3077 = vmatprep.subr.mxu0 %v2040
    %3078 = vmatpush1.msra.mxu0 %v2039
    %3079 = vmatprep.subr.mxu0 %v2044
    %3080 = vmatpush1.msra.mxu0 %v2043
    %3081 = vmatprep.subr.mxu0 %v2048
    %3082 = vmatpush1.msra.mxu0 %v2047
    %3083 = vmatprep.subr.mxu0 %v2052
    %3084 = vmatpush1.msra.mxu0 %v2051
    %3085 = vmatprep.subr.mxu0 %v2056
    %3086 = vmatpush1.msra.mxu0 %v2055
    %3087 = vmatprep.subr.mxu0 %v2060
    %3088 = vmatpush1.msra.mxu0 %v2059
    %3089 = vmatprep.subr.mxu0 %v2064
    %3090 = vmatpush1.msra.mxu0 %v2063
    %3091 = vmatprep.subr.mxu0 0.0
    %3092 = vmatpush1.msra.mxu0 0.0
    %3093 = vmatprep.subr.mxu0 0.0
    %3094 = vmatpush1.msra.mxu0 0.0
    %3095 = vmatprep.subr.mxu0 0.0
    %3096 = vmatpush1.msra.mxu0 0.0
    %3097 = vmatprep.subr.mxu0 0.0
    %3098 = vmatpush1.msra.mxu0 0.0
    %3099 = vmatprep.subr.mxu0 0.0
    %3100 = vmatpush1.msra.mxu0 0.0
    %3101 = vmatprep.subr.mxu0 0.0
    %3102 = vmatpush1.msra.mxu0 0.0
    %3103 = vmatprep.subr.mxu0 0.0
    %3104 = vmatpush1.msra.mxu0 0.0
    %3105 = vmatprep.subr.mxu0 0.0
    %3106 = vmatpush1.msra.mxu0 0.0
    %3107 = vmatprep.subr.mxu0 0.0
    %3108 = vmatpush1.msra.mxu0 0.0
    %3109 = vmatprep.subr.mxu0 0.0
    %3110 = vmatpush1.msra.mxu0 0.0
    %3111 = vmatprep.subr.mxu0 0.0
    %3112 = vmatpush1.msra.mxu0 0.0
    %3113 = vmatprep.subr.mxu0 0.0
    %3114 = vmatpush1.msra.mxu0 0.0
    %3115 = vmatprep.subr.mxu0 0.0
    %3116 = vmatpush1.msra.mxu0 0.0
    %3117 = vmatprep.subr.mxu0 0.0
    %3118 = vmatpush1.msra.mxu0 0.0
    %3119 = vmatprep.subr.mxu0 0.0
    %3120 = vmatpush1.msra.mxu0 0.0
    %3121 = vmatprep.subr.mxu0 0.0
    %3122 = vmatpush1.msra.mxu0 0.0
    %3123 = vmatprep.mubr.f32.mxu0 0.0
    %3124 = vmatmul.mubr.f32.gmra.mrb[0].mxu0 %v3053
    %v3125 = vpop.f32.mrb[0].mxu0
    %v3126 = vadd.f32 0.0, %v3125
    %v3127 = vpop.f32.mrb[0].mxu0
    %v3128 = vadd.f32 0.0, %v3127
    %3129 = vdwg.mxu0
    %3130 = vmatprep.subr.mxu0 %v2006
    %3131 = vmatpush1.msra.mxu0 %v2005
    %3132 = vmatprep.subr.mxu0 %v2010
    %3133 = vmatpush1.msra.mxu0 %v2009
    %3134 = vmatprep.subr.mxu0 %v2014
    %3135 = vmatpush1.msra.mxu0 %v2013
    %3136 = vmatprep.subr.mxu0 %v2018
    %3137 = vmatpush1.msra.mxu0 %v2017
    %3138 = vmatprep.subr.mxu0 %v2022
    %3139 = vmatpush1.msra.mxu0 %v2021
    %3140 = vmatprep.subr.mxu0 %v2026
    %3141 = vmatpush1.msra.mxu0 %v2025
    %3142 = vmatprep.subr.mxu0 %v2030
    %3143 = vmatpush1.msra.mxu0 %v2029
    %3144 = vmatprep.subr.mxu0 %v2034
    %3145 = vmatpush1.msra.mxu0 %v2033
    %3146 = vmatprep.subr.mxu0 %v2038
    %3147 = vmatpush1.msra.mxu0 %v2037
    %3148 = vmatprep.subr.mxu0 %v2042
    %3149 = vmatpush1.msra.mxu0 %v2041
    %3150 = vmatprep.subr.mxu0 %v2046
    %3151 = vmatpush1.msra.mxu0 %v2045
    %3152 = vmatprep.subr.mxu0 %v2050
    %3153 = vmatpush1.msra.mxu0 %v2049
    %3154 = vmatprep.subr.mxu0 %v2054
    %3155 = vmatpush1.msra.mxu0 %v2053
    %3156 = vmatprep.subr.mxu0 %v2058
    %3157 = vmatpush1.msra.mxu0 %v2057
    %3158 = vmatprep.subr.mxu0 %v2062
    %3159 = vmatpush1.msra.mxu0 %v2061
    %3160 = vmatprep.subr.mxu0 %v2066
    %3161 = vmatpush1.msra.mxu0 %v2065
    %3162 = vmatprep.subr.mxu0 0.0
    %3163 = vmatpush1.msra.mxu0 0.0
    %3164 = vmatprep.subr.mxu0 0.0
    %3165 = vmatpush1.msra.mxu0 0.0
    %3166 = vmatprep.subr.mxu0 0.0
    %3167 = vmatpush1.msra.mxu0 0.0
    %3168 = vmatprep.subr.mxu0 0.0
    %3169 = vmatpush1.msra.mxu0 0.0
    %3170 = vmatprep.subr.mxu0 0.0
    %3171 = vmatpush1.msra.mxu0 0.0
    %3172 = vmatprep.subr.mxu0 0.0
    %3173 = vmatpush1.msra.mxu0 0.0
    %3174 = vmatprep.subr.mxu0 0.0
    %3175 = vmatpush1.msra.mxu0 0.0
    %3176 = vmatprep.subr.mxu0 0.0
    %3177 = vmatpush1.msra.mxu0 0.0
    %3178 = vmatprep.subr.mxu0 0.0
    %3179 = vmatpush1.msra.mxu0 0.0
    %3180 = vmatprep.subr.mxu0 0.0
    %3181 = vmatpush1.msra.mxu0 0.0
    %3182 = vmatprep.subr.mxu0 0.0
    %3183 = vmatpush1.msra.mxu0 0.0
    %3184 = vmatprep.subr.mxu0 0.0
    %3185 = vmatpush1.msra.mxu0 0.0
    %3186 = vmatprep.subr.mxu0 0.0
    %3187 = vmatpush1.msra.mxu0 0.0
    %3188 = vmatprep.subr.mxu0 0.0
    %3189 = vmatpush1.msra.mxu0 0.0
    %3190 = vmatprep.subr.mxu0 0.0
    %3191 = vmatpush1.msra.mxu0 0.0
    %3192 = vmatprep.subr.mxu0 0.0
    %3193 = vmatpush1.msra.mxu0 0.0
    %3194 = vmatprep.mubr.f32.mxu0 0.0
    %3195 = vmatmul.mubr.f32.gmra.mrb[0].mxu0 %v3053
    %v3196 = vpop.f32.mrb[0].mxu0
    %v3197 = vadd.f32 0.0, %v3196
    %v3198 = vpop.f32.mrb[0].mxu0
    %v3199 = vadd.f32 0.0, %v3198
    %3200 = vdwg.mxu0
    %v3201 = vadd.f32 %v3055, %v3126
    %v3202 = vadd.f32 %v3056, %v3128
    %v3203 = vadd.f32 %v3057, %v3197
    %v3204 = vadd.f32 %v3058, %v3199
    %v3205 = vxor.u32 %v3201, 2147483648
    %v3206 = vmul.f32 %v3205, 1.442695
    %v3207 = vpow.pop %v3206
    %v3208 = vadd.f32 %v3207, 1.0
    %v3209 = vrcp.pop %v3208
    %v3210 = vmul.f32 1.0, %v3209
    %v3211 = vxor.u32 %v3202, 2147483648
    %v3212 = vmul.f32 %v3211, 1.442695
    %v3213 = vpow.pop %v3212
    %v3214 = vadd.f32 %v3213, 1.0
    %v3215 = vrcp.pop %v3214
    %v3216 = vmul.f32 1.0, %v3215
    %v3217 = vtanh.pop %v3203
    %v3218 = vxor.u32 %v3204, 2147483648
    %v3219 = vmul.f32 %v3218, 1.442695
    %v3220 = vpow.pop %v3219
    %v3221 = vadd.f32 %v3220, 1.0
    %v3222 = vrcp.pop %v3221
    %v3223 = vmul.f32 1.0, %v3222
    %v3224 = vmul.f32 %v3216, %v3051
    %v3225 = vmul.f32 %v3210, %v3217
    %v3226 = vadd.f32 %v3224, %v3225
    %v3227 = vtanh.pop %v3226
    %v3228 = vmul.f32 %v3223, %v3227
    %3229 = vst [vmem:[#allocation3 + $0x20] sm:$0xff] %v3228
    %v3230 = vld [vmem:[#allocation2 + $0xa0] sm:$0xff]
    %v3231 = vld [vmem:[#allocation2 + $0xa8] sm:$0xff]
    %v3232 = vld [vmem:[#allocation2 + $0xb0] sm:$0xff]
    %v3233 = vld [vmem:[#allocation2 + $0xb8] sm:$0xff]
    %3234 = vmatprep.subr.mxu0 %v2004
    %3235 = vmatpush1.msra.mxu0 %v2003
    %3236 = vmatprep.subr.mxu0 %v2008
    %3237 = vmatpush1.msra.mxu0 %v2007
    %3238 = vmatprep.subr.mxu0 %v2012
    %3239 = vmatpush1.msra.mxu0 %v2011
    %3240 = vmatprep.subr.mxu0 %v2016
    %3241 = vmatpush1.msra.mxu0 %v2015
    %3242 = vmatprep.subr.mxu0 %v2020
    %3243 = vmatpush1.msra.mxu0 %v2019
    %3244 = vmatprep.subr.mxu0 %v2024
    %3245 = vmatpush1.msra.mxu0 %v2023
    %3246 = vmatprep.subr.mxu0 %v2028
    %3247 = vmatpush1.msra.mxu0 %v2027
    %3248 = vmatprep.subr.mxu0 %v2032
    %3249 = vmatpush1.msra.mxu0 %v2031
    %3250 = vmatprep.subr.mxu0 %v2036
    %3251 = vmatpush1.msra.mxu0 %v2035
    %3252 = vmatprep.subr.mxu0 %v2040
    %3253 = vmatpush1.msra.mxu0 %v2039
    %3254 = vmatprep.subr.mxu0 %v2044
    %3255 = vmatpush1.msra.mxu0 %v2043
    %3256 = vmatprep.subr.mxu0 %v2048
    %3257 = vmatpush1.msra.mxu0 %v2047
    %3258 = vmatprep.subr.mxu0 %v2052
    %3259 = vmatpush1.msra.mxu0 %v2051
    %3260 = vmatprep.subr.mxu0 %v2056
    %3261 = vmatpush1.msra.mxu0 %v2055
    %3262 = vmatprep.subr.mxu0 %v2060
    %3263 = vmatpush1.msra.mxu0 %v2059
    %3264 = vmatprep.subr.mxu0 %v2064
    %3265 = vmatpush1.msra.mxu0 %v2063
    %3266 = vmatprep.subr.mxu0 0.0
    %3267 = vmatpush1.msra.mxu0 0.0
    %3268 = vmatprep.subr.mxu0 0.0
    %3269 = vmatpush1.msra.mxu0 0.0
    %3270 = vmatprep.subr.mxu0 0.0
    %3271 = vmatpush1.msra.mxu0 0.0
    %3272 = vmatprep.subr.mxu0 0.0
    %3273 = vmatpush1.msra.mxu0 0.0
    %3274 = vmatprep.subr.mxu0 0.0
    %3275 = vmatpush1.msra.mxu0 0.0
    %3276 = vmatprep.subr.mxu0 0.0
    %3277 = vmatpush1.msra.mxu0 0.0
    %3278 = vmatprep.subr.mxu0 0.0
    %3279 = vmatpush1.msra.mxu0 0.0
    %3280 = vmatprep.subr.mxu0 0.0
    %3281 = vmatpush1.msra.mxu0 0.0
    %3282 = vmatprep.subr.mxu0 0.0
    %3283 = vmatpush1.msra.mxu0 0.0
    %3284 = vmatprep.subr.mxu0 0.0
    %3285 = vmatpush1.msra.mxu0 0.0
    %3286 = vmatprep.subr.mxu0 0.0
    %3287 = vmatpush1.msra.mxu0 0.0
    %3288 = vmatprep.subr.mxu0 0.0
    %3289 = vmatpush1.msra.mxu0 0.0
    %3290 = vmatprep.subr.mxu0 0.0
    %3291 = vmatpush1.msra.mxu0 0.0
    %3292 = vmatprep.subr.mxu0 0.0
    %3293 = vmatpush1.msra.mxu0 0.0
    %3294 = vmatprep.subr.mxu0 0.0
    %3295 = vmatpush1.msra.mxu0 0.0
    %3296 = vmatprep.subr.mxu0 0.0
    %3297 = vmatpush1.msra.mxu0 0.0
    %3298 = vmatprep.mubr.f32.mxu0 0.0
    %3299 = vmatmul.mubr.f32.gmra.mrb[0].mxu0 %v3228
    %v3300 = vpop.f32.mrb[0].mxu0
    %v3301 = vadd.f32 0.0, %v3300
    %v3302 = vpop.f32.mrb[0].mxu0
    %v3303 = vadd.f32 0.0, %v3302
    %3304 = vdwg.mxu0
    %3305 = vmatprep.subr.mxu0 %v2006
    %3306 = vmatpush1.msra.mxu0 %v2005
    %3307 = vmatprep.subr.mxu0 %v2010
    %3308 = vmatpush1.msra.mxu0 %v2009
    %3309 = vmatprep.subr.mxu0 %v2014
    %3310 = vmatpush1.msra.mxu0 %v2013
    %3311 = vmatprep.subr.mxu0 %v2018
    %3312 = vmatpush1.msra.mxu0 %v2017
    %3313 = vmatprep.subr.mxu0 %v2022
    %3314 = vmatpush1.msra.mxu0 %v2021
    %3315 = vmatprep.subr.mxu0 %v2026
    %3316 = vmatpush1.msra.mxu0 %v2025
    %3317 = vmatprep.subr.mxu0 %v2030
    %3318 = vmatpush1.msra.mxu0 %v2029
    %3319 = vmatprep.subr.mxu0 %v2034
    %3320 = vmatpush1.msra.mxu0 %v2033
    %3321 = vmatprep.subr.mxu0 %v2038
    %3322 = vmatpush1.msra.mxu0 %v2037
    %3323 = vmatprep.subr.mxu0 %v2042
    %3324 = vmatpush1.msra.mxu0 %v2041
    %3325 = vmatprep.subr.mxu0 %v2046
    %3326 = vmatpush1.msra.mxu0 %v2045
    %3327 = vmatprep.subr.mxu0 %v2050
    %3328 = vmatpush1.msra.mxu0 %v2049
    %3329 = vmatprep.subr.mxu0 %v2054
    %3330 = vmatpush1.msra.mxu0 %v2053
    %3331 = vmatprep.subr.mxu0 %v2058
    %3332 = vmatpush1.msra.mxu0 %v2057
    %3333 = vmatprep.subr.mxu0 %v2062
    %3334 = vmatpush1.msra.mxu0 %v2061
    %3335 = vmatprep.subr.mxu0 %v2066
    %3336 = vmatpush1.msra.mxu0 %v2065
    %3337 = vmatprep.subr.mxu0 0.0
    %3338 = vmatpush1.msra.mxu0 0.0
    %3339 = vmatprep.subr.mxu0 0.0
    %3340 = vmatpush1.msra.mxu0 0.0
    %3341 = vmatprep.subr.mxu0 0.0
    %3342 = vmatpush1.msra.mxu0 0.0
    %3343 = vmatprep.subr.mxu0 0.0
    %3344 = vmatpush1.msra.mxu0 0.0
    %3345 = vmatprep.subr.mxu0 0.0
    %3346 = vmatpush1.msra.mxu0 0.0
    %3347 = vmatprep.subr.mxu0 0.0
    %3348 = vmatpush1.msra.mxu0 0.0
    %3349 = vmatprep.subr.mxu0 0.0
    %3350 = vmatpush1.msra.mxu0 0.0
    %3351 = vmatprep.subr.mxu0 0.0
    %3352 = vmatpush1.msra.mxu0 0.0
    %3353 = vmatprep.subr.mxu0 0.0
    %3354 = vmatpush1.msra.mxu0 0.0
    %3355 = vmatprep.subr.mxu0 0.0
    %3356 = vmatpush1.msra.mxu0 0.0
    %3357 = vmatprep.subr.mxu0 0.0
    %3358 = vmatpush1.msra.mxu0 0.0
    %3359 = vmatprep.subr.mxu0 0.0
    %3360 = vmatpush1.msra.mxu0 0.0
    %3361 = vmatprep.subr.mxu0 0.0
    %3362 = vmatpush1.msra.mxu0 0.0
    %3363 = vmatprep.subr.mxu0 0.0
    %3364 = vmatpush1.msra.mxu0 0.0
    %3365 = vmatprep.subr.mxu0 0.0
    %3366 = vmatpush1.msra.mxu0 0.0
    %3367 = vmatprep.subr.mxu0 0.0
    %3368 = vmatpush1.msra.mxu0 0.0
    %3369 = vmatprep.mubr.f32.mxu0 0.0
    %3370 = vmatmul.mubr.f32.gmra.mrb[0].mxu0 %v3228
    %v3371 = vpop.f32.mrb[0].mxu0
    %v3372 = vadd.f32 0.0, %v3371
    %v3373 = vpop.f32.mrb[0].mxu0
    %v3374 = vadd.f32 0.0, %v3373
    %3375 = vdwg.mxu0
    %v3376 = vadd.f32 %v3230, %v3301
    %v3377 = vadd.f32 %v3231, %v3303
    %v3378 = vadd.f32 %v3232, %v3372
    %v3379 = vadd.f32 %v3233, %v3374
    %v3380 = vxor.u32 %v3376, 2147483648
    %v3381 = vmul.f32 %v3380, 1.442695
    %v3382 = vpow.pop %v3381
    %v3383 = vadd.f32 %v3382, 1.0
    %v3384 = vrcp.pop %v3383
    %v3385 = vmul.f32 1.0, %v3384
    %v3386 = vxor.u32 %v3377, 2147483648
    %v3387 = vmul.f32 %v3386, 1.442695
    %v3388 = vpow.pop %v3387
    %v3389 = vadd.f32 %v3388, 1.0
    %v3390 = vrcp.pop %v3389
    %v3391 = vmul.f32 1.0, %v3390
    %v3392 = vtanh.pop %v3378
    %v3393 = vxor.u32 %v3379, 2147483648
    %v3394 = vmul.f32 %v3393, 1.442695
    %v3395 = vpow.pop %v3394
    %v3396 = vadd.f32 %v3395, 1.0
    %v3397 = vrcp.pop %v3396
    %v3398 = vmul.f32 1.0, %v3397
    %v3399 = vmul.f32 %v3391, %v3226
    %v3400 = vmul.f32 %v3385, %v3392
    %v3401 = vadd.f32 %v3399, %v3400
    %v3402 = vtanh.pop %v3401
    %v3403 = vmul.f32 %v3398, %v3402
    %3404 = vst [vmem:[#allocation3 + $0x28] sm:$0xff] %v3403
    %v3405 = vld [vmem:[#allocation2 + $0xc0] sm:$0xff]
    %v3406 = vld [vmem:[#allocation2 + $0xc8] sm:$0xff]
    %v3407 = vld [vmem:[#allocation2 + $0xd0] sm:$0xff]
    %v3408 = vld [vmem:[#allocation2 + $0xd8] sm:$0xff]
    %3409 = vmatprep.subr.mxu0 %v2004
    %3410 = vmatpush1.msra.mxu0 %v2003
    %3411 = vmatprep.subr.mxu0 %v2008
    %3412 = vmatpush1.msra.mxu0 %v2007
    %3413 = vmatprep.subr.mxu0 %v2012
    %3414 = vmatpush1.msra.mxu0 %v2011
    %3415 = vmatprep.subr.mxu0 %v2016
    %3416 = vmatpush1.msra.mxu0 %v2015
    %3417 = vmatprep.subr.mxu0 %v2020
    %3418 = vmatpush1.msra.mxu0 %v2019
    %3419 = vmatprep.subr.mxu0 %v2024
    %3420 = vmatpush1.msra.mxu0 %v2023
    %3421 = vmatprep.subr.mxu0 %v2028
    %3422 = vmatpush1.msra.mxu0 %v2027
    %3423 = vmatprep.subr.mxu0 %v2032
    %3424 = vmatpush1.msra.mxu0 %v2031
    %3425 = vmatprep.subr.mxu0 %v2036
    %3426 = vmatpush1.msra.mxu0 %v2035
    %3427 = vmatprep.subr.mxu0 %v2040
    %3428 = vmatpush1.msra.mxu0 %v2039
    %3429 = vmatprep.subr.mxu0 %v2044
    %3430 = vmatpush1.msra.mxu0 %v2043
    %3431 = vmatprep.subr.mxu0 %v2048
    %3432 = vmatpush1.msra.mxu0 %v2047
    %3433 = vmatprep.subr.mxu0 %v2052
    %3434 = vmatpush1.msra.mxu0 %v2051
    %3435 = vmatprep.subr.mxu0 %v2056
    %3436 = vmatpush1.msra.mxu0 %v2055
    %3437 = vmatprep.subr.mxu0 %v2060
    %3438 = vmatpush1.msra.mxu0 %v2059
    %3439 = vmatprep.subr.mxu0 %v2064
    %3440 = vmatpush1.msra.mxu0 %v2063
    %3441 = vmatprep.subr.mxu0 0.0
    %3442 = vmatpush1.msra.mxu0 0.0
    %3443 = vmatprep.subr.mxu0 0.0
    %3444 = vmatpush1.msra.mxu0 0.0
    %3445 = vmatprep.subr.mxu0 0.0
    %3446 = vmatpush1.msra.mxu0 0.0
    %3447 = vmatprep.subr.mxu0 0.0
    %3448 = vmatpush1.msra.mxu0 0.0
    %3449 = vmatprep.subr.mxu0 0.0
    %3450 = vmatpush1.msra.mxu0 0.0
    %3451 = vmatprep.subr.mxu0 0.0
    %3452 = vmatpush1.msra.mxu0 0.0
    %3453 = vmatprep.subr.mxu0 0.0
    %3454 = vmatpush1.msra.mxu0 0.0
    %3455 = vmatprep.subr.mxu0 0.0
    %3456 = vmatpush1.msra.mxu0 0.0
    %3457 = vmatprep.subr.mxu0 0.0
    %3458 = vmatpush1.msra.mxu0 0.0
    %3459 = vmatprep.subr.mxu0 0.0
    %3460 = vmatpush1.msra.mxu0 0.0
    %3461 = vmatprep.subr.mxu0 0.0
    %3462 = vmatpush1.msra.mxu0 0.0
    %3463 = vmatprep.subr.mxu0 0.0
    %3464 = vmatpush1.msra.mxu0 0.0
    %3465 = vmatprep.subr.mxu0 0.0
    %3466 = vmatpush1.msra.mxu0 0.0
    %3467 = vmatprep.subr.mxu0 0.0
    %3468 = vmatpush1.msra.mxu0 0.0
    %3469 = vmatprep.subr.mxu0 0.0
    %3470 = vmatpush1.msra.mxu0 0.0
    %3471 = vmatprep.subr.mxu0 0.0
    %3472 = vmatpush1.msra.mxu0 0.0
    %3473 = vmatprep.mubr.f32.mxu0 0.0
    %3474 = vmatmul.mubr.f32.gmra.mrb[0].mxu0 %v3403
    %v3475 = vpop.f32.mrb[0].mxu0
    %v3476 = vadd.f32 0.0, %v3475
    %v3477 = vpop.f32.mrb[0].mxu0
    %v3478 = vadd.f32 0.0, %v3477
    %3479 = vdwg.mxu0
    %3480 = vmatprep.subr.mxu0 %v2006
    %3481 = vmatpush1.msra.mxu0 %v2005
    %3482 = vmatprep.subr.mxu0 %v2010
    %3483 = vmatpush1.msra.mxu0 %v2009
    %3484 = vmatprep.subr.mxu0 %v2014
    %3485 = vmatpush1.msra.mxu0 %v2013
    %3486 = vmatprep.subr.mxu0 %v2018
    %3487 = vmatpush1.msra.mxu0 %v2017
    %3488 = vmatprep.subr.mxu0 %v2022
    %3489 = vmatpush1.msra.mxu0 %v2021
    %3490 = vmatprep.subr.mxu0 %v2026
    %3491 = vmatpush1.msra.mxu0 %v2025
    %3492 = vmatprep.subr.mxu0 %v2030
    %3493 = vmatpush1.msra.mxu0 %v2029
    %3494 = vmatprep.subr.mxu0 %v2034
    %3495 = vmatpush1.msra.mxu0 %v2033
    %3496 = vmatprep.subr.mxu0 %v2038
    %3497 = vmatpush1.msra.mxu0 %v2037
    %3498 = vmatprep.subr.mxu0 %v2042
    %3499 = vmatpush1.msra.mxu0 %v2041
    %3500 = vmatprep.subr.mxu0 %v2046
    %3501 = vmatpush1.msra.mxu0 %v2045
    %3502 = vmatprep.subr.mxu0 %v2050
    %3503 = vmatpush1.msra.mxu0 %v2049
    %3504 = vmatprep.subr.mxu0 %v2054
    %3505 = vmatpush1.msra.mxu0 %v2053
    %3506 = vmatprep.subr.mxu0 %v2058
    %3507 = vmatpush1.msra.mxu0 %v2057
    %3508 = vmatprep.subr.mxu0 %v2062
    %3509 = vmatpush1.msra.mxu0 %v2061
    %3510 = vmatprep.subr.mxu0 %v2066
    %3511 = vmatpush1.msra.mxu0 %v2065
    %3512 = vmatprep.subr.mxu0 0.0
    %3513 = vmatpush1.msra.mxu0 0.0
    %3514 = vmatprep.subr.mxu0 0.0
    %3515 = vmatpush1.msra.mxu0 0.0
    %3516 = vmatprep.subr.mxu0 0.0
    %3517 = vmatpush1.msra.mxu0 0.0
    %3518 = vmatprep.subr.mxu0 0.0
    %3519 = vmatpush1.msra.mxu0 0.0
    %3520 = vmatprep.subr.mxu0 0.0
    %3521 = vmatpush1.msra.mxu0 0.0
    %3522 = vmatprep.subr.mxu0 0.0
    %3523 = vmatpush1.msra.mxu0 0.0
    %3524 = vmatprep.subr.mxu0 0.0
    %3525 = vmatpush1.msra.mxu0 0.0
    %3526 = vmatprep.subr.mxu0 0.0
    %3527 = vmatpush1.msra.mxu0 0.0
    %3528 = vmatprep.subr.mxu0 0.0
    %3529 = vmatpush1.msra.mxu0 0.0
    %3530 = vmatprep.subr.mxu0 0.0
    %3531 = vmatpush1.msra.mxu0 0.0
    %3532 = vmatprep.subr.mxu0 0.0
    %3533 = vmatpush1.msra.mxu0 0.0
    %3534 = vmatprep.subr.mxu0 0.0
    %3535 = vmatpush1.msra.mxu0 0.0
    %3536 = vmatprep.subr.mxu0 0.0
    %3537 = vmatpush1.msra.mxu0 0.0
    %3538 = vmatprep.subr.mxu0 0.0
    %3539 = vmatpush1.msra.mxu0 0.0
    %3540 = vmatprep.subr.mxu0 0.0
    %3541 = vmatpush1.msra.mxu0 0.0
    %3542 = vmatprep.subr.mxu0 0.0
    %3543 = vmatpush1.msra.mxu0 0.0
    %3544 = vmatprep.mubr.f32.mxu0 0.0
    %3545 = vmatmul.mubr.f32.gmra.mrb[0].mxu0 %v3403
    %v3546 = vpop.f32.mrb[0].mxu0
    %v3547 = vadd.f32 0.0, %v3546
    %v3548 = vpop.f32.mrb[0].mxu0
    %v3549 = vadd.f32 0.0, %v3548
    %3550 = vdwg.mxu0
    %v3551 = vadd.f32 %v3405, %v3476
    %v3552 = vadd.f32 %v3406, %v3478
    %v3553 = vadd.f32 %v3407, %v3547
    %v3554 = vadd.f32 %v3408, %v3549
    %v3555 = vxor.u32 %v3551, 2147483648
    %v3556 = vmul.f32 %v3555, 1.442695
    %v3557 = vpow.pop %v3556
    %v3558 = vadd.f32 %v3557, 1.0
    %v3559 = vrcp.pop %v3558
    %v3560 = vmul.f32 1.0, %v3559
    %v3561 = vxor.u32 %v3552, 2147483648
    %v3562 = vmul.f32 %v3561, 1.442695
    %v3563 = vpow.pop %v3562
    %v3564 = vadd.f32 %v3563, 1.0
    %v3565 = vrcp.pop %v3564
    %v3566 = vmul.f32 1.0, %v3565
    %v3567 = vtanh.pop %v3553
    %v3568 = vxor.u32 %v3554, 2147483648
    %v3569 = vmul.f32 %v3568, 1.442695
    %v3570 = vpow.pop %v3569
    %v3571 = vadd.f32 %v3570, 1.0
    %v3572 = vrcp.pop %v3571
    %v3573 = vmul.f32 1.0, %v3572
    %v3574 = vmul.f32 %v3566, %v3401
    %v3575 = vmul.f32 %v3560, %v3567
    %v3576 = vadd.f32 %v3574, %v3575
    %v3577 = vtanh.pop %v3576
    %v3578 = vmul.f32 %v3573, %v3577
    %3579 = vst [vmem:[#allocation3 + $0x30] sm:$0xff] %v3578
    %v3580 = vld [vmem:[#allocation2 + $0xe0] sm:$0xff]
    %v3581 = vld [vmem:[#allocation2 + $0xe8] sm:$0xff]
    %v3582 = vld [vmem:[#allocation2 + $0xf0] sm:$0xff]
    %v3583 = vld [vmem:[#allocation2 + $0xf8] sm:$0xff]
    %3584 = vmatprep.subr.mxu0 %v2004
    %3585 = vmatpush1.msra.mxu0 %v2003
    %3586 = vmatprep.subr.mxu0 %v2008
    %3587 = vmatpush1.msra.mxu0 %v2007
    %3588 = vmatprep.subr.mxu0 %v2012
    %3589 = vmatpush1.msra.mxu0 %v2011
    %3590 = vmatprep.subr.mxu0 %v2016
    %3591 = vmatpush1.msra.mxu0 %v2015
    %3592 = vmatprep.subr.mxu0 %v2020
    %3593 = vmatpush1.msra.mxu0 %v2019
    %3594 = vmatprep.subr.mxu0 %v2024
    %3595 = vmatpush1.msra.mxu0 %v2023
    %3596 = vmatprep.subr.mxu0 %v2028
    %3597 = vmatpush1.msra.mxu0 %v2027
    %3598 = vmatprep.subr.mxu0 %v2032
    %3599 = vmatpush1.msra.mxu0 %v2031
    %3600 = vmatprep.subr.mxu0 %v2036
    %3601 = vmatpush1.msra.mxu0 %v2035
    %3602 = vmatprep.subr.mxu0 %v2040
    %3603 = vmatpush1.msra.mxu0 %v2039
    %3604 = vmatprep.subr.mxu0 %v2044
    %3605 = vmatpush1.msra.mxu0 %v2043
    %3606 = vmatprep.subr.mxu0 %v2048
    %3607 = vmatpush1.msra.mxu0 %v2047
    %3608 = vmatprep.subr.mxu0 %v2052
    %3609 = vmatpush1.msra.mxu0 %v2051
    %3610 = vmatprep.subr.mxu0 %v2056
    %3611 = vmatpush1.msra.mxu0 %v2055
    %3612 = vmatprep.subr.mxu0 %v2060
    %3613 = vmatpush1.msra.mxu0 %v2059
    %3614 = vmatprep.subr.mxu0 %v2064
    %3615 = vmatpush1.msra.mxu0 %v2063
    %3616 = vmatprep.subr.mxu0 0.0
    %3617 = vmatpush1.msra.mxu0 0.0
    %3618 = vmatprep.subr.mxu0 0.0
    %3619 = vmatpush1.msra.mxu0 0.0
    %3620 = vmatprep.subr.mxu0 0.0
    %3621 = vmatpush1.msra.mxu0 0.0
    %3622 = vmatprep.subr.mxu0 0.0
    %3623 = vmatpush1.msra.mxu0 0.0
    %3624 = vmatprep.subr.mxu0 0.0
    %3625 = vmatpush1.msra.mxu0 0.0
    %3626 = vmatprep.subr.mxu0 0.0
    %3627 = vmatpush1.msra.mxu0 0.0
    %3628 = vmatprep.subr.mxu0 0.0
    %3629 = vmatpush1.msra.mxu0 0.0
    %3630 = vmatprep.subr.mxu0 0.0
    %3631 = vmatpush1.msra.mxu0 0.0
    %3632 = vmatprep.subr.mxu0 0.0
    %3633 = vmatpush1.msra.mxu0 0.0
    %3634 = vmatprep.subr.mxu0 0.0
    %3635 = vmatpush1.msra.mxu0 0.0
    %3636 = vmatprep.subr.mxu0 0.0
    %3637 = vmatpush1.msra.mxu0 0.0
    %3638 = vmatprep.subr.mxu0 0.0
    %3639 = vmatpush1.msra.mxu0 0.0
    %3640 = vmatprep.subr.mxu0 0.0
    %3641 = vmatpush1.msra.mxu0 0.0
    %3642 = vmatprep.subr.mxu0 0.0
    %3643 = vmatpush1.msra.mxu0 0.0
    %3644 = vmatprep.subr.mxu0 0.0
    %3645 = vmatpush1.msra.mxu0 0.0
    %3646 = vmatprep.subr.mxu0 0.0
    %3647 = vmatpush1.msra.mxu0 0.0
    %3648 = vmatprep.mubr.f32.mxu0 0.0
    %3649 = vmatmul.mubr.f32.gmra.mrb[0].mxu0 %v3578
    %v3650 = vpop.f32.mrb[0].mxu0
    %v3651 = vadd.f32 0.0, %v3650
    %v3652 = vpop.f32.mrb[0].mxu0
    %v3653 = vadd.f32 0.0, %v3652
    %3654 = vdwg.mxu0
    %3655 = vmatprep.subr.mxu0 %v2006
    %3656 = vmatpush1.msra.mxu0 %v2005
    %3657 = vmatprep.subr.mxu0 %v2010
    %3658 = vmatpush1.msra.mxu0 %v2009
    %3659 = vmatprep.subr.mxu0 %v2014
    %3660 = vmatpush1.msra.mxu0 %v2013
    %3661 = vmatprep.subr.mxu0 %v2018
    %3662 = vmatpush1.msra.mxu0 %v2017
    %3663 = vmatprep.subr.mxu0 %v2022
    %3664 = vmatpush1.msra.mxu0 %v2021
    %3665 = vmatprep.subr.mxu0 %v2026
    %3666 = vmatpush1.msra.mxu0 %v2025
    %3667 = vmatprep.subr.mxu0 %v2030
    %3668 = vmatpush1.msra.mxu0 %v2029
    %3669 = vmatprep.subr.mxu0 %v2034
    %3670 = vmatpush1.msra.mxu0 %v2033
    %3671 = vmatprep.subr.mxu0 %v2038
    %3672 = vmatpush1.msra.mxu0 %v2037
    %3673 = vmatprep.subr.mxu0 %v2042
    %3674 = vmatpush1.msra.mxu0 %v2041
    %3675 = vmatprep.subr.mxu0 %v2046
    %3676 = vmatpush1.msra.mxu0 %v2045
    %3677 = vmatprep.subr.mxu0 %v2050
    %3678 = vmatpush1.msra.mxu0 %v2049
    %3679 = vmatprep.subr.mxu0 %v2054
    %3680 = vmatpush1.msra.mxu0 %v2053
    %3681 = vmatprep.subr.mxu0 %v2058
    %3682 = vmatpush1.msra.mxu0 %v2057
    %3683 = vmatprep.subr.mxu0 %v2062
    %3684 = vmatpush1.msra.mxu0 %v2061
    %3685 = vmatprep.subr.mxu0 %v2066
    %3686 = vmatpush1.msra.mxu0 %v2065
    %3687 = vmatprep.subr.mxu0 0.0
    %3688 = vmatpush1.msra.mxu0 0.0
    %3689 = vmatprep.subr.mxu0 0.0
    %3690 = vmatpush1.msra.mxu0 0.0
    %3691 = vmatprep.subr.mxu0 0.0
    %3692 = vmatpush1.msra.mxu0 0.0
    %3693 = vmatprep.subr.mxu0 0.0
    %3694 = vmatpush1.msra.mxu0 0.0
    %3695 = vmatprep.subr.mxu0 0.0
    %3696 = vmatpush1.msra.mxu0 0.0
    %3697 = vmatprep.subr.mxu0 0.0
    %3698 = vmatpush1.msra.mxu0 0.0
    %3699 = vmatprep.subr.mxu0 0.0
    %3700 = vmatpush1.msra.mxu0 0.0
    %3701 = vmatprep.subr.mxu0 0.0
    %3702 = vmatpush1.msra.mxu0 0.0
    %3703 = vmatprep.subr.mxu0 0.0
    %3704 = vmatpush1.msra.mxu0 0.0
    %3705 = vmatprep.subr.mxu0 0.0
    %3706 = vmatpush1.msra.mxu0 0.0
    %3707 = vmatprep.subr.mxu0 0.0
    %3708 = vmatpush1.msra.mxu0 0.0
    %3709 = vmatprep.subr.mxu0 0.0
    %3710 = vmatpush1.msra.mxu0 0.0
    %3711 = vmatprep.subr.mxu0 0.0
    %3712 = vmatpush1.msra.mxu0 0.0
    %3713 = vmatprep.subr.mxu0 0.0
    %3714 = vmatpush1.msra.mxu0 0.0
    %3715 = vmatprep.subr.mxu0 0.0
    %3716 = vmatpush1.msra.mxu0 0.0
    %3717 = vmatprep.subr.mxu0 0.0
    %3718 = vmatpush1.msra.mxu0 0.0
    %3719 = vmatprep.mubr.f32.mxu0 0.0
    %3720 = vmatmul.mubr.f32.gmra.mrb[0].mxu0 %v3578
    %v3721 = vpop.f32.mrb[0].mxu0
    %v3722 = vadd.f32 0.0, %v3721
    %v3723 = vpop.f32.mrb[0].mxu0
    %v3724 = vadd.f32 0.0, %v3723
    %3725 = vdwg.mxu0
    %v3726 = vadd.f32 %v3580, %v3651
    %v3727 = vadd.f32 %v3581, %v3653
    %v3728 = vadd.f32 %v3582, %v3722
    %v3729 = vadd.f32 %v3583, %v3724
    %v3730 = vxor.u32 %v3726, 2147483648
    %v3731 = vmul.f32 %v3730, 1.442695
    %v3732 = vpow.pop %v3731
    %v3733 = vadd.f32 %v3732, 1.0
    %v3734 = vrcp.pop %v3733
    %v3735 = vmul.f32 1.0, %v3734
    %v3736 = vxor.u32 %v3727, 2147483648
    %v3737 = vmul.f32 %v3736, 1.442695
    %v3738 = vpow.pop %v3737
    %v3739 = vadd.f32 %v3738, 1.0
    %v3740 = vrcp.pop %v3739
    %v3741 = vmul.f32 1.0, %v3740
    %v3742 = vtanh.pop %v3728
    %v3743 = vxor.u32 %v3729, 2147483648
    %v3744 = vmul.f32 %v3743, 1.442695
    %v3745 = vpow.pop %v3744
    %v3746 = vadd.f32 %v3745, 1.0
    %v3747 = vrcp.pop %v3746
    %v3748 = vmul.f32 1.0, %v3747
    %v3749 = vmul.f32 %v3741, %v3576
    %v3750 = vmul.f32 %v3735, %v3742
    %v3751 = vadd.f32 %v3749, %v3750
    %v3752 = vtanh.pop %v3751
    %v3753 = vmul.f32 %v3748, %v3752
    %3754 = vst [vmem:[#allocation3 + $0x38] sm:$0xff] %v3753
    %3755 = vst [vmem:[%s11 + $0x8] sm:$0xff] %v3753
    %v3756 = vld [vmem:[%s11] sm:$0xff]
    %v3757 = vld [vmem:[%s11 + $0x8] sm:$0xff]
    %v3758 = vmax.f32 %v3756, 0.0
    %v3759 = vmax.f32 %v3757, 0.0
    %v3760 = vld [vmem:[#allocation11] sm:$0xff]
    %v3761 = vld [vmem:[#allocation11 + $0x8] sm:$0xff]
    %v3762 = vld [vmem:[#allocation11 + $0x10] sm:$0xff]
    %v3763 = vld [vmem:[#allocation11 + $0x18] sm:$0xff]
    %v3764 = vld [vmem:[#allocation11 + $0x20] sm:$0xff]
    %v3765 = vld [vmem:[#allocation11 + $0x28] sm:$0xff]
    %v3766 = vld [vmem:[#allocation11 + $0x30] sm:$0xff]
    %v3767 = vld [vmem:[#allocation11 + $0x38] sm:$0xff]
    %v3768 = vld [vmem:[#allocation11 + $0x40] sm:$0xff]
    %v3769 = vld [vmem:[#allocation11 + $0x48] sm:$0xff]
    %v3770 = vld [vmem:[#allocation11 + $0x50] sm:$0xff]
    %v3771 = vld [vmem:[#allocation11 + $0x58] sm:$0xff]
    %v3772 = vld [vmem:[#allocation11 + $0x60] sm:$0xff]
    %v3773 = vld [vmem:[#allocation11 + $0x68] sm:$0xff]
    %v3774 = vld [vmem:[#allocation11 + $0x70] sm:$0xff]
    %v3775 = vld [vmem:[#allocation11 + $0x78] sm:$0xff]
    %v3776 = vld [vmem:[%s8] sm:$0x1]
    %v3778 = vlaneseq
    %v3779 = vshrl.u32 %v3778, 7
    %v3780 = vsub.s32 0, %v3779
    %v3781 = vrot.slane %v3776, %v3780
    %3783 = vmatprep.subr.mxu0 0.0
    %3784 = vmatpush1.msra.mxu0 %v3760
    %3785 = vmatprep.subr.mxu0 0.0
    %3786 = vmatpush1.msra.mxu0 %v3761
    %3787 = vmatprep.subr.mxu0 0.0
    %3788 = vmatpush1.msra.mxu0 %v3762
    %3789 = vmatprep.subr.mxu0 0.0
    %3790 = vmatpush1.msra.mxu0 %v3763
    %3791 = vmatprep.subr.mxu0 0.0
    %3792 = vmatpush1.msra.mxu0 %v3764
    %3793 = vmatprep.subr.mxu0 0.0
    %3794 = vmatpush1.msra.mxu0 %v3765
    %3795 = vmatprep.subr.mxu0 0.0
    %3796 = vmatpush1.msra.mxu0 %v3766
    %3797 = vmatprep.subr.mxu0 0.0
    %3798 = vmatpush1.msra.mxu0 %v3767
    %3799 = vmatprep.subr.mxu0 0.0
    %3800 = vmatpush1.msra.mxu0 %v3768
    %3801 = vmatprep.subr.mxu0 0.0
    %3802 = vmatpush1.msra.mxu0 %v3769
    %3803 = vmatprep.subr.mxu0 0.0
    %3804 = vmatpush1.msra.mxu0 %v3770
    %3805 = vmatprep.subr.mxu0 0.0
    %3806 = vmatpush1.msra.mxu0 %v3771
    %3807 = vmatprep.subr.mxu0 0.0
    %3808 = vmatpush1.msra.mxu0 %v3772
    %3809 = vmatprep.subr.mxu0 0.0
    %3810 = vmatpush1.msra.mxu0 %v3773
    %3811 = vmatprep.subr.mxu0 0.0
    %3812 = vmatpush1.msra.mxu0 %v3774
    %3813 = vmatprep.subr.mxu0 0.0
    %3814 = vmatpush1.msra.mxu0 %v3775
    %3815 = vmatprep.subr.mxu0 0.0
    %3816 = vmatpush1.msra.mxu0 0.0
    %3817 = vmatprep.subr.mxu0 0.0
    %3818 = vmatpush1.msra.mxu0 0.0
    %3819 = vmatprep.subr.mxu0 0.0
    %3820 = vmatpush1.msra.mxu0 0.0
    %3821 = vmatprep.subr.mxu0 0.0
    %3822 = vmatpush1.msra.mxu0 0.0
    %3823 = vmatprep.subr.mxu0 0.0
    %3824 = vmatpush1.msra.mxu0 0.0
    %3825 = vmatprep.subr.mxu0 0.0
    %3826 = vmatpush1.msra.mxu0 0.0
    %3827 = vmatprep.subr.mxu0 0.0
    %3828 = vmatpush1.msra.mxu0 0.0
    %3829 = vmatprep.subr.mxu0 0.0
    %3830 = vmatpush1.msra.mxu0 0.0
    %3831 = vmatprep.subr.mxu0 0.0
    %3832 = vmatpush1.msra.mxu0 0.0
    %3833 = vmatprep.subr.mxu0 0.0
    %3834 = vmatpush1.msra.mxu0 0.0
    %3835 = vmatprep.subr.mxu0 0.0
    %3836 = vmatpush1.msra.mxu0 0.0
    %3837 = vmatprep.subr.mxu0 0.0
    %3838 = vmatpush1.msra.mxu0 0.0
    %3839 = vmatprep.subr.mxu0 0.0
    %3840 = vmatpush1.msra.mxu0 0.0
    %3841 = vmatprep.subr.mxu0 0.0
    %3842 = vmatpush1.msra.mxu0 0.0
    %3843 = vmatprep.subr.mxu0 0.0
    %3844 = vmatpush1.msra.mxu0 0.0
    %3845 = vmatprep.subr.mxu0 0.0
    %3846 = vmatpush1.msra.mxu0 0.0
    %3847 = vmatprep.mubr.f32.mxu0 0.0
    %3848 = vmatmul.mubr.f32.gmra.mrb[0].mxu0 %v3758
    %v3849 = vpop.f32.mrb[0].mxu0
    %v3850 = vadd.f32 %v3781, %v3849
    %v3851 = vpop.f32.mrb[0].mxu0
    %3852 = vmatprep.mubr.f32.mxu0 0.0
    %3853 = vmatmul.mubr.f32.gmra.mrb[0].mxu0 %v3759
    %v3854 = vpop.f32.mrb[0].mxu0
    %v3855 = vadd.f32 %v3781, %v3854
    %v3856 = vpop.f32.mrb[0].mxu0
    %3857 = vdwg.mxu0
    %v3858 = vmax.f32 %v3850, 0.0
    %v3859 = vmax.f32 %v3855, 0.0
    %v3860 = vld [vmem:[#allocation12] sm:$0xff]
    %v3861 = vld [vmem:[#allocation12 + $0x8] sm:$0xff]
    %v3862 = vld [vmem:[#allocation12 + $0x10] sm:$0xff]
    %v3863 = vld [vmem:[#allocation12 + $0x18] sm:$0xff]
    %v3864 = vld [vmem:[#allocation12 + $0x20] sm:$0xff]
    %v3865 = vld [vmem:[#allocation12 + $0x28] sm:$0xff]
    %v3866 = vld [vmem:[#allocation12 + $0x30] sm:$0xff]
    %v3867 = vld [vmem:[#allocation12 + $0x38] sm:$0xff]
    %v3868 = vld [vmem:[#allocation12 + $0x40] sm:$0xff]
    %v3869 = vld [vmem:[#allocation12 + $0x48] sm:$0xff]
    %v3870 = vld [vmem:[#allocation12 + $0x50] sm:$0xff]
    %v3871 = vld [vmem:[#allocation12 + $0x58] sm:$0xff]
    %v3872 = vld [vmem:[#allocation12 + $0x60] sm:$0xff]
    %v3873 = vld [vmem:[#allocation12 + $0x68] sm:$0xff]
    %v3874 = vld [vmem:[#allocation12 + $0x70] sm:$0xff]
    %v3875 = vld [vmem:[#allocation12 + $0x78] sm:$0xff]
    %v3876 = vld [vmem:[%s10] sm:$0x1]
    %v3878 = vlaneseq
    %v3879 = vshrl.u32 %v3878, 7
    %v3880 = vsub.s32 0, %v3879
    %v3881 = vrot.slane %v3876, %v3880
    %3883 = vmatprep.subr.mxu0 0.0
    %3884 = vmatpush1.msra.mxu0 %v3860
    %3885 = vmatprep.subr.mxu0 0.0
    %3886 = vmatpush1.msra.mxu0 %v3861
    %3887 = vmatprep.subr.mxu0 0.0
    %3888 = vmatpush1.msra.mxu0 %v3862
    %3889 = vmatprep.subr.mxu0 0.0
    %3890 = vmatpush1.msra.mxu0 %v3863
    %3891 = vmatprep.subr.mxu0 0.0
    %3892 = vmatpush1.msra.mxu0 %v3864
    %3893 = vmatprep.subr.mxu0 0.0
    %3894 = vmatpush1.msra.mxu0 %v3865
    %3895 = vmatprep.subr.mxu0 0.0
    %3896 = vmatpush1.msra.mxu0 %v3866
    %3897 = vmatprep.subr.mxu0 0.0
    %3898 = vmatpush1.msra.mxu0 %v3867
    %3899 = vmatprep.subr.mxu0 0.0
    %3900 = vmatpush1.msra.mxu0 %v3868
    %3901 = vmatprep.subr.mxu0 0.0
    %3902 = vmatpush1.msra.mxu0 %v3869
    %3903 = vmatprep.subr.mxu0 0.0
    %3904 = vmatpush1.msra.mxu0 %v3870
    %3905 = vmatprep.subr.mxu0 0.0
    %3906 = vmatpush1.msra.mxu0 %v3871
    %3907 = vmatprep.subr.mxu0 0.0
    %3908 = vmatpush1.msra.mxu0 %v3872
    %3909 = vmatprep.subr.mxu0 0.0
    %3910 = vmatpush1.msra.mxu0 %v3873
    %3911 = vmatprep.subr.mxu0 0.0
    %3912 = vmatpush1.msra.mxu0 %v3874
    %3913 = vmatprep.subr.mxu0 0.0
    %3914 = vmatpush1.msra.mxu0 %v3875
    %3915 = vmatprep.subr.mxu0 0.0
    %3916 = vmatpush1.msra.mxu0 0.0
    %3917 = vmatprep.subr.mxu0 0.0
    %3918 = vmatpush1.msra.mxu0 0.0
    %3919 = vmatprep.subr.mxu0 0.0
    %3920 = vmatpush1.msra.mxu0 0.0
    %3921 = vmatprep.subr.mxu0 0.0
    %3922 = vmatpush1.msra.mxu0 0.0
    %3923 = vmatprep.subr.mxu0 0.0
    %3924 = vmatpush1.msra.mxu0 0.0
    %3925 = vmatprep.subr.mxu0 0.0
    %3926 = vmatpush1.msra.mxu0 0.0
    %3927 = vmatprep.subr.mxu0 0.0
    %3928 = vmatpush1.msra.mxu0 0.0
    %3929 = vmatprep.subr.mxu0 0.0
    %3930 = vmatpush1.msra.mxu0 0.0
    %3931 = vmatprep.subr.mxu0 0.0
    %3932 = vmatpush1.msra.mxu0 0.0
    %3933 = vmatprep.subr.mxu0 0.0
    %3934 = vmatpush1.msra.mxu0 0.0
    %3935 = vmatprep.subr.mxu0 0.0
    %3936 = vmatpush1.msra.mxu0 0.0
    %3937 = vmatprep.subr.mxu0 0.0
    %3938 = vmatpush1.msra.mxu0 0.0
    %3939 = vmatprep.subr.mxu0 0.0
    %3940 = vmatpush1.msra.mxu0 0.0
    %3941 = vmatprep.subr.mxu0 0.0
    %3942 = vmatpush1.msra.mxu0 0.0
    %3943 = vmatprep.subr.mxu0 0.0
    %3944 = vmatpush1.msra.mxu0 0.0
    %3945 = vmatprep.subr.mxu0 0.0
    %3946 = vmatpush1.msra.mxu0 0.0
    %3947 = vmatprep.mubr.f32.mxu0 0.0
    %3948 = vmatmul.mubr.f32.gmra.mrb[0].mxu0 %v3858
    %v3949 = vpop.f32.mrb[0].mxu0
    %v3950 = vadd.f32 %v3881, %v3949
    %v3951 = vpop.f32.mrb[0].mxu0
    %3952 = vmatprep.mubr.f32.mxu0 0.0
    %3953 = vmatmul.mubr.f32.gmra.mrb[0].mxu0 %v3859
    %v3954 = vpop.f32.mrb[0].mxu0
    %v3955 = vadd.f32 %v3881, %v3954
    %v3956 = vpop.f32.mrb[0].mxu0
    %3957 = vdwg.mxu0
    %3958 = vst [vmem:[%s12] sm:$0xff] %v3950
    %3959 = vst [vmem:[%s12 + $0x8] sm:$0xff] %v3955
    // Predicated region
    $region70: #{forward.1} parent=1 // pred_check
      _
    $region71: #{forward.1} parent=1 // pred_check_branch
      %3961 = sbr.rel (0) target = $region73
    $region72: #{forward.1} parent=1 // pred_region
      _
    $region73: #{forward.1} parent=1 // pred_fallthru
      _
    // Predicated region
    $region74: #{forward.1} parent=1 // pred_check
      _
    $region75: #{forward.1} parent=1 // pred_check_branch
      %3963 = sbr.rel (0) target = $region77
    $region76: #{forward.1} parent=1 // pred_region
      _
    $region77: #{forward.1} parent=1 // pred_fallthru
      _
    // Predicated region
    $region78: #{forward.1} parent=1 // pred_check
      _
    $region79: #{forward.1} parent=1 // pred_check_branch
      %3965 = sbr.rel (0) target = $region81
    $region80: #{forward.1} parent=1 // pred_region
      _
    $region81: #{forward.1} parent=1 // pred_fallthru
      _
    // Predicated region
    $region82: #{forward.1} parent=1 // pred_check
      _
    $region83: #{forward.1} parent=1 // pred_check_branch
      %3967 = sbr.rel (0) target = $region85
    $region84: #{forward.1} parent=1 // pred_region
      _
    $region85: #{forward.1} parent=1 // pred_fallthru
      _
    %3968 = vsyncpa [#allocation5], 1
    %3969 = vsyncpa [#allocation7], 1
    %3970 = vsyncpa [#allocation10], 1
    %3971 = vsyncpa [#allocation13], 1

</llo_original>
